<compile_context>
chip_gen: v5e
topology: v5e:2x2
jax: 0.10.0
libtpu: 0.0.40
codegen_flags: <defaults>
</compile_context>

<pallas_src>
import functools

import jax
import jax.numpy as jnp
from jax import lax
from jax.experimental import pallas as pl
from jax.experimental.pallas import tpu as pltpu


# ----------------------------------------------------------------------------
# Kernels
# ----------------------------------------------------------------------------
def _conv_kernel(x_ref, w_ref, m_ref, o_ref, acc_ref, *, Ho, Wo, Wq, kw,
                 do_norm, eps):
    """Fused conv (flattened-offset shifted matmuls) + InstanceNorm + LeakyReLU.

    x_ref  : (1, ROWS, Cin) bf16  padded (+ s2d / tap-folded) activations,
                                   spatially flattened row-major.
    w_ref  : (T, Cin, Cout)  bf16  weight taps (T = kh*kw, or 1 when folded).
    m_ref  : (PW, 1)         f32   validity mask (1.0 where column j < Wo).
    o_ref  : (1, PW, Cout)   bf16  output rows, PW = Ho * Wq.
    acc_ref: (PW, Cout)      f32   VMEM scratch accumulator.
    """
    T = w_ref.shape[0]
    PW = Ho * Wq
    for t in range(T):                      # static unroll over taps
        off = (t // kw) * Wq + (t % kw)     # static flattened row offset
        xs = x_ref[0, off:off + PW, :]      # contiguous row-window slice
        part = jnp.dot(xs, w_ref[t], preferred_element_type=jnp.float32)
        if t == 0:
            acc_ref[...] = part
        else:
            acc_ref[...] += part

    # Zero the (kw-1) wrap-around columns so they don't pollute the stats.
    y = acc_ref[...] * m_ref[...]           # (PW, Cout) f32

    if do_norm:
        # InstanceNorm2d (biased variance, eps=1e-5, no affine).  The conv
        # bias is omitted entirely for these layers: it cancels in the mean.
        inv_p = 1.0 / float(Ho * Wo)
        s = jnp.sum(y, axis=0, keepdims=True)          # (1, Cout)
        ss = jnp.sum(y * y, axis=0, keepdims=True)     # (1, Cout)
        mean = s * inv_p
        var = jnp.maximum(ss * inv_p - mean * mean, 0.0)
        y = (y - mean) * lax.rsqrt(var + eps)

    y = jnp.where(y >= 0.0, y, 0.2 * y)                # LeakyReLU(0.2)
    o_ref[0] = y.astype(o_ref.dtype)


def _head_kernel(x_ref, w_ref, b_ref, o_ref, *, Ho, Wo, Wq, kw):
    """Final C_out=1 conv + exact sigmoid, stored lane-dense as (1, 1, PW).

    x_ref: (1, ROWS, Cin) bf16
    w_ref: (T, 1, Cin)    bf16  (pre-transposed so each tap is a q.k^T dot)
    b_ref: (1, 1)         f32
    o_ref: (1, 1, PW)     f32   PW = Ho * Wq on the lane axis
    """
    # TODO(synk): fold all T taps into one matmul (needs an in-VMEM im2col);
    # negligible at these sizes so per-tap M=1 dots are kept.
    T = w_ref.shape[0]
    PW = Ho * Wq
    acc = jnp.zeros((1, PW), jnp.float32)
    for t in range(T):
        off = (t // kw) * Wq + (t % kw)
        xs = x_ref[0, off:off + PW, :]                 # (PW, Cin) contiguous
        acc = acc + lax.dot_general(
            w_ref[t], xs, (((1,), (1,)), ((), ())),
            preferred_element_type=jnp.float32)
    y = acc + b_ref[...]                               # (1, PW)
    o_ref[0] = 1.0 / (1.0 + jnp.exp(-y))               # exact sigmoid


# ----------------------------------------------------------------------------
# pallas_call wrappers
# ----------------------------------------------------------------------------
def _vmem_limit(est_bytes):
    return int(min(64 << 20, max(16 << 20, est_bytes + (4 << 20))))


def conv_layer(x, w, mask, *, Ho, Wo, Wq, kw, do_norm):
    """x: (N, ROWS, Cin) bf16, w: (T, Cin, Cout) bf16, mask: (PW, 1) f32
    -> (N, Ho, Wo, Cout) bf16."""
    N, ROWS, Cin = x.shape
    T, _, Cout = w.shape
    PW = Ho * Wq
    est = (2 * (ROWS * Cin * 2 + PW * Cout * 2)
           + T * Cin * Cout * 2 + PW * Cout * 4 + PW * 4)
    kernel = functools.partial(_conv_kernel, Ho=Ho, Wo=Wo, Wq=Wq, kw=kw,
                               do_norm=do_norm, eps=1e-5)
    out = pl.pallas_call(
        kernel,
        out_shape=jax.ShapeDtypeStruct((N, PW, Cout), jnp.bfloat16),
        grid=(N,),
        in_specs=[
            pl.BlockSpec((1, ROWS, Cin), lambda n: (n, 0, 0)),
            pl.BlockSpec((T, Cin, Cout), lambda n: (0, 0, 0)),
            pl.BlockSpec((PW, 1), lambda n: (0, 0)),
        ],
        out_specs=pl.BlockSpec((1, PW, Cout), lambda n: (n, 0, 0)),
        scratch_shapes=[pltpu.VMEM((PW, Cout), jnp.float32)],
        compiler_params=pltpu.CompilerParams(
            dimension_semantics=("parallel",),
            vmem_limit_bytes=_vmem_limit(est)),
    )(x, w, mask)
    out = out.reshape(N, Ho, Wq, Cout)
    if Wq != Wo:
        out = out[:, :, :Wo, :]            # drop wrap-around columns
    return out


def head_layer(x, w, b, *, Ho, Wo, Wq, kw):
    """x: (N, ROWS, Cin) bf16, w: (T, 1, Cin) bf16, b: (1, 1) f32
    -> (N, 1, Ho, Wo) f32 (already NCHW since C_out = 1)."""
    N, ROWS, Cin = x.shape
    T = w.shape[0]
    PW = Ho * Wq
    est = 2 * (ROWS * Cin * 2 + PW * 4) + T * Cin * 2
    kernel = functools.partial(_head_kernel, Ho=Ho, Wo=Wo, Wq=Wq, kw=kw)
    out = pl.pallas_call(
        kernel,
        out_shape=jax.ShapeDtypeStruct((N, 1, PW), jnp.float32),
        grid=(N,),
        in_specs=[
            pl.BlockSpec((1, ROWS, Cin), lambda n: (n, 0, 0)),
            pl.BlockSpec((T, 1, Cin), lambda n: (0, 0, 0)),
            pl.BlockSpec((1, 1), lambda n: (0, 0)),
        ],
        out_specs=pl.BlockSpec((1, 1, PW), lambda n: (n, 0, 0)),
        compiler_params=pltpu.CompilerParams(
            dimension_semantics=("parallel",),
            vmem_limit_bytes=_vmem_limit(est)),
    )(x, w, b)
    out = out.reshape(N, 1, Ho, Wq)
    if Wq != Wo:
        out = out[:, :, :, :Wo]
    return out


# ----------------------------------------------------------------------------
# Host-side layout plumbing (pad + optional pixel-unshuffle + flatten)
# ----------------------------------------------------------------------------
def _prep_input(x, stride, pad_mode, fold):
    """Pad NHWC by 1; stride-2 layers get space-to-depth so the conv becomes
    kernel-2/stride-1; layer 1 additionally folds the remaining 2x2 taps into
    channels (1x1 conv, K=16*Cin).  The result is spatially flattened to
    (N, ROWS, C) with ROWS padded (zeros) so every tap's row-window slice of
    length Ho*Wq stays in bounds."""
    mode = "reflect" if pad_mode == "reflect" else "constant"
    x = jnp.pad(x, ((0, 0), (1, 1), (1, 1), (0, 0)), mode=mode)
    if stride == 2:
        N, Hp, Wp, C = x.shape
        x = x.reshape(N, Hp // 2, 2, Wp // 2, 2, C)
        x = x.transpose(0, 1, 3, 2, 4, 5).reshape(N, Hp // 2, Wp // 2, 4 * C)
        kh = kw = 2
    else:
        kh = kw = 4
    if fold:
        assert stride == 2
        # Fold the remaining 2x2 taps into channels -> 1x1 conv, K = 16*Cin.
        x = jnp.concatenate(
            [x[:, :-1, :-1], x[:, :-1, 1:], x[:, 1:, :-1], x[:, 1:, 1:]],
            axis=-1)
        kh = kw = 1

    N, Hq, Wq, C = x.shape
    Ho, Wo = Hq - kh + 1, Wq - kw + 1
    rows = Hq * Wq
    max_end = (kh - 1) * Wq + (kw - 1) + Ho * Wq       # largest slice end
    total = -(-max(rows, max_end) // 8) * 8            # sublane-align rows
    xf = x.reshape(N, rows, C)
    if total > rows:
        xf = jnp.pad(xf, ((0, 0), (0, total - rows), (0, 0)))
    return xf, Ho, Wo, Wq, kw


def _valid_mask(Ho, Wo, Wq):
    col = (jnp.arange(Wq) < Wo).astype(jnp.float32)    # (Wq,)
    return jnp.broadcast_to(col, (Ho, Wq)).reshape(Ho * Wq, 1)


# ----------------------------------------------------------------------------
# Parameter construction (deterministic, torch-default-like scale)
# ----------------------------------------------------------------------------
def make_params(key, in_channels, num_features):
    # (c_in, c_out, stride, pad_mode, instance_norm)
    layer_cfg = [
        (in_channels,      num_features,     2, "reflect", True),
        (num_features,     num_features * 2, 2, "zeros",   True),
        (num_features * 2, num_features * 4, 2, "zeros",   True),
        (num_features * 4, num_features * 8, 1, "zeros",   True),
        (num_features * 8, 1,                1, "zeros",   False),
    ]
    params = []
    for idx, (c_in, c_out, stride, pmode, norm) in enumerate(layer_cfg):
        key, k_w, k_b = jax.random.split(key, 3)
        fan_in = c_in * 16
        bound = float(fan_in) ** -0.5
        w = jax.random.uniform(k_w, (c_out, c_in, 4, 4), jnp.float32, -bound, bound)
        b = jax.random.uniform(k_b, (c_out,), jnp.float32, -bound, bound)

        # torch (Cout, Cin, kh, kw) -> tap-major matmul layout.
        wt = jnp.transpose(w, (2, 3, 1, 0))                # (kh, kw, cin, cout)
        fold = stride == 2 and c_in <= 4                   # only the RGB layer
        if stride == 2:
            # kernel-4/stride-2 becomes kernel-2/stride-1 on the s2d input:
            # tap t = a*2 + b, channel = (2p + q)*cin + c.
            wt = wt.reshape(2, 2, 2, 2, c_in, c_out)       # (a, p, b, q, c, co)
            wt = jnp.transpose(wt, (0, 2, 1, 3, 4, 5))     # (a, b, p, q, c, co)
            wt = wt.reshape(4, 4 * c_in, c_out)            # (T=4, 4*cin, cout)
            if fold:
                wt = wt.reshape(1, 16 * c_in, c_out)       # folded 1x1 conv
        else:
            wt = wt.reshape(16, c_in, c_out)               # (T=16, cin, cout)

        is_head = idx == len(layer_cfg) - 1
        if is_head:
            wt = jnp.transpose(wt, (0, 2, 1))              # (T, 1, cin)

        params.append(dict(
            w=wt.astype(jnp.bfloat16),
            b=b.reshape(1, c_out).astype(jnp.float32),     # only used by head
            stride=stride, pad_mode=pmode, norm=norm, fold=fold,
        ))
    return params


# ----------------------------------------------------------------------------
# Full forward pass
# ----------------------------------------------------------------------------
def discriminator_forward(x_nchw, params):
    """x: (N, C, H, W) f32 NCHW -> (N, 1, H', W') f32 NCHW (sigmoid outputs)."""
    x = jnp.transpose(x_nchw, (0, 2, 3, 1)).astype(jnp.bfloat16)   # NHWC bf16
    n_layers = len(params)
    for li, layer in enumerate(params):
        xf, Ho, Wo, Wq, kw = _prep_input(
            x, layer["stride"], layer["pad_mode"], layer["fold"])
        if li < n_layers - 1:
            mask = _valid_mask(Ho, Wo, Wq)
            x = conv_layer(xf, layer["w"], mask,
                           Ho=Ho, Wo=Wo, Wq=Wq, kw=kw, do_norm=layer["norm"])
        else:
            x = head_layer(xf, layer["w"], layer["b"],
                           Ho=Ho, Wo=Wo, Wq=Wq, kw=kw)
    return x


if __name__ == "__main__":
    key = jax.random.PRNGKey(0)
    k_x, k_p = jax.random.split(key)

    # Small shapes consistent with the module: batch=2, in_channels=3,
    # spatial 32x32 (smallest size that survives all 5 conv layers),
    # num_features=8 instead of 64 to keep it tiny.
    in_channels, num_features = 3, 8
    x = jax.random.normal(k_x, (2, in_channels, 32, 32), jnp.float32)
    params = make_params(k_p, in_channels, num_features)

    fwd = jax.jit(lambda xx: discriminator_forward(xx, params))
    y = fwd(x)
    jax.block_until_ready(y)

    # PatchGAN head output: (2, 1, 2, 2) for a 32x32 input, values in [0, 1].
    assert y.shape == (2, 1, 2, 2), y.shape
    assert bool(jnp.all(jnp.isfinite(y)))
    assert bool(jnp.all((y >= 0.0) & (y <= 1.0)))
    print("KERNEL_OK")
</pallas_src>

<mosaic_0001>
module attributes {stable_mosaic.version = 11 : i64} {
  func.func @_conv_kernel(%arg0: i32, %arg1: memref<1x256x48xbf16, #tpu.memory_space<vmem>>, %arg2: memref<1x48x8xbf16, #tpu.memory_space<vmem>>, %arg3: memref<256x1xf32, #tpu.memory_space<vmem>>, %arg4: memref<1x256x8xbf16, #tpu.memory_space<vmem>>, %arg5: memref<256x8xf32, #tpu.memory_space<vmem>>) attributes {dimension_semantics = [#tpu.dimension_semantics<parallel>], iteration_bounds = array<i64: 2>, scalar_prefetch = 0 : i64, scratch_operands = 1 : i64, tpu.core_type = #tpu.core_type<tc>, window_params = [{transform_indices = @transform_0, window_bounds = array<i64: 1, 256, 48>}, {pipeline_mode = #tpu.pipeline_mode<synchronous>, transform_indices = @transform_1, window_bounds = array<i64: 1, 48, 8>}, {pipeline_mode = #tpu.pipeline_mode<synchronous>, transform_indices = @transform_2, window_bounds = array<i64: 256, 1>}, {transform_indices = @transform_3, window_bounds = array<i64: 1, 256, 8>}]} {
    %c0 = arith.constant 0 : index
    %c0_0 = arith.constant 0 : index
    %c0_1 = arith.constant 0 : index
    %0 = vector.load %arg1[%c0, %c0_0, %c0_1] : memref<1x256x48xbf16, #tpu.memory_space<vmem>>, vector<1x256x48xbf16>
    %1 = vector.shape_cast %0 : vector<1x256x48xbf16> to vector<256x48xbf16>
    %c0_2 = arith.constant 0 : index
    %c0_3 = arith.constant 0 : index
    %c0_4 = arith.constant 0 : index
    %2 = vector.load %arg2[%c0_2, %c0_3, %c0_4] : memref<1x48x8xbf16, #tpu.memory_space<vmem>>, vector<1x48x8xbf16>
    %3 = vector.shape_cast %2 : vector<1x48x8xbf16> to vector<48x8xbf16>
    %cst = arith.constant dense<0.000000e+00> : vector<256x8xf32>
    %4 = tpu.matmul %1, %3, %cst {dimension_numbers = #tpu.dot_dimension_numbers<[1], [0], [0], [1], [0, 0, 1, 1], [], []>} : vector<256x48xbf16>, vector<48x8xbf16>, vector<256x8xf32> -> vector<256x8xf32>
    %c0_5 = arith.constant 0 : index
    %c0_6 = arith.constant 0 : index
    %5 = vector.load %arg5[%c0_5, %c0_6] : memref<256x8xf32, #tpu.memory_space<vmem>>, vector<256x8xf32>
    tpu.vector_store %arg5[%c0_5, %c0_6], %4 {strides = array<i32>} : memref<256x8xf32, #tpu.memory_space<vmem>>, vector<256x8xf32>,
    %c0_7 = arith.constant 0 : index
    %c0_8 = arith.constant 0 : index
    %6 = vector.load %arg5[%c0_7, %c0_8] : memref<256x8xf32, #tpu.memory_space<vmem>>, vector<256x8xf32>
    %c0_9 = arith.constant 0 : index
    %c0_10 = arith.constant 0 : index
    %7 = vector.load %arg3[%c0_9, %c0_10] : memref<256x1xf32, #tpu.memory_space<vmem>>, vector<256x1xf32>
    %8 = vector.broadcast %7 : vector<256x1xf32> to vector<256x8xf32>
    %9 = arith.mulf %6, %8 : vector<256x8xf32>
    %cst_11 = arith.constant dense<0.000000e+00> : vector<8xf32>
    %10 = vector.multi_reduction <add>, %9, %cst_11 [0] : vector<256x8xf32> to vector<8xf32>
    %11 = vector.shape_cast %10 : vector<8xf32> to vector<1x8xf32>
    %12 = arith.mulf %9, %9 : vector<256x8xf32>
    %cst_12 = arith.constant dense<0.000000e+00> : vector<8xf32>
    %13 = vector.multi_reduction <add>, %12, %cst_12 [0] : vector<256x8xf32> to vector<8xf32>
    %14 = vector.shape_cast %13 : vector<8xf32> to vector<1x8xf32>
    %cst_13 = arith.constant 3.906250e-03 : f32
    %15 = vector.broadcast %cst_13 : f32 to vector<1x8xf32>
    %16 = arith.mulf %11, %15 : vector<1x8xf32>
    %cst_14 = arith.constant 3.906250e-03 : f32
    %17 = vector.broadcast %cst_14 : f32 to vector<1x8xf32>
    %18 = arith.mulf %14, %17 : vector<1x8xf32>
    %19 = arith.mulf %16, %16 : vector<1x8xf32>
    %20 = arith.subf %18, %19 : vector<1x8xf32>
    %cst_15 = arith.constant 0.000000e+00 : f32
    %21 = vector.broadcast %cst_15 : f32 to vector<1x8xf32>
    %22 = arith.maximumf %20, %21 : vector<1x8xf32>
    %23 = vector.broadcast %16 : vector<1x8xf32> to vector<256x8xf32>
    %24 = arith.subf %9, %23 : vector<256x8xf32>
    %cst_16 = arith.constant 9.99999974E-6 : f32
    %25 = vector.broadcast %cst_16 : f32 to vector<1x8xf32>
    %26 = arith.addf %22, %25 : vector<1x8xf32>
    %27 = math.rsqrt %26 : vector<1x8xf32>
    %28 = vector.broadcast %27 : vector<1x8xf32> to vector<256x8xf32>
    %29 = arith.mulf %24, %28 : vector<256x8xf32>
    %cst_17 = arith.constant 0.000000e+00 : f32
    %30 = vector.broadcast %cst_17 : f32 to vector<256x8xf32>
    %31 = arith.cmpf oge, %29, %30 : vector<256x8xf32>
    %cst_18 = arith.constant 2.000000e-01 : f32
    %32 = vector.broadcast %cst_18 : f32 to vector<256x8xf32>
    %33 = arith.mulf %32, %29 : vector<256x8xf32>
    %34 = arith.select %31, %29, %33 : vector<256x8xi1>, vector<256x8xf32>
    %35 = arith.truncf %34 : vector<256x8xf32> to vector<256x8xbf16>
    %c0_19 = arith.constant 0 : index
    %c0_20 = arith.constant 0 : index
    %c0_21 = arith.constant 0 : index
    %36 = vector.load %arg4[%c0_19, %c0_20, %c0_21] : memref<1x256x8xbf16, #tpu.memory_space<vmem>>, vector<1x256x8xbf16>
    %37 = vector.shape_cast %36 : vector<1x256x8xbf16> to vector<256x8xbf16>
    %38 = vector.shape_cast %35 : vector<256x8xbf16> to vector<1x256x8xbf16>
    tpu.vector_store %arg4[%c0_19, %c0_20, %c0_21], %38 {strides = array<i32>} : memref<1x256x8xbf16, #tpu.memory_space<vmem>>, vector<1x256x8xbf16>,
    return
  }
  func.func @transform_0(%arg0: i32) -> (i32, i32, i32) {
    %c0_i32 = arith.constant 0 : i32
    %c0_i32_0 = arith.constant 0 : i32
    %c0_i32_1 = arith.constant 0 : i32
    return %arg0, %c0_i32, %c0_i32_0 : i32, i32, i32
  }
  func.func @transform_1(%arg0: i32) -> (i32, i32, i32) {
    %c0_i32 = arith.constant 0 : i32
    %c0_i32_0 = arith.constant 0 : i32
    %c0_i32_1 = arith.constant 0 : i32
    %c0_i32_2 = arith.constant 0 : i32
    return %c0_i32, %c0_i32_0, %c0_i32_1 : i32, i32, i32
  }
  func.func @transform_2(%arg0: i32) -> (i32, i32) {
    %c0_i32 = arith.constant 0 : i32
    %c0_i32_0 = arith.constant 0 : i32
    %c0_i32_1 = arith.constant 0 : i32
    return %c0_i32, %c0_i32_0 : i32, i32
  }
  func.func @transform_3(%arg0: i32) -> (i32, i32, i32) {
    %c0_i32 = arith.constant 0 : i32
    %c0_i32_0 = arith.constant 0 : i32
    %c0_i32_1 = arith.constant 0 : i32
    return %arg0, %c0_i32, %c0_i32_0 : i32, i32, i32
  }
}

module attributes {stable_mosaic.version = 11 : i64} {
  func.func @_conv_kernel(%arg0: i32, %arg1: memref<1x88x32xbf16, #tpu.memory_space<vmem>>, %arg2: memref<4x32x16xbf16, #tpu.memory_space<vmem>>, %arg3: memref<72x1xf32, #tpu.memory_space<vmem>>, %arg4: memref<1x72x16xbf16, #tpu.memory_space<vmem>>, %arg5: memref<72x16xf32, #tpu.memory_space<vmem>>) attributes {dimension_semantics = [#tpu.dimension_semantics<parallel>], iteration_bounds = array<i64: 2>, scalar_prefetch = 0 : i64, scratch_operands = 1 : i64, tpu.core_type = #tpu.core_type<tc>, window_params = [{transform_indices = @transform_0, window_bounds = array<i64: 1, 88, 32>}, {pipeline_mode = #tpu.pipeline_mode<synchronous>, transform_indices = @transform_1, window_bounds = array<i64: 4, 32, 16>}, {pipeline_mode = #tpu.pipeline_mode<synchronous>, transform_indices = @transform_2, window_bounds = array<i64: 72, 1>}, {transform_indices = @transform_3, window_bounds = array<i64: 1, 72, 16>}]} {
    %c0 = arith.constant 0 : index
    %c0_0 = arith.constant 0 : index
    %c0_1 = arith.constant 0 : index
    %0 = vector.load %arg1[%c0, %c0_0, %c0_1] : memref<1x88x32xbf16, #tpu.memory_space<vmem>>, vector<1x72x32xbf16>
    %1 = vector.shape_cast %0 : vector<1x72x32xbf16> to vector<72x32xbf16>
    %c0_2 = arith.constant 0 : index
    %c0_3 = arith.constant 0 : index
    %c0_4 = arith.constant 0 : index
    %2 = vector.load %arg2[%c0_2, %c0_3, %c0_4] : memref<4x32x16xbf16, #tpu.memory_space<vmem>>, vector<1x32x16xbf16>
    %3 = vector.shape_cast %2 : vector<1x32x16xbf16> to vector<32x16xbf16>
    %cst = arith.constant dense<0.000000e+00> : vector<72x16xf32>
    %4 = tpu.matmul %1, %3, %cst {dimension_numbers = #tpu.dot_dimension_numbers<[1], [0], [0], [1], [0, 0, 1, 1], [], []>} : vector<72x32xbf16>, vector<32x16xbf16>, vector<72x16xf32> -> vector<72x16xf32>
    %c0_5 = arith.constant 0 : index
    %c0_6 = arith.constant 0 : index
    %5 = vector.load %arg5[%c0_5, %c0_6] : memref<72x16xf32, #tpu.memory_space<vmem>>, vector<72x16xf32>
    tpu.vector_store %arg5[%c0_5, %c0_6], %4 {strides = array<i32>} : memref<72x16xf32, #tpu.memory_space<vmem>>, vector<72x16xf32>,
    %c0_7 = arith.constant 0 : index
    %c1 = arith.constant 1 : index
    %c0_8 = arith.constant 0 : index
    %6 = vector.load %arg1[%c0_7, %c1, %c0_8] : memref<1x88x32xbf16, #tpu.memory_space<vmem>>, vector<1x72x32xbf16>
    %7 = vector.shape_cast %6 : vector<1x72x32xbf16> to vector<72x32xbf16>
    %c1_9 = arith.constant 1 : index
    %c0_10 = arith.constant 0 : index
    %c0_11 = arith.constant 0 : index
    %8 = vector.load %arg2[%c1_9, %c0_10, %c0_11] : memref<4x32x16xbf16, #tpu.memory_space<vmem>>, vector<1x32x16xbf16>
    %9 = vector.shape_cast %8 : vector<1x32x16xbf16> to vector<32x16xbf16>
    %cst_12 = arith.constant dense<0.000000e+00> : vector<72x16xf32>
    %10 = tpu.matmul %7, %9, %cst_12 {dimension_numbers = #tpu.dot_dimension_numbers<[1], [0], [0], [1], [0, 0, 1, 1], [], []>} : vector<72x32xbf16>, vector<32x16xbf16>, vector<72x16xf32> -> vector<72x16xf32>
    %c0_13 = arith.constant 0 : index
    %c0_14 = arith.constant 0 : index
    %11 = vector.load %arg5[%c0_13, %c0_14] : memref<72x16xf32, #tpu.memory_space<vmem>>, vector<72x16xf32>
    %12 = arith.addf %11, %10 : vector<72x16xf32>
    %c0_15 = arith.constant 0 : index
    %c0_16 = arith.constant 0 : index
    %13 = vector.load %arg5[%c0_15, %c0_16] : memref<72x16xf32, #tpu.memory_space<vmem>>, vector<72x16xf32>
    tpu.vector_store %arg5[%c0_15, %c0_16], %12 {strides = array<i32>} : memref<72x16xf32, #tpu.memory_space<vmem>>, vector<72x16xf32>,
    %c0_17 = arith.constant 0 : index
    %c9 = arith.constant 9 : index
    %c0_18 = arith.constant 0 : index
    %14 = vector.load %arg1[%c0_17, %c9, %c0_18] : memref<1x88x32xbf16, #tpu.memory_space<vmem>>, vector<1x72x32xbf16>
    %15 = vector.shape_cast %14 : vector<1x72x32xbf16> to vector<72x32xbf16>
    %c2 = arith.constant 2 : index
    %c0_19 = arith.constant 0 : index
    %c0_20 = arith.constant 0 : index
    %16 = vector.load %arg2[%c2, %c0_19, %c0_20] : memref<4x32x16xbf16, #tpu.memory_space<vmem>>, vector<1x32x16xbf16>
    %17 = vector.shape_cast %16 : vector<1x32x16xbf16> to vector<32x16xbf16>
    %cst_21 = arith.constant dense<0.000000e+00> : vector<72x16xf32>
    %18 = tpu.matmul %15, %17, %cst_21 {dimension_numbers = #tpu.dot_dimension_numbers<[1], [0], [0], [1], [0, 0, 1, 1], [], []>} : vector<72x32xbf16>, vector<32x16xbf16>, vector<72x16xf32> -> vector<72x16xf32>
    %c0_22 = arith.constant 0 : index
    %c0_23 = arith.constant 0 : index
    %19 = vector.load %arg5[%c0_22, %c0_23] : memref<72x16xf32, #tpu.memory_space<vmem>>, vector<72x16xf32>
    %20 = arith.addf %19, %18 : vector<72x16xf32>
    %c0_24 = arith.constant 0 : index
    %c0_25 = arith.constant 0 : index
    %21 = vector.load %arg5[%c0_24, %c0_25] : memref<72x16xf32, #tpu.memory_space<vmem>>, vector<72x16xf32>
    tpu.vector_store %arg5[%c0_24, %c0_25], %20 {strides = array<i32>} : memref<72x16xf32, #tpu.memory_space<vmem>>, vector<72x16xf32>,
    %c0_26 = arith.constant 0 : index
    %c10 = arith.constant 10 : index
    %c0_27 = arith.constant 0 : index
    %22 = vector.load %arg1[%c0_26, %c10, %c0_27] : memref<1x88x32xbf16, #tpu.memory_space<vmem>>, vector<1x72x32xbf16>
    %23 = vector.shape_cast %22 : vector<1x72x32xbf16> to vector<72x32xbf16>
    %c3 = arith.constant 3 : index
    %c0_28 = arith.constant 0 : index
    %c0_29 = arith.constant 0 : index
    %24 = vector.load %arg2[%c3, %c0_28, %c0_29] : memref<4x32x16xbf16, #tpu.memory_space<vmem>>, vector<1x32x16xbf16>
    %25 = vector.shape_cast %24 : vector<1x32x16xbf16> to vector<32x16xbf16>
    %cst_30 = arith.constant dense<0.000000e+00> : vector<72x16xf32>
    %26 = tpu.matmul %23, %25, %cst_30 {dimension_numbers = #tpu.dot_dimension_numbers<[1], [0], [0], [1], [0, 0, 1, 1], [], []>} : vector<72x32xbf16>, vector<32x16xbf16>, vector<72x16xf32> -> vector<72x16xf32>
    %c0_31 = arith.constant 0 : index
    %c0_32 = arith.constant 0 : index
    %27 = vector.load %arg5[%c0_31, %c0_32] : memref<72x16xf32, #tpu.memory_space<vmem>>, vector<72x16xf32>
    %28 = arith.addf %27, %26 : vector<72x16xf32>
    %c0_33 = arith.constant 0 : index
    %c0_34 = arith.constant 0 : index
    %29 = vector.load %arg5[%c0_33, %c0_34] : memref<72x16xf32, #tpu.memory_space<vmem>>, vector<72x16xf32>
    tpu.vector_store %arg5[%c0_33, %c0_34], %28 {strides = array<i32>} : memref<72x16xf32, #tpu.memory_space<vmem>>, vector<72x16xf32>,
    %c0_35 = arith.constant 0 : index
    %c0_36 = arith.constant 0 : index
    %30 = vector.load %arg5[%c0_35, %c0_36] : memref<72x16xf32, #tpu.memory_space<vmem>>, vector<72x16xf32>
    %c0_37 = arith.constant 0 : index
    %c0_38 = arith.constant 0 : index
    %31 = vector.load %arg3[%c0_37, %c0_38] : memref<72x1xf32, #tpu.memory_space<vmem>>, vector<72x1xf32>
    %32 = vector.broadcast %31 : vector<72x1xf32> to vector<72x16xf32>
    %33 = arith.mulf %30, %32 : vector<72x16xf32>
    %cst_39 = arith.constant dense<0.000000e+00> : vector<16xf32>
    %34 = vector.multi_reduction <add>, %33, %cst_39 [0] : vector<72x16xf32> to vector<16xf32>
    %35 = vector.shape_cast %34 : vector<16xf32> to vector<1x16xf32>
    %36 = arith.mulf %33, %33 : vector<72x16xf32>
    %cst_40 = arith.constant dense<0.000000e+00> : vector<16xf32>
    %37 = vector.multi_reduction <add>, %36, %cst_40 [0] : vector<72x16xf32> to vector<16xf32>
    %38 = vector.shape_cast %37 : vector<16xf32> to vector<1x16xf32>
    %cst_41 = arith.constant 1.562500e-02 : f32
    %39 = vector.broadcast %cst_41 : f32 to vector<1x16xf32>
    %40 = arith.mulf %35, %39 : vector<1x16xf32>
    %cst_42 = arith.constant 1.562500e-02 : f32
    %41 = vector.broadcast %cst_42 : f32 to vector<1x16xf32>
    %42 = arith.mulf %38, %41 : vector<1x16xf32>
    %43 = arith.mulf %40, %40 : vector<1x16xf32>
    %44 = arith.subf %42, %43 : vector<1x16xf32>
    %cst_43 = arith.constant 0.000000e+00 : f32
    %45 = vector.broadcast %cst_43 : f32 to vector<1x16xf32>
    %46 = arith.maximumf %44, %45 : vector<1x16xf32>
    %47 = vector.broadcast %40 : vector<1x16xf32> to vector<72x16xf32>
    %48 = arith.subf %33, %47 : vector<72x16xf32>
    %cst_44 = arith.constant 9.99999974E-6 : f32
    %49 = vector.broadcast %cst_44 : f32 to vector<1x16xf32>
    %50 = arith.addf %46, %49 : vector<1x16xf32>
    %51 = math.rsqrt %50 : vector<1x16xf32>
    %52 = vector.broadcast %51 : vector<1x16xf32> to vector<72x16xf32>
    %53 = arith.mulf %48, %52 : vector<72x16xf32>
    %cst_45 = arith.constant 0.000000e+00 : f32
    %54 = vector.broadcast %cst_45 : f32 to vector<72x16xf32>
    %55 = arith.cmpf oge, %53, %54 : vector<72x16xf32>
    %cst_46 = arith.constant 2.000000e-01 : f32
    %56 = vector.broadcast %cst_46 : f32 to vector<72x16xf32>
    %57 = arith.mulf %56, %53 : vector<72x16xf32>
    %58 = arith.select %55, %53, %57 : vector<72x16xi1>, vector<72x16xf32>
    %59 = arith.truncf %58 : vector<72x16xf32> to vector<72x16xbf16>
    %c0_47 = arith.constant 0 : index
    %c0_48 = arith.constant 0 : index
    %c0_49 = arith.constant 0 : index
    %60 = vector.load %arg4[%c0_47, %c0_48, %c0_49] : memref<1x72x16xbf16, #tpu.memory_space<vmem>>, vector<1x72x16xbf16>
    %61 = vector.shape_cast %60 : vector<1x72x16xbf16> to vector<72x16xbf16>
    %62 = vector.shape_cast %59 : vector<72x16xbf16> to vector<1x72x16xbf16>
    tpu.vector_store %arg4[%c0_47, %c0_48, %c0_49], %62 {strides = array<i32>} : memref<1x72x16xbf16, #tpu.memory_space<vmem>>, vector<1x72x16xbf16>,
    return
  }
  func.func @transform_0(%arg0: i32) -> (i32, i32, i32) {
    %c0_i32 = arith.constant 0 : i32
    %c0_i32_0 = arith.constant 0 : i32
    %c0_i32_1 = arith.constant 0 : i32
    return %arg0, %c0_i32, %c0_i32_0 : i32, i32, i32
  }
  func.func @transform_1(%arg0: i32) -> (i32, i32, i32) {
    %c0_i32 = arith.constant 0 : i32
    %c0_i32_0 = arith.constant 0 : i32
    %c0_i32_1 = arith.constant 0 : i32
    %c0_i32_2 = arith.constant 0 : i32
    return %c0_i32, %c0_i32_0, %c0_i32_1 : i32, i32, i32
  }
  func.func @transform_2(%arg0: i32) -> (i32, i32) {
    %c0_i32 = arith.constant 0 : i32
    %c0_i32_0 = arith.constant 0 : i32
    %c0_i32_1 = arith.constant 0 : i32
    return %c0_i32, %c0_i32_0 : i32, i32
  }
  func.func @transform_3(%arg0: i32) -> (i32, i32, i32) {
    %c0_i32 = arith.constant 0 : i32
    %c0_i32_0 = arith.constant 0 : i32
    %c0_i32_1 = arith.constant 0 : i32
    return %arg0, %c0_i32, %c0_i32_0 : i32, i32, i32
  }
}

module attributes {stable_mosaic.version = 11 : i64} {
  func.func @_conv_kernel(%arg0: i32, %arg1: memref<1x32x64xbf16, #tpu.memory_space<vmem>>, %arg2: memref<4x64x32xbf16, #tpu.memory_space<vmem>>, %arg3: memref<20x1xf32, #tpu.memory_space<vmem>>, %arg4: memref<1x20x32xbf16, #tpu.memory_space<vmem>>, %arg5: memref<20x32xf32, #tpu.memory_space<vmem>>) attributes {dimension_semantics = [#tpu.dimension_semantics<parallel>], iteration_bounds = array<i64: 2>, scalar_prefetch = 0 : i64, scratch_operands = 1 : i64, tpu.core_type = #tpu.core_type<tc>, window_params = [{transform_indices = @transform_0, window_bounds = array<i64: 1, 32, 64>}, {pipeline_mode = #tpu.pipeline_mode<synchronous>, transform_indices = @transform_1, window_bounds = array<i64: 4, 64, 32>}, {pipeline_mode = #tpu.pipeline_mode<synchronous>, transform_indices = @transform_2, window_bounds = array<i64: 20, 1>}, {transform_indices = @transform_3, window_bounds = array<i64: 1, 20, 32>}]} {
    %c0 = arith.constant 0 : index
    %c0_0 = arith.constant 0 : index
    %c0_1 = arith.constant 0 : index
    %0 = vector.load %arg1[%c0, %c0_0, %c0_1] : memref<1x32x64xbf16, #tpu.memory_space<vmem>>, vector<1x20x64xbf16>
    %1 = vector.shape_cast %0 : vector<1x20x64xbf16> to vector<20x64xbf16>
    %c0_2 = arith.constant 0 : index
    %c0_3 = arith.constant 0 : index
    %c0_4 = arith.constant 0 : index
    %2 = vector.load %arg2[%c0_2, %c0_3, %c0_4] : memref<4x64x32xbf16, #tpu.memory_space<vmem>>, vector<1x64x32xbf16>
    %3 = vector.shape_cast %2 : vector<1x64x32xbf16> to vector<64x32xbf16>
    %cst = arith.constant dense<0.000000e+00> : vector<20x32xf32>
    %4 = tpu.matmul %1, %3, %cst {dimension_numbers = #tpu.dot_dimension_numbers<[1], [0], [0], [1], [0, 0, 1, 1], [], []>} : vector<20x64xbf16>, vector<64x32xbf16>, vector<20x32xf32> -> vector<20x32xf32>
    %c0_5 = arith.constant 0 : index
    %c0_6 = arith.constant 0 : index
    %5 = vector.load %arg5[%c0_5, %c0_6] : memref<20x32xf32, #tpu.memory_space<vmem>>, vector<20x32xf32>
    tpu.vector_store %arg5[%c0_5, %c0_6], %4 {strides = array<i32>} : memref<20x32xf32, #tpu.memory_space<vmem>>, vector<20x32xf32>,
    %c0_7 = arith.constant 0 : index
    %c1 = arith.constant 1 : index
    %c0_8 = arith.constant 0 : index
    %6 = vector.load %arg1[%c0_7, %c1, %c0_8] : memref<1x32x64xbf16, #tpu.memory_space<vmem>>, vector<1x20x64xbf16>
    %7 = vector.shape_cast %6 : vector<1x20x64xbf16> to vector<20x64xbf16>
    %c1_9 = arith.constant 1 : index
    %c0_10 = arith.constant 0 : index
    %c0_11 = arith.constant 0 : index
    %8 = vector.load %arg2[%c1_9, %c0_10, %c0_11] : memref<4x64x32xbf16, #tpu.memory_space<vmem>>, vector<1x64x32xbf16>
    %9 = vector.shape_cast %8 : vector<1x64x32xbf16> to vector<64x32xbf16>
    %cst_12 = arith.constant dense<0.000000e+00> : vector<20x32xf32>
    %10 = tpu.matmul %7, %9, %cst_12 {dimension_numbers = #tpu.dot_dimension_numbers<[1], [0], [0], [1], [0, 0, 1, 1], [], []>} : vector<20x64xbf16>, vector<64x32xbf16>, vector<20x32xf32> -> vector<20x32xf32>
    %c0_13 = arith.constant 0 : index
    %c0_14 = arith.constant 0 : index
    %11 = vector.load %arg5[%c0_13, %c0_14] : memref<20x32xf32, #tpu.memory_space<vmem>>, vector<20x32xf32>
    %12 = arith.addf %11, %10 : vector<20x32xf32>
    %c0_15 = arith.constant 0 : index
    %c0_16 = arith.constant 0 : index
    %13 = vector.load %arg5[%c0_15, %c0_16] : memref<20x32xf32, #tpu.memory_space<vmem>>, vector<20x32xf32>
    tpu.vector_store %arg5[%c0_15, %c0_16], %12 {strides = array<i32>} : memref<20x32xf32, #tpu.memory_space<vmem>>, vector<20x32xf32>,
    %c0_17 = arith.constant 0 : index
    %c5 = arith.constant 5 : index
    %c0_18 = arith.constant 0 : index
    %14 = vector.load %arg1[%c0_17, %c5, %c0_18] : memref<1x32x64xbf16, #tpu.memory_space<vmem>>, vector<1x20x64xbf16>
    %15 = vector.shape_cast %14 : vector<1x20x64xbf16> to vector<20x64xbf16>
    %c2 = arith.constant 2 : index
    %c0_19 = arith.constant 0 : index
    %c0_20 = arith.constant 0 : index
    %16 = vector.load %arg2[%c2, %c0_19, %c0_20] : memref<4x64x32xbf16, #tpu.memory_space<vmem>>, vector<1x64x32xbf16>
    %17 = vector.shape_cast %16 : vector<1x64x32xbf16> to vector<64x32xbf16>
    %cst_21 = arith.constant dense<0.000000e+00> : vector<20x32xf32>
    %18 = tpu.matmul %15, %17, %cst_21 {dimension_numbers = #tpu.dot_dimension_numbers<[1], [0], [0], [1], [0, 0, 1, 1], [], []>} : vector<20x64xbf16>, vector<64x32xbf16>, vector<20x32xf32> -> vector<20x32xf32>
    %c0_22 = arith.constant 0 : index
    %c0_23 = arith.constant 0 : index
    %19 = vector.load %arg5[%c0_22, %c0_23] : memref<20x32xf32, #tpu.memory_space<vmem>>, vector<20x32xf32>
    %20 = arith.addf %19, %18 : vector<20x32xf32>
    %c0_24 = arith.constant 0 : index
    %c0_25 = arith.constant 0 : index
    %21 = vector.load %arg5[%c0_24, %c0_25] : memref<20x32xf32, #tpu.memory_space<vmem>>, vector<20x32xf32>
    tpu.vector_store %arg5[%c0_24, %c0_25], %20 {strides = array<i32>} : memref<20x32xf32, #tpu.memory_space<vmem>>, vector<20x32xf32>,
    %c0_26 = arith.constant 0 : index
    %c6 = arith.constant 6 : index
    %c0_27 = arith.constant 0 : index
    %22 = vector.load %arg1[%c0_26, %c6, %c0_27] : memref<1x32x64xbf16, #tpu.memory_space<vmem>>, vector<1x20x64xbf16>
    %23 = vector.shape_cast %22 : vector<1x20x64xbf16> to vector<20x64xbf16>
    %c3 = arith.constant 3 : index
    %c0_28 = arith.constant 0 : index
    %c0_29 = arith.constant 0 : index
    %24 = vector.load %arg2[%c3, %c0_28, %c0_29] : memref<4x64x32xbf16, #tpu.memory_space<vmem>>, vector<1x64x32xbf16>
    %25 = vector.shape_cast %24 : vector<1x64x32xbf16> to vector<64x32xbf16>
    %cst_30 = arith.constant dense<0.000000e+00> : vector<20x32xf32>
    %26 = tpu.matmul %23, %25, %cst_30 {dimension_numbers = #tpu.dot_dimension_numbers<[1], [0], [0], [1], [0, 0, 1, 1], [], []>} : vector<20x64xbf16>, vector<64x32xbf16>, vector<20x32xf32> -> vector<20x32xf32>
    %c0_31 = arith.constant 0 : index
    %c0_32 = arith.constant 0 : index
    %27 = vector.load %arg5[%c0_31, %c0_32] : memref<20x32xf32, #tpu.memory_space<vmem>>, vector<20x32xf32>
    %28 = arith.addf %27, %26 : vector<20x32xf32>
    %c0_33 = arith.constant 0 : index
    %c0_34 = arith.constant 0 : index
    %29 = vector.load %arg5[%c0_33, %c0_34] : memref<20x32xf32, #tpu.memory_space<vmem>>, vector<20x32xf32>
    tpu.vector_store %arg5[%c0_33, %c0_34], %28 {strides = array<i32>} : memref<20x32xf32, #tpu.memory_space<vmem>>, vector<20x32xf32>,
    %c0_35 = arith.constant 0 : index
    %c0_36 = arith.constant 0 : index
    %30 = vector.load %arg5[%c0_35, %c0_36] : memref<20x32xf32, #tpu.memory_space<vmem>>, vector<20x32xf32>
    %c0_37 = arith.constant 0 : index
    %c0_38 = arith.constant 0 : index
    %31 = vector.load %arg3[%c0_37, %c0_38] : memref<20x1xf32, #tpu.memory_space<vmem>>, vector<20x1xf32>
    %32 = vector.broadcast %31 : vector<20x1xf32> to vector<20x32xf32>
    %33 = arith.mulf %30, %32 : vector<20x32xf32>
    %cst_39 = arith.constant dense<0.000000e+00> : vector<32xf32>
    %34 = vector.multi_reduction <add>, %33, %cst_39 [0] : vector<20x32xf32> to vector<32xf32>
    %35 = vector.shape_cast %34 : vector<32xf32> to vector<1x32xf32>
    %36 = arith.mulf %33, %33 : vector<20x32xf32>
    %cst_40 = arith.constant dense<0.000000e+00> : vector<32xf32>
    %37 = vector.multi_reduction <add>, %36, %cst_40 [0] : vector<20x32xf32> to vector<32xf32>
    %38 = vector.shape_cast %37 : vector<32xf32> to vector<1x32xf32>
    %cst_41 = arith.constant 6.250000e-02 : f32
    %39 = vector.broadcast %cst_41 : f32 to vector<1x32xf32>
    %40 = arith.mulf %35, %39 : vector<1x32xf32>
    %cst_42 = arith.constant 6.250000e-02 : f32
    %41 = vector.broadcast %cst_42 : f32 to vector<1x32xf32>
    %42 = arith.mulf %38, %41 : vector<1x32xf32>
    %43 = arith.mulf %40, %40 : vector<1x32xf32>
    %44 = arith.subf %42, %43 : vector<1x32xf32>
    %cst_43 = arith.constant 0.000000e+00 : f32
    %45 = vector.broadcast %cst_43 : f32 to vector<1x32xf32>
    %46 = arith.maximumf %44, %45 : vector<1x32xf32>
    %47 = vector.broadcast %40 : vector<1x32xf32> to vector<20x32xf32>
    %48 = arith.subf %33, %47 : vector<20x32xf32>
    %cst_44 = arith.constant 9.99999974E-6 : f32
    %49 = vector.broadcast %cst_44 : f32 to vector<1x32xf32>
    %50 = arith.addf %46, %49 : vector<1x32xf32>
    %51 = math.rsqrt %50 : vector<1x32xf32>
    %52 = vector.broadcast %51 : vector<1x32xf32> to vector<20x32xf32>
    %53 = arith.mulf %48, %52 : vector<20x32xf32>
    %cst_45 = arith.constant 0.000000e+00 : f32
    %54 = vector.broadcast %cst_45 : f32 to vector<20x32xf32>
    %55 = arith.cmpf oge, %53, %54 : vector<20x32xf32>
    %cst_46 = arith.constant 2.000000e-01 : f32
    %56 = vector.broadcast %cst_46 : f32 to vector<20x32xf32>
    %57 = arith.mulf %56, %53 : vector<20x32xf32>
    %58 = arith.select %55, %53, %57 : vector<20x32xi1>, vector<20x32xf32>
    %59 = arith.truncf %58 : vector<20x32xf32> to vector<20x32xbf16>
    %c0_47 = arith.constant 0 : index
    %c0_48 = arith.constant 0 : index
    %c0_49 = arith.constant 0 : index
    %60 = vector.load %arg4[%c0_47, %c0_48, %c0_49] : memref<1x20x32xbf16, #tpu.memory_space<vmem>>, vector<1x20x32xbf16>
    %61 = vector.shape_cast %60 : vector<1x20x32xbf16> to vector<20x32xbf16>
    %62 = vector.shape_cast %59 : vector<20x32xbf16> to vector<1x20x32xbf16>
    tpu.vector_store %arg4[%c0_47, %c0_48, %c0_49], %62 {strides = array<i32>} : memref<1x20x32xbf16, #tpu.memory_space<vmem>>, vector<1x20x32xbf16>,
    return
  }
  func.func @transform_0(%arg0: i32) -> (i32, i32, i32) {
    %c0_i32 = arith.constant 0 : i32
    %c0_i32_0 = arith.constant 0 : i32
    %c0_i32_1 = arith.constant 0 : i32
    return %arg0, %c0_i32, %c0_i32_0 : i32, i32, i32
  }
  func.func @transform_1(%arg0: i32) -> (i32, i32, i32) {
    %c0_i32 = arith.constant 0 : i32
    %c0_i32_0 = arith.constant 0 : i32
    %c0_i32_1 = arith.constant 0 : i32
    %c0_i32_2 = arith.constant 0 : i32
    return %c0_i32, %c0_i32_0, %c0_i32_1 : i32, i32, i32
  }
  func.func @transform_2(%arg0: i32) -> (i32, i32) {
    %c0_i32 = arith.constant 0 : i32
    %c0_i32_0 = arith.constant 0 : i32
    %c0_i32_1 = arith.constant 0 : i32
    return %c0_i32, %c0_i32_0 : i32, i32
  }
  func.func @transform_3(%arg0: i32) -> (i32, i32, i32) {
    %c0_i32 = arith.constant 0 : i32
    %c0_i32_0 = arith.constant 0 : i32
    %c0_i32_1 = arith.constant 0 : i32
    return %arg0, %c0_i32, %c0_i32_0 : i32, i32, i32
  }
}

module attributes {stable_mosaic.version = 11 : i64} {
  func.func @_conv_kernel(%arg0: i32, %arg1: memref<1x40x32xbf16, #tpu.memory_space<vmem>>, %arg2: memref<16x32x64xbf16, #tpu.memory_space<vmem>>, %arg3: memref<18x1xf32, #tpu.memory_space<vmem>>, %arg4: memref<1x18x64xbf16, #tpu.memory_space<vmem>>, %arg5: memref<18x64xf32, #tpu.memory_space<vmem>>) attributes {dimension_semantics = [#tpu.dimension_semantics<parallel>], iteration_bounds = array<i64: 2>, scalar_prefetch = 0 : i64, scratch_operands = 1 : i64, tpu.core_type = #tpu.core_type<tc>, window_params = [{transform_indices = @transform_0, window_bounds = array<i64: 1, 40, 32>}, {pipeline_mode = #tpu.pipeline_mode<synchronous>, transform_indices = @transform_1, window_bounds = array<i64: 16, 32, 64>}, {pipeline_mode = #tpu.pipeline_mode<synchronous>, transform_indices = @transform_2, window_bounds = array<i64: 18, 1>}, {transform_indices = @transform_3, window_bounds = array<i64: 1, 18, 64>}]} {
    %c0 = arith.constant 0 : index
    %c0_0 = arith.constant 0 : index
    %c0_1 = arith.constant 0 : index
    %0 = vector.load %arg1[%c0, %c0_0, %c0_1] : memref<1x40x32xbf16, #tpu.memory_space<vmem>>, vector<1x18x32xbf16>
    %1 = vector.shape_cast %0 : vector<1x18x32xbf16> to vector<18x32xbf16>
    %c0_2 = arith.constant 0 : index
    %c0_3 = arith.constant 0 : index
    %c0_4 = arith.constant 0 : index
    %2 = vector.load %arg2[%c0_2, %c0_3, %c0_4] : memref<16x32x64xbf16, #tpu.memory_space<vmem>>, vector<1x32x64xbf16>
    %3 = vector.shape_cast %2 : vector<1x32x64xbf16> to vector<32x64xbf16>
    %cst = arith.constant dense<0.000000e+00> : vector<18x64xf32>
    %4 = tpu.matmul %1, %3, %cst {dimension_numbers = #tpu.dot_dimension_numbers<[1], [0], [0], [1], [0, 0, 1, 1], [], []>} : vector<18x32xbf16>, vector<32x64xbf16>, vector<18x64xf32> -> vector<18x64xf32>
    %c0_5 = arith.constant 0 : index
    %c0_6 = arith.constant 0 : index
    %5 = vector.load %arg5[%c0_5, %c0_6] : memref<18x64xf32, #tpu.memory_space<vmem>>, vector<18x64xf32>
    tpu.vector_store %arg5[%c0_5, %c0_6], %4 {strides = array<i32>} : memref<18x64xf32, #tpu.memory_space<vmem>>, vector<18x64xf32>,
    %c0_7 = arith.constant 0 : index
    %c1 = arith.constant 1 : index
    %c0_8 = arith.constant 0 : index
    %6 = vector.load %arg1[%c0_7, %c1, %c0_8] : memref<1x40x32xbf16, #tpu.memory_space<vmem>>, vector<1x18x32xbf16>
    %7 = vector.shape_cast %6 : vector<1x18x32xbf16> to vector<18x32xbf16>
    %c1_9 = arith.constant 1 : index
    %c0_10 = arith.constant 0 : index
    %c0_11 = arith.constant 0 : index
    %8 = vector.load %arg2[%c1_9, %c0_10, %c0_11] : memref<16x32x64xbf16, #tpu.memory_space<vmem>>, vector<1x32x64xbf16>
    %9 = vector.shape_cast %8 : vector<1x32x64xbf16> to vector<32x64xbf16>
    %cst_12 = arith.constant dense<0.000000e+00> : vector<18x64xf32>
    %10 = tpu.matmul %7, %9, %cst_12 {dimension_numbers = #tpu.dot_dimension_numbers<[1], [0], [0], [1], [0, 0, 1, 1], [], []>} : vector<18x32xbf16>, vector<32x64xbf16>, vector<18x64xf32> -> vector<18x64xf32>
    %c0_13 = arith.constant 0 : index
    %c0_14 = arith.constant 0 : index
    %11 = vector.load %arg5[%c0_13, %c0_14] : memref<18x64xf32, #tpu.memory_space<vmem>>, vector<18x64xf32>
    %12 = arith.addf %11, %10 : vector<18x64xf32>
    %c0_15 = arith.constant 0 : index
    %c0_16 = arith.constant 0 : index
    %13 = vector.load %arg5[%c0_15, %c0_16] : memref<18x64xf32, #tpu.memory_space<vmem>>, vector<18x64xf32>
    tpu.vector_store %arg5[%c0_15, %c0_16], %12 {strides = array<i32>} : memref<18x64xf32, #tpu.memory_space<vmem>>, vector<18x64xf32>,
    %c0_17 = arith.constant 0 : index
    %c2 = arith.constant 2 : index
    %c0_18 = arith.constant 0 : index
    %14 = vector.load %arg1[%c0_17, %c2, %c0_18] : memref<1x40x32xbf16, #tpu.memory_space<vmem>>, vector<1x18x32xbf16>
    %15 = vector.shape_cast %14 : vector<1x18x32xbf16> to vector<18x32xbf16>
    %c2_19 = arith.constant 2 : index
    %c0_20 = arith.constant 0 : index
    %c0_21 = arith.constant 0 : index
    %16 = vector.load %arg2[%c2_19, %c0_20, %c0_21] : memref<16x32x64xbf16, #tpu.memory_space<vmem>>, vector<1x32x64xbf16>
    %17 = vector.shape_cast %16 : vector<1x32x64xbf16> to vector<32x64xbf16>
    %cst_22 = arith.constant dense<0.000000e+00> : vector<18x64xf32>
    %18 = tpu.matmul %15, %17, %cst_22 {dimension_numbers = #tpu.dot_dimension_numbers<[1], [0], [0], [1], [0, 0, 1, 1], [], []>} : vector<18x32xbf16>, vector<32x64xbf16>, vector<18x64xf32> -> vector<18x64xf32>
    %c0_23 = arith.constant 0 : index
    %c0_24 = arith.constant 0 : index
    %19 = vector.load %arg5[%c0_23, %c0_24] : memref<18x64xf32, #tpu.memory_space<vmem>>, vector<18x64xf32>
    %20 = arith.addf %19, %18 : vector<18x64xf32>
    %c0_25 = arith.constant 0 : index
    %c0_26 = arith.constant 0 : index
    %21 = vector.load %arg5[%c0_25, %c0_26] : memref<18x64xf32, #tpu.memory_space<vmem>>, vector<18x64xf32>
    tpu.vector_store %arg5[%c0_25, %c0_26], %20 {strides = array<i32>} : memref<18x64xf32, #tpu.memory_space<vmem>>, vector<18x64xf32>,
    %c0_27 = arith.constant 0 : index
    %c3 = arith.constant 3 : index
    %c0_28 = arith.constant 0 : index
    %22 = vector.load %arg1[%c0_27, %c3, %c0_28] : memref<1x40x32xbf16, #tpu.memory_space<vmem>>, vector<1x18x32xbf16>
    %23 = vector.shape_cast %22 : vector<1x18x32xbf16> to vector<18x32xbf16>
    %c3_29 = arith.constant 3 : index
    %c0_30 = arith.constant 0 : index
    %c0_31 = arith.constant 0 : index
    %24 = vector.load %arg2[%c3_29, %c0_30, %c0_31] : memref<16x32x64xbf16, #tpu.memory_space<vmem>>, vector<1x32x64xbf16>
    %25 = vector.shape_cast %24 : vector<1x32x64xbf16> to vector<32x64xbf16>
    %cst_32 = arith.constant dense<0.000000e+00> : vector<18x64xf32>
    %26 = tpu.matmul %23, %25, %cst_32 {dimension_numbers = #tpu.dot_dimension_numbers<[1], [0], [0], [1], [0, 0, 1, 1], [], []>} : vector<18x32xbf16>, vector<32x64xbf16>, vector<18x64xf32> -> vector<18x64xf32>
    %c0_33 = arith.constant 0 : index
    %c0_34 = arith.constant 0 : index
    %27 = vector.load %arg5[%c0_33, %c0_34] : memref<18x64xf32, #tpu.memory_space<vmem>>, vector<18x64xf32>
    %28 = arith.addf %27, %26 : vector<18x64xf32>
    %c0_35 = arith.constant 0 : index
    %c0_36 = arith.constant 0 : index
    %29 = vector.load %arg5[%c0_35, %c0_36] : memref<18x64xf32, #tpu.memory_space<vmem>>, vector<18x64xf32>
    tpu.vector_store %arg5[%c0_35, %c0_36], %28 {strides = array<i32>} : memref<18x64xf32, #tpu.memory_space<vmem>>, vector<18x64xf32>,
    %c0_37 = arith.constant 0 : index
    %c6 = arith.constant 6 : index
    %c0_38 = arith.constant 0 : index
    %30 = vector.load %arg1[%c0_37, %c6, %c0_38] : memref<1x40x32xbf16, #tpu.memory_space<vmem>>, vector<1x18x32xbf16>
    %31 = vector.shape_cast %30 : vector<1x18x32xbf16> to vector<18x32xbf16>
    %c4 = arith.constant 4 : index
    %c0_39 = arith.constant 0 : index
    %c0_40 = arith.constant 0 : index
    %32 = vector.load %arg2[%c4, %c0_39, %c0_40] : memref<16x32x64xbf16, #tpu.memory_space<vmem>>, vector<1x32x64xbf16>
    %33 = vector.shape_cast %32 : vector<1x32x64xbf16> to vector<32x64xbf16>
    %cst_41 = arith.constant dense<0.000000e+00> : vector<18x64xf32>
    %34 = tpu.matmul %31, %33, %cst_41 {dimension_numbers = #tpu.dot_dimension_numbers<[1], [0], [0], [1], [0, 0, 1, 1], [], []>} : vector<18x32xbf16>, vector<32x64xbf16>, vector<18x64xf32> -> vector<18x64xf32>
    %c0_42 = arith.constant 0 : index
    %c0_43 = arith.constant 0 : index
    %35 = vector.load %arg5[%c0_42, %c0_43] : memref<18x64xf32, #tpu.memory_space<vmem>>, vector<18x64xf32>
    %36 = arith.addf %35, %34 : vector<18x64xf32>
    %c0_44 = arith.constant 0 : index
    %c0_45 = arith.constant 0 : index
    %37 = vector.load %arg5[%c0_44, %c0_45] : memref<18x64xf32, #tpu.memory_space<vmem>>, vector<18x64xf32>
    tpu.vector_store %arg5[%c0_44, %c0_45], %36 {strides = array<i32>} : memref<18x64xf32, #tpu.memory_space<vmem>>, vector<18x64xf32>,
    %c0_46 = arith.constant 0 : index
    %c7 = arith.constant 7 : index
    %c0_47 = arith.constant 0 : index
    %38 = vector.load %arg1[%c0_46, %c7, %c0_47] : memref<1x40x32xbf16, #tpu.memory_space<vmem>>, vector<1x18x32xbf16>
    %39 = vector.shape_cast %38 : vector<1x18x32xbf16> to vector<18x32xbf16>
    %c5 = arith.constant 5 : index
    %c0_48 = arith.constant 0 : index
    %c0_49 = arith.constant 0 : index
    %40 = vector.load %arg2[%c5, %c0_48, %c0_49] : memref<16x32x64xbf16, #tpu.memory_space<vmem>>, vector<1x32x64xbf16>
    %41 = vector.shape_cast %40 : vector<1x32x64xbf16> to vector<32x64xbf16>
    %cst_50 = arith.constant dense<0.000000e+00> : vector<18x64xf32>
    %42 = tpu.matmul %39, %41, %cst_50 {dimension_numbers = #tpu.dot_dimension_numbers<[1], [0], [0], [1], [0, 0, 1, 1], [], []>} : vector<18x32xbf16>, vector<32x64xbf16>, vector<18x64xf32> -> vector<18x64xf32>
    %c0_51 = arith.constant 0 : index
    %c0_52 = arith.constant 0 : index
    %43 = vector.load %arg5[%c0_51, %c0_52] : memref<18x64xf32, #tpu.memory_space<vmem>>, vector<18x64xf32>
    %44 = arith.addf %43, %42 : vector<18x64xf32>
    %c0_53 = arith.constant 0 : index
    %c0_54 = arith.constant 0 : index
    %45 = vector.load %arg5[%c0_53, %c0_54] : memref<18x64xf32, #tpu.memory_space<vmem>>, vector<18x64xf32>
    tpu.vector_store %arg5[%c0_53, %c0_54], %44 {strides = array<i32>} : memref<18x64xf32, #tpu.memory_space<vmem>>, vector<18x64xf32>,
    %c0_55 = arith.constant 0 : index
    %c8 = arith.constant 8 : index
    %c0_56 = arith.constant 0 : index
    %46 = vector.load %arg1[%c0_55, %c8, %c0_56] : memref<1x40x32xbf16, #tpu.memory_space<vmem>>, vector<1x18x32xbf16>
    %47 = vector.shape_cast %46 : vector<1x18x32xbf16> to vector<18x32xbf16>
    %c6_57 = arith.constant 6 : index
    %c0_58 = arith.constant 0 : index
    %c0_59 = arith.constant 0 : index
    %48 = vector.load %arg2[%c6_57, %c0_58, %c0_59] : memref<16x32x64xbf16, #tpu.memory_space<vmem>>, vector<1x32x64xbf16>
    %49 = vector.shape_cast %48 : vector<1x32x64xbf16> to vector<32x64xbf16>
    %cst_60 = arith.constant dense<0.000000e+00> : vector<18x64xf32>
    %50 = tpu.matmul %47, %49, %cst_60 {dimension_numbers = #tpu.dot_dimension_numbers<[1], [0], [0], [1], [0, 0, 1, 1], [], []>} : vector<18x32xbf16>, vector<32x64xbf16>, vector<18x64xf32> -> vector<18x64xf32>
    %c0_61 = arith.constant 0 : index
    %c0_62 = arith.constant 0 : index
    %51 = vector.load %arg5[%c0_61, %c0_62] : memref<18x64xf32, #tpu.memory_space<vmem>>, vector<18x64xf32>
    %52 = arith.addf %51, %50 : vector<18x64xf32>
    %c0_63 = arith.constant 0 : index
    %c0_64 = arith.constant 0 : index
    %53 = vector.load %arg5[%c0_63, %c0_64] : memref<18x64xf32, #tpu.memory_space<vmem>>, vector<18x64xf32>
    tpu.vector_store %arg5[%c0_63, %c0_64], %52 {strides = array<i32>} : memref<18x64xf32, #tpu.memory_space<vmem>>, vector<18x64xf32>,
    %c0_65 = arith.constant 0 : index
    %c9 = arith.constant 9 : index
    %c0_66 = arith.constant 0 : index
    %54 = vector.load %arg1[%c0_65, %c9, %c0_66] : memref<1x40x32xbf16, #tpu.memory_space<vmem>>, vector<1x18x32xbf16>
    %55 = vector.shape_cast %54 : vector<1x18x32xbf16> to vector<18x32xbf16>
    %c7_67 = arith.constant 7 : index
    %c0_68 = arith.constant 0 : index
    %c0_69 = arith.constant 0 : index
    %56 = vector.load %arg2[%c7_67, %c0_68, %c0_69] : memref<16x32x64xbf16, #tpu.memory_space<vmem>>, vector<1x32x64xbf16>
    %57 = vector.shape_cast %56 : vector<1x32x64xbf16> to vector<32x64xbf16>
    %cst_70 = arith.constant dense<0.000000e+00> : vector<18x64xf32>
    %58 = tpu.matmul %55, %57, %cst_70 {dimension_numbers = #tpu.dot_dimension_numbers<[1], [0], [0], [1], [0, 0, 1, 1], [], []>} : vector<18x32xbf16>, vector<32x64xbf16>, vector<18x64xf32> -> vector<18x64xf32>
    %c0_71 = arith.constant 0 : index
    %c0_72 = arith.constant 0 : index
    %59 = vector.load %arg5[%c0_71, %c0_72] : memref<18x64xf32, #tpu.memory_space<vmem>>, vector<18x64xf32>
    %60 = arith.addf %59, %58 : vector<18x64xf32>
    %c0_73 = arith.constant 0 : index
    %c0_74 = arith.constant 0 : index
    %61 = vector.load %arg5[%c0_73, %c0_74] : memref<18x64xf32, #tpu.memory_space<vmem>>, vector<18x64xf32>
    tpu.vector_store %arg5[%c0_73, %c0_74], %60 {strides = array<i32>} : memref<18x64xf32, #tpu.memory_space<vmem>>, vector<18x64xf32>,
    %c0_75 = arith.constant 0 : index
    %c12 = arith.constant 12 : index
    %c0_76 = arith.constant 0 : index
    %62 = vector.load %arg1[%c0_75, %c12, %c0_76] : memref<1x40x32xbf16, #tpu.memory_space<vmem>>, vector<1x18x32xbf16>
    %63 = vector.shape_cast %62 : vector<1x18x32xbf16> to vector<18x32xbf16>
    %c8_77 = arith.constant 8 : index
    %c0_78 = arith.constant 0 : index
    %c0_79 = arith.constant 0 : index
    %64 = vector.load %arg2[%c8_77, %c0_78, %c0_79] : memref<16x32x64xbf16, #tpu.memory_space<vmem>>, vector<1x32x64xbf16>
    %65 = vector.shape_cast %64 : vector<1x32x64xbf16> to vector<32x64xbf16>
    %cst_80 = arith.constant dense<0.000000e+00> : vector<18x64xf32>
    %66 = tpu.matmul %63, %65, %cst_80 {dimension_numbers = #tpu.dot_dimension_numbers<[1], [0], [0], [1], [0, 0, 1, 1], [], []>} : vector<18x32xbf16>, vector<32x64xbf16>, vector<18x64xf32> -> vector<18x64xf32>
    %c0_81 = arith.constant 0 : index
    %c0_82 = arith.constant 0 : index
    %67 = vector.load %arg5[%c0_81, %c0_82] : memref<18x64xf32, #tpu.memory_space<vmem>>, vector<18x64xf32>
    %68 = arith.addf %67, %66 : vector<18x64xf32>
    %c0_83 = arith.constant 0 : index
    %c0_84 = arith.constant 0 : index
    %69 = vector.load %arg5[%c0_83, %c0_84] : memref<18x64xf32, #tpu.memory_space<vmem>>, vector<18x64xf32>
    tpu.vector_store %arg5[%c0_83, %c0_84], %68 {strides = array<i32>} : memref<18x64xf32, #tpu.memory_space<vmem>>, vector<18x64xf32>,
    %c0_85 = arith.constant 0 : index
    %c13 = arith.constant 13 : index
    %c0_86 = arith.constant 0 : index
    %70 = vector.load %arg1[%c0_85, %c13, %c0_86] : memref<1x40x32xbf16, #tpu.memory_space<vmem>>, vector<1x18x32xbf16>
    %71 = vector.shape_cast %70 : vector<1x18x32xbf16> to vector<18x32xbf16>
    %c9_87 = arith.constant 9 : index
    %c0_88 = arith.constant 0 : index
    %c0_89 = arith.constant 0 : index
    %72 = vector.load %arg2[%c9_87, %c0_88, %c0_89] : memref<16x32x64xbf16, #tpu.memory_space<vmem>>, vector<1x32x64xbf16>
    %73 = vector.shape_cast %72 : vector<1x32x64xbf16> to vector<32x64xbf16>
    %cst_90 = arith.constant dense<0.000000e+00> : vector<18x64xf32>
    %74 = tpu.matmul %71, %73, %cst_90 {dimension_numbers = #tpu.dot_dimension_numbers<[1], [0], [0], [1], [0, 0, 1, 1], [], []>} : vector<18x32xbf16>, vector<32x64xbf16>, vector<18x64xf32> -> vector<18x64xf32>
    %c0_91 = arith.constant 0 : index
    %c0_92 = arith.constant 0 : index
    %75 = vector.load %arg5[%c0_91, %c0_92] : memref<18x64xf32, #tpu.memory_space<vmem>>, vector<18x64xf32>
    %76 = arith.addf %75, %74 : vector<18x64xf32>
    %c0_93 = arith.constant 0 : index
    %c0_94 = arith.constant 0 : index
    %77 = vector.load %arg5[%c0_93, %c0_94] : memref<18x64xf32, #tpu.memory_space<vmem>>, vector<18x64xf32>
    tpu.vector_store %arg5[%c0_93, %c0_94], %76 {strides = array<i32>} : memref<18x64xf32, #tpu.memory_space<vmem>>, vector<18x64xf32>,
    %c0_95 = arith.constant 0 : index
    %c14 = arith.constant 14 : index
    %c0_96 = arith.constant 0 : index
    %78 = vector.load %arg1[%c0_95, %c14, %c0_96] : memref<1x40x32xbf16, #tpu.memory_space<vmem>>, vector<1x18x32xbf16>
    %79 = vector.shape_cast %78 : vector<1x18x32xbf16> to vector<18x32xbf16>
    %c10 = arith.constant 10 : index
    %c0_97 = arith.constant 0 : index
    %c0_98 = arith.constant 0 : index
    %80 = vector.load %arg2[%c10, %c0_97, %c0_98] : memref<16x32x64xbf16, #tpu.memory_space<vmem>>, vector<1x32x64xbf16>
    %81 = vector.shape_cast %80 : vector<1x32x64xbf16> to vector<32x64xbf16>
    %cst_99 = arith.constant dense<0.000000e+00> : vector<18x64xf32>
    %82 = tpu.matmul %79, %81, %cst_99 {dimension_numbers = #tpu.dot_dimension_numbers<[1], [0], [0], [1], [0, 0, 1, 1], [], []>} : vector<18x32xbf16>, vector<32x64xbf16>, vector<18x64xf32> -> vector<18x64xf32>
    %c0_100 = arith.constant 0 : index
    %c0_101 = arith.constant 0 : index
    %83 = vector.load %arg5[%c0_100, %c0_101] : memref<18x64xf32, #tpu.memory_space<vmem>>, vector<18x64xf32>
    %84 = arith.addf %83, %82 : vector<18x64xf32>
    %c0_102 = arith.constant 0 : index
    %c0_103 = arith.constant 0 : index
    %85 = vector.load %arg5[%c0_102, %c0_103] : memref<18x64xf32, #tpu.memory_space<vmem>>, vector<18x64xf32>
    tpu.vector_store %arg5[%c0_102, %c0_103], %84 {strides = array<i32>} : memref<18x64xf32, #tpu.memory_space<vmem>>, vector<18x64xf32>,
    %c0_104 = arith.constant 0 : index
    %c15 = arith.constant 15 : index
    %c0_105 = arith.constant 0 : index
    %86 = vector.load %arg1[%c0_104, %c15, %c0_105] : memref<1x40x32xbf16, #tpu.memory_space<vmem>>, vector<1x18x32xbf16>
    %87 = vector.shape_cast %86 : vector<1x18x32xbf16> to vector<18x32xbf16>
    %c11 = arith.constant 11 : index
    %c0_106 = arith.constant 0 : index
    %c0_107 = arith.constant 0 : index
    %88 = vector.load %arg2[%c11, %c0_106, %c0_107] : memref<16x32x64xbf16, #tpu.memory_space<vmem>>, vector<1x32x64xbf16>
    %89 = vector.shape_cast %88 : vector<1x32x64xbf16> to vector<32x64xbf16>
    %cst_108 = arith.constant dense<0.000000e+00> : vector<18x64xf32>
    %90 = tpu.matmul %87, %89, %cst_108 {dimension_numbers = #tpu.dot_dimension_numbers<[1], [0], [0], [1], [0, 0, 1, 1], [], []>} : vector<18x32xbf16>, vector<32x64xbf16>, vector<18x64xf32> -> vector<18x64xf32>
    %c0_109 = arith.constant 0 : index
    %c0_110 = arith.constant 0 : index
    %91 = vector.load %arg5[%c0_109, %c0_110] : memref<18x64xf32, #tpu.memory_space<vmem>>, vector<18x64xf32>
    %92 = arith.addf %91, %90 : vector<18x64xf32>
    %c0_111 = arith.constant 0 : index
    %c0_112 = arith.constant 0 : index
    %93 = vector.load %arg5[%c0_111, %c0_112] : memref<18x64xf32, #tpu.memory_space<vmem>>, vector<18x64xf32>
    tpu.vector_store %arg5[%c0_111, %c0_112], %92 {strides = array<i32>} : memref<18x64xf32, #tpu.memory_space<vmem>>, vector<18x64xf32>,
    %c0_113 = arith.constant 0 : index
    %c18 = arith.constant 18 : index
    %c0_114 = arith.constant 0 : index
    %94 = vector.load %arg1[%c0_113, %c18, %c0_114] : memref<1x40x32xbf16, #tpu.memory_space<vmem>>, vector<1x18x32xbf16>
    %95 = vector.shape_cast %94 : vector<1x18x32xbf16> to vector<18x32xbf16>
    %c12_115 = arith.constant 12 : index
    %c0_116 = arith.constant 0 : index
    %c0_117 = arith.constant 0 : index
    %96 = vector.load %arg2[%c12_115, %c0_116, %c0_117] : memref<16x32x64xbf16, #tpu.memory_space<vmem>>, vector<1x32x64xbf16>
    %97 = vector.shape_cast %96 : vector<1x32x64xbf16> to vector<32x64xbf16>
    %cst_118 = arith.constant dense<0.000000e+00> : vector<18x64xf32>
    %98 = tpu.matmul %95, %97, %cst_118 {dimension_numbers = #tpu.dot_dimension_numbers<[1], [0], [0], [1], [0, 0, 1, 1], [], []>} : vector<18x32xbf16>, vector<32x64xbf16>, vector<18x64xf32> -> vector<18x64xf32>
    %c0_119 = arith.constant 0 : index
    %c0_120 = arith.constant 0 : index
    %99 = vector.load %arg5[%c0_119, %c0_120] : memref<18x64xf32, #tpu.memory_space<vmem>>, vector<18x64xf32>
    %100 = arith.addf %99, %98 : vector<18x64xf32>
    %c0_121 = arith.constant 0 : index
    %c0_122 = arith.constant 0 : index
    %101 = vector.load %arg5[%c0_121, %c0_122] : memref<18x64xf32, #tpu.memory_space<vmem>>, vector<18x64xf32>
    tpu.vector_store %arg5[%c0_121, %c0_122], %100 {strides = array<i32>} : memref<18x64xf32, #tpu.memory_space<vmem>>, vector<18x64xf32>,
    %c0_123 = arith.constant 0 : index
    %c19 = arith.constant 19 : index
    %c0_124 = arith.constant 0 : index
    %102 = vector.load %arg1[%c0_123, %c19, %c0_124] : memref<1x40x32xbf16, #tpu.memory_space<vmem>>, vector<1x18x32xbf16>
    %103 = vector.shape_cast %102 : vector<1x18x32xbf16> to vector<18x32xbf16>
    %c13_125 = arith.constant 13 : index
    %c0_126 = arith.constant 0 : index
    %c0_127 = arith.constant 0 : index
    %104 = vector.load %arg2[%c13_125, %c0_126, %c0_127] : memref<16x32x64xbf16, #tpu.memory_space<vmem>>, vector<1x32x64xbf16>
    %105 = vector.shape_cast %104 : vector<1x32x64xbf16> to vector<32x64xbf16>
    %cst_128 = arith.constant dense<0.000000e+00> : vector<18x64xf32>
    %106 = tpu.matmul %103, %105, %cst_128 {dimension_numbers = #tpu.dot_dimension_numbers<[1], [0], [0], [1], [0, 0, 1, 1], [], []>} : vector<18x32xbf16>, vector<32x64xbf16>, vector<18x64xf32> -> vector<18x64xf32>
    %c0_129 = arith.constant 0 : index
    %c0_130 = arith.constant 0 : index
    %107 = vector.load %arg5[%c0_129, %c0_130] : memref<18x64xf32, #tpu.memory_space<vmem>>, vector<18x64xf32>
    %108 = arith.addf %107, %106 : vector<18x64xf32>
    %c0_131 = arith.constant 0 : index
    %c0_132 = arith.constant 0 : index
    %109 = vector.load %arg5[%c0_131, %c0_132] : memref<18x64xf32, #tpu.memory_space<vmem>>, vector<18x64xf32>
    tpu.vector_store %arg5[%c0_131, %c0_132], %108 {strides = array<i32>} : memref<18x64xf32, #tpu.memory_space<vmem>>, vector<18x64xf32>,
    %c0_133 = arith.constant 0 : index
    %c20 = arith.constant 20 : index
    %c0_134 = arith.constant 0 : index
    %110 = vector.load %arg1[%c0_133, %c20, %c0_134] : memref<1x40x32xbf16, #tpu.memory_space<vmem>>, vector<1x18x32xbf16>
    %111 = vector.shape_cast %110 : vector<1x18x32xbf16> to vector<18x32xbf16>
    %c14_135 = arith.constant 14 : index
    %c0_136 = arith.constant 0 : index
    %c0_137 = arith.constant 0 : index
    %112 = vector.load %arg2[%c14_135, %c0_136, %c0_137] : memref<16x32x64xbf16, #tpu.memory_space<vmem>>, vector<1x32x64xbf16>
    %113 = vector.shape_cast %112 : vector<1x32x64xbf16> to vector<32x64xbf16>
    %cst_138 = arith.constant dense<0.000000e+00> : vector<18x64xf32>
    %114 = tpu.matmul %111, %113, %cst_138 {dimension_numbers = #tpu.dot_dimension_numbers<[1], [0], [0], [1], [0, 0, 1, 1], [], []>} : vector<18x32xbf16>, vector<32x64xbf16>, vector<18x64xf32> -> vector<18x64xf32>
    %c0_139 = arith.constant 0 : index
    %c0_140 = arith.constant 0 : index
    %115 = vector.load %arg5[%c0_139, %c0_140] : memref<18x64xf32, #tpu.memory_space<vmem>>, vector<18x64xf32>
    %116 = arith.addf %115, %114 : vector<18x64xf32>
    %c0_141 = arith.constant 0 : index
    %c0_142 = arith.constant 0 : index
    %117 = vector.load %arg5[%c0_141, %c0_142] : memref<18x64xf32, #tpu.memory_space<vmem>>, vector<18x64xf32>
    tpu.vector_store %arg5[%c0_141, %c0_142], %116 {strides = array<i32>} : memref<18x64xf32, #tpu.memory_space<vmem>>, vector<18x64xf32>,
    %c0_143 = arith.constant 0 : index
    %c21 = arith.constant 21 : index
    %c0_144 = arith.constant 0 : index
    %118 = vector.load %arg1[%c0_143, %c21, %c0_144] : memref<1x40x32xbf16, #tpu.memory_space<vmem>>, vector<1x18x32xbf16>
    %119 = vector.shape_cast %118 : vector<1x18x32xbf16> to vector<18x32xbf16>
    %c15_145 = arith.constant 15 : index
    %c0_146 = arith.constant 0 : index
    %c0_147 = arith.constant 0 : index
    %120 = vector.load %arg2[%c15_145, %c0_146, %c0_147] : memref<16x32x64xbf16, #tpu.memory_space<vmem>>, vector<1x32x64xbf16>
    %121 = vector.shape_cast %120 : vector<1x32x64xbf16> to vector<32x64xbf16>
    %cst_148 = arith.constant dense<0.000000e+00> : vector<18x64xf32>
    %122 = tpu.matmul %119, %121, %cst_148 {dimension_numbers = #tpu.dot_dimension_numbers<[1], [0], [0], [1], [0, 0, 1, 1], [], []>} : vector<18x32xbf16>, vector<32x64xbf16>, vector<18x64xf32> -> vector<18x64xf32>
    %c0_149 = arith.constant 0 : index
    %c0_150 = arith.constant 0 : index
    %123 = vector.load %arg5[%c0_149, %c0_150] : memref<18x64xf32, #tpu.memory_space<vmem>>, vector<18x64xf32>
    %124 = arith.addf %123, %122 : vector<18x64xf32>
    %c0_151 = arith.constant 0 : index
    %c0_152 = arith.constant 0 : index
    %125 = vector.load %arg5[%c0_151, %c0_152] : memref<18x64xf32, #tpu.memory_space<vmem>>, vector<18x64xf32>
    tpu.vector_store %arg5[%c0_151, %c0_152], %124 {strides = array<i32>} : memref<18x64xf32, #tpu.memory_space<vmem>>, vector<18x64xf32>,
    %c0_153 = arith.constant 0 : index
    %c0_154 = arith.constant 0 : index
    %126 = vector.load %arg5[%c0_153, %c0_154] : memref<18x64xf32, #tpu.memory_space<vmem>>, vector<18x64xf32>
    %c0_155 = arith.constant 0 : index
    %c0_156 = arith.constant 0 : index
    %127 = vector.load %arg3[%c0_155, %c0_156] : memref<18x1xf32, #tpu.memory_space<vmem>>, vector<18x1xf32>
    %128 = vector.broadcast %127 : vector<18x1xf32> to vector<18x64xf32>
    %129 = arith.mulf %126, %128 : vector<18x64xf32>
    %cst_157 = arith.constant dense<0.000000e+00> : vector<64xf32>
    %130 = vector.multi_reduction <add>, %129, %cst_157 [0] : vector<18x64xf32> to vector<64xf32>
    %131 = vector.shape_cast %130 : vector<64xf32> to vector<1x64xf32>
    %132 = arith.mulf %129, %129 : vector<18x64xf32>
    %cst_158 = arith.constant dense<0.000000e+00> : vector<64xf32>
    %133 = vector.multi_reduction <add>, %132, %cst_158 [0] : vector<18x64xf32> to vector<64xf32>
    %134 = vector.shape_cast %133 : vector<64xf32> to vector<1x64xf32>
    %cst_159 = arith.constant 0.111111112 : f32
    %135 = vector.broadcast %cst_159 : f32 to vector<1x64xf32>
    %136 = arith.mulf %131, %135 : vector<1x64xf32>
    %cst_160 = arith.constant 0.111111112 : f32
    %137 = vector.broadcast %cst_160 : f32 to vector<1x64xf32>
    %138 = arith.mulf %134, %137 : vector<1x64xf32>
    %139 = arith.mulf %136, %136 : vector<1x64xf32>
    %140 = arith.subf %138, %139 : vector<1x64xf32>
    %cst_161 = arith.constant 0.000000e+00 : f32
    %141 = vector.broadcast %cst_161 : f32 to vector<1x64xf32>
    %142 = arith.maximumf %140, %141 : vector<1x64xf32>
    %143 = vector.broadcast %136 : vector<1x64xf32> to vector<18x64xf32>
    %144 = arith.subf %129, %143 : vector<18x64xf32>
    %cst_162 = arith.constant 9.99999974E-6 : f32
    %145 = vector.broadcast %cst_162 : f32 to vector<1x64xf32>
    %146 = arith.addf %142, %145 : vector<1x64xf32>
    %147 = math.rsqrt %146 : vector<1x64xf32>
    %148 = vector.broadcast %147 : vector<1x64xf32> to vector<18x64xf32>
    %149 = arith.mulf %144, %148 : vector<18x64xf32>
    %cst_163 = arith.constant 0.000000e+00 : f32
    %150 = vector.broadcast %cst_163 : f32 to vector<18x64xf32>
    %151 = arith.cmpf oge, %149, %150 : vector<18x64xf32>
    %cst_164 = arith.constant 2.000000e-01 : f32
    %152 = vector.broadcast %cst_164 : f32 to vector<18x64xf32>
    %153 = arith.mulf %152, %149 : vector<18x64xf32>
    %154 = arith.select %151, %149, %153 : vector<18x64xi1>, vector<18x64xf32>
    %155 = arith.truncf %154 : vector<18x64xf32> to vector<18x64xbf16>
    %c0_165 = arith.constant 0 : index
    %c0_166 = arith.constant 0 : index
    %c0_167 = arith.constant 0 : index
    %156 = vector.load %arg4[%c0_165, %c0_166, %c0_167] : memref<1x18x64xbf16, #tpu.memory_space<vmem>>, vector<1x18x64xbf16>
    %157 = vector.shape_cast %156 : vector<1x18x64xbf16> to vector<18x64xbf16>
    %158 = vector.shape_cast %155 : vector<18x64xbf16> to vector<1x18x64xbf16>
    tpu.vector_store %arg4[%c0_165, %c0_166, %c0_167], %158 {strides = array<i32>} : memref<1x18x64xbf16, #tpu.memory_space<vmem>>, vector<1x18x64xbf16>,
    return
  }
  func.func @transform_0(%arg0: i32) -> (i32, i32, i32) {
    %c0_i32 = arith.constant 0 : i32
    %c0_i32_0 = arith.constant 0 : i32
    %c0_i32_1 = arith.constant 0 : i32
    return %arg0, %c0_i32, %c0_i32_0 : i32, i32, i32
  }
  func.func @transform_1(%arg0: i32) -> (i32, i32, i32) {
    %c0_i32 = arith.constant 0 : i32
    %c0_i32_0 = arith.constant 0 : i32
    %c0_i32_1 = arith.constant 0 : i32
    %c0_i32_2 = arith.constant 0 : i32
    return %c0_i32, %c0_i32_0, %c0_i32_1 : i32, i32, i32
  }
  func.func @transform_2(%arg0: i32) -> (i32, i32) {
    %c0_i32 = arith.constant 0 : i32
    %c0_i32_0 = arith.constant 0 : i32
    %c0_i32_1 = arith.constant 0 : i32
    return %c0_i32, %c0_i32_0 : i32, i32
  }
  func.func @transform_3(%arg0: i32) -> (i32, i32, i32) {
    %c0_i32 = arith.constant 0 : i32
    %c0_i32_0 = arith.constant 0 : i32
    %c0_i32_1 = arith.constant 0 : i32
    return %arg0, %c0_i32, %c0_i32_0 : i32, i32, i32
  }
}

module attributes {stable_mosaic.version = 11 : i64} {
  func.func @_head_kernel(%arg0: i32, %arg1: memref<1x32x64xbf16, #tpu.memory_space<vmem>>, %arg2: memref<16x1x64xbf16, #tpu.memory_space<vmem>>, %arg3: memref<1x1xf32, #tpu.memory_space<vmem>>, %arg4: memref<1x1x10xf32, #tpu.memory_space<vmem>>) attributes {dimension_semantics = [#tpu.dimension_semantics<parallel>], iteration_bounds = array<i64: 2>, scalar_prefetch = 0 : i64, scratch_operands = 0 : i64, tpu.core_type = #tpu.core_type<tc>, window_params = [{transform_indices = @transform_0, window_bounds = array<i64: 1, 32, 64>}, {pipeline_mode = #tpu.pipeline_mode<synchronous>, transform_indices = @transform_1, window_bounds = array<i64: 16, 1, 64>}, {pipeline_mode = #tpu.pipeline_mode<synchronous>, transform_indices = @transform_2, window_bounds = array<i64: 1, 1>}, {transform_indices = @transform_3, window_bounds = array<i64: 1, 1, 10>}]} {
    %cst = arith.constant 0.000000e+00 : f32
    %0 = vector.broadcast %cst : f32 to vector<1x10xf32>
    %c0 = arith.constant 0 : index
    %c0_0 = arith.constant 0 : index
    %c0_1 = arith.constant 0 : index
    %1 = vector.load %arg1[%c0, %c0_0, %c0_1] : memref<1x32x64xbf16, #tpu.memory_space<vmem>>, vector<1x10x64xbf16>
    %2 = vector.shape_cast %1 : vector<1x10x64xbf16> to vector<10x64xbf16>
    %c0_2 = arith.constant 0 : index
    %c0_3 = arith.constant 0 : index
    %c0_4 = arith.constant 0 : index
    %3 = vector.load %arg2[%c0_2, %c0_3, %c0_4] : memref<16x1x64xbf16, #tpu.memory_space<vmem>>, vector<1x1x64xbf16>
    %4 = vector.shape_cast %3 : vector<1x1x64xbf16> to vector<1x64xbf16>
    %cst_5 = arith.constant dense<0.000000e+00> : vector<1x10xf32>
    %5 = tpu.matmul %4, %2, %cst_5 {dimension_numbers = #tpu.dot_dimension_numbers<[1], [1], [0], [0], [0, 0, 1, 0], [], []>} : vector<1x64xbf16>, vector<10x64xbf16>, vector<1x10xf32> -> vector<1x10xf32>
    %6 = arith.addf %0, %5 : vector<1x10xf32>
    %c0_6 = arith.constant 0 : index
    %c1 = arith.constant 1 : index
    %c0_7 = arith.constant 0 : index
    %7 = vector.load %arg1[%c0_6, %c1, %c0_7] : memref<1x32x64xbf16, #tpu.memory_space<vmem>>, vector<1x10x64xbf16>
    %8 = vector.shape_cast %7 : vector<1x10x64xbf16> to vector<10x64xbf16>
    %c1_8 = arith.constant 1 : index
    %c0_9 = arith.constant 0 : index
    %c0_10 = arith.constant 0 : index
    %9 = vector.load %arg2[%c1_8, %c0_9, %c0_10] : memref<16x1x64xbf16, #tpu.memory_space<vmem>>, vector<1x1x64xbf16>
    %10 = vector.shape_cast %9 : vector<1x1x64xbf16> to vector<1x64xbf16>
    %cst_11 = arith.constant dense<0.000000e+00> : vector<1x10xf32>
    %11 = tpu.matmul %10, %8, %cst_11 {dimension_numbers = #tpu.dot_dimension_numbers<[1], [1], [0], [0], [0, 0, 1, 0], [], []>} : vector<1x64xbf16>, vector<10x64xbf16>, vector<1x10xf32> -> vector<1x10xf32>
    %12 = arith.addf %6, %11 : vector<1x10xf32>
    %c0_12 = arith.constant 0 : index
    %c2 = arith.constant 2 : index
    %c0_13 = arith.constant 0 : index
    %13 = vector.load %arg1[%c0_12, %c2, %c0_13] : memref<1x32x64xbf16, #tpu.memory_space<vmem>>, vector<1x10x64xbf16>
    %14 = vector.shape_cast %13 : vector<1x10x64xbf16> to vector<10x64xbf16>
    %c2_14 = arith.constant 2 : index
    %c0_15 = arith.constant 0 : index
    %c0_16 = arith.constant 0 : index
    %15 = vector.load %arg2[%c2_14, %c0_15, %c0_16] : memref<16x1x64xbf16, #tpu.memory_space<vmem>>, vector<1x1x64xbf16>
    %16 = vector.shape_cast %15 : vector<1x1x64xbf16> to vector<1x64xbf16>
    %cst_17 = arith.constant dense<0.000000e+00> : vector<1x10xf32>
    %17 = tpu.matmul %16, %14, %cst_17 {dimension_numbers = #tpu.dot_dimension_numbers<[1], [1], [0], [0], [0, 0, 1, 0], [], []>} : vector<1x64xbf16>, vector<10x64xbf16>, vector<1x10xf32> -> vector<1x10xf32>
    %18 = arith.addf %12, %17 : vector<1x10xf32>
    %c0_18 = arith.constant 0 : index
    %c3 = arith.constant 3 : index
    %c0_19 = arith.constant 0 : index
    %19 = vector.load %arg1[%c0_18, %c3, %c0_19] : memref<1x32x64xbf16, #tpu.memory_space<vmem>>, vector<1x10x64xbf16>
    %20 = vector.shape_cast %19 : vector<1x10x64xbf16> to vector<10x64xbf16>
    %c3_20 = arith.constant 3 : index
    %c0_21 = arith.constant 0 : index
    %c0_22 = arith.constant 0 : index
    %21 = vector.load %arg2[%c3_20, %c0_21, %c0_22] : memref<16x1x64xbf16, #tpu.memory_space<vmem>>, vector<1x1x64xbf16>
    %22 = vector.shape_cast %21 : vector<1x1x64xbf16> to vector<1x64xbf16>
    %cst_23 = arith.constant dense<0.000000e+00> : vector<1x10xf32>
    %23 = tpu.matmul %22, %20, %cst_23 {dimension_numbers = #tpu.dot_dimension_numbers<[1], [1], [0], [0], [0, 0, 1, 0], [], []>} : vector<1x64xbf16>, vector<10x64xbf16>, vector<1x10xf32> -> vector<1x10xf32>
    %24 = arith.addf %18, %23 : vector<1x10xf32>
    %c0_24 = arith.constant 0 : index
    %c5 = arith.constant 5 : index
    %c0_25 = arith.constant 0 : index
    %25 = vector.load %arg1[%c0_24, %c5, %c0_25] : memref<1x32x64xbf16, #tpu.memory_space<vmem>>, vector<1x10x64xbf16>
    %26 = vector.shape_cast %25 : vector<1x10x64xbf16> to vector<10x64xbf16>
    %c4 = arith.constant 4 : index
    %c0_26 = arith.constant 0 : index
    %c0_27 = arith.constant 0 : index
    %27 = vector.load %arg2[%c4, %c0_26, %c0_27] : memref<16x1x64xbf16, #tpu.memory_space<vmem>>, vector<1x1x64xbf16>
    %28 = vector.shape_cast %27 : vector<1x1x64xbf16> to vector<1x64xbf16>
    %cst_28 = arith.constant dense<0.000000e+00> : vector<1x10xf32>
    %29 = tpu.matmul %28, %26, %cst_28 {dimension_numbers = #tpu.dot_dimension_numbers<[1], [1], [0], [0], [0, 0, 1, 0], [], []>} : vector<1x64xbf16>, vector<10x64xbf16>, vector<1x10xf32> -> vector<1x10xf32>
    %30 = arith.addf %24, %29 : vector<1x10xf32>
    %c0_29 = arith.constant 0 : index
    %c6 = arith.constant 6 : index
    %c0_30 = arith.constant 0 : index
    %31 = vector.load %arg1[%c0_29, %c6, %c0_30] : memref<1x32x64xbf16, #tpu.memory_space<vmem>>, vector<1x10x64xbf16>
    %32 = vector.shape_cast %31 : vector<1x10x64xbf16> to vector<10x64xbf16>
    %c5_31 = arith.constant 5 : index
    %c0_32 = arith.constant 0 : index
    %c0_33 = arith.constant 0 : index
    %33 = vector.load %arg2[%c5_31, %c0_32, %c0_33] : memref<16x1x64xbf16, #tpu.memory_space<vmem>>, vector<1x1x64xbf16>
    %34 = vector.shape_cast %33 : vector<1x1x64xbf16> to vector<1x64xbf16>
    %cst_34 = arith.constant dense<0.000000e+00> : vector<1x10xf32>
    %35 = tpu.matmul %34, %32, %cst_34 {dimension_numbers = #tpu.dot_dimension_numbers<[1], [1], [0], [0], [0, 0, 1, 0], [], []>} : vector<1x64xbf16>, vector<10x64xbf16>, vector<1x10xf32> -> vector<1x10xf32>
    %36 = arith.addf %30, %35 : vector<1x10xf32>
    %c0_35 = arith.constant 0 : index
    %c7 = arith.constant 7 : index
    %c0_36 = arith.constant 0 : index
    %37 = vector.load %arg1[%c0_35, %c7, %c0_36] : memref<1x32x64xbf16, #tpu.memory_space<vmem>>, vector<1x10x64xbf16>
    %38 = vector.shape_cast %37 : vector<1x10x64xbf16> to vector<10x64xbf16>
    %c6_37 = arith.constant 6 : index
    %c0_38 = arith.constant 0 : index
    %c0_39 = arith.constant 0 : index
    %39 = vector.load %arg2[%c6_37, %c0_38, %c0_39] : memref<16x1x64xbf16, #tpu.memory_space<vmem>>, vector<1x1x64xbf16>
    %40 = vector.shape_cast %39 : vector<1x1x64xbf16> to vector<1x64xbf16>
    %cst_40 = arith.constant dense<0.000000e+00> : vector<1x10xf32>
    %41 = tpu.matmul %40, %38, %cst_40 {dimension_numbers = #tpu.dot_dimension_numbers<[1], [1], [0], [0], [0, 0, 1, 0], [], []>} : vector<1x64xbf16>, vector<10x64xbf16>, vector<1x10xf32> -> vector<1x10xf32>
    %42 = arith.addf %36, %41 : vector<1x10xf32>
    %c0_41 = arith.constant 0 : index
    %c8 = arith.constant 8 : index
    %c0_42 = arith.constant 0 : index
    %43 = vector.load %arg1[%c0_41, %c8, %c0_42] : memref<1x32x64xbf16, #tpu.memory_space<vmem>>, vector<1x10x64xbf16>
    %44 = vector.shape_cast %43 : vector<1x10x64xbf16> to vector<10x64xbf16>
    %c7_43 = arith.constant 7 : index
    %c0_44 = arith.constant 0 : index
    %c0_45 = arith.constant 0 : index
    %45 = vector.load %arg2[%c7_43, %c0_44, %c0_45] : memref<16x1x64xbf16, #tpu.memory_space<vmem>>, vector<1x1x64xbf16>
    %46 = vector.shape_cast %45 : vector<1x1x64xbf16> to vector<1x64xbf16>
    %cst_46 = arith.constant dense<0.000000e+00> : vector<1x10xf32>
    %47 = tpu.matmul %46, %44, %cst_46 {dimension_numbers = #tpu.dot_dimension_numbers<[1], [1], [0], [0], [0, 0, 1, 0], [], []>} : vector<1x64xbf16>, vector<10x64xbf16>, vector<1x10xf32> -> vector<1x10xf32>
    %48 = arith.addf %42, %47 : vector<1x10xf32>
    %c0_47 = arith.constant 0 : index
    %c10 = arith.constant 10 : index
    %c0_48 = arith.constant 0 : index
    %49 = vector.load %arg1[%c0_47, %c10, %c0_48] : memref<1x32x64xbf16, #tpu.memory_space<vmem>>, vector<1x10x64xbf16>
    %50 = vector.shape_cast %49 : vector<1x10x64xbf16> to vector<10x64xbf16>
    %c8_49 = arith.constant 8 : index
    %c0_50 = arith.constant 0 : index
    %c0_51 = arith.constant 0 : index
    %51 = vector.load %arg2[%c8_49, %c0_50, %c0_51] : memref<16x1x64xbf16, #tpu.memory_space<vmem>>, vector<1x1x64xbf16>
    %52 = vector.shape_cast %51 : vector<1x1x64xbf16> to vector<1x64xbf16>
    %cst_52 = arith.constant dense<0.000000e+00> : vector<1x10xf32>
    %53 = tpu.matmul %52, %50, %cst_52 {dimension_numbers = #tpu.dot_dimension_numbers<[1], [1], [0], [0], [0, 0, 1, 0], [], []>} : vector<1x64xbf16>, vector<10x64xbf16>, vector<1x10xf32> -> vector<1x10xf32>
    %54 = arith.addf %48, %53 : vector<1x10xf32>
    %c0_53 = arith.constant 0 : index
    %c11 = arith.constant 11 : index
    %c0_54 = arith.constant 0 : index
    %55 = vector.load %arg1[%c0_53, %c11, %c0_54] : memref<1x32x64xbf16, #tpu.memory_space<vmem>>, vector<1x10x64xbf16>
    %56 = vector.shape_cast %55 : vector<1x10x64xbf16> to vector<10x64xbf16>
    %c9 = arith.constant 9 : index
    %c0_55 = arith.constant 0 : index
    %c0_56 = arith.constant 0 : index
    %57 = vector.load %arg2[%c9, %c0_55, %c0_56] : memref<16x1x64xbf16, #tpu.memory_space<vmem>>, vector<1x1x64xbf16>
    %58 = vector.shape_cast %57 : vector<1x1x64xbf16> to vector<1x64xbf16>
    %cst_57 = arith.constant dense<0.000000e+00> : vector<1x10xf32>
    %59 = tpu.matmul %58, %56, %cst_57 {dimension_numbers = #tpu.dot_dimension_numbers<[1], [1], [0], [0], [0, 0, 1, 0], [], []>} : vector<1x64xbf16>, vector<10x64xbf16>, vector<1x10xf32> -> vector<1x10xf32>
    %60 = arith.addf %54, %59 : vector<1x10xf32>
    %c0_58 = arith.constant 0 : index
    %c12 = arith.constant 12 : index
    %c0_59 = arith.constant 0 : index
    %61 = vector.load %arg1[%c0_58, %c12, %c0_59] : memref<1x32x64xbf16, #tpu.memory_space<vmem>>, vector<1x10x64xbf16>
    %62 = vector.shape_cast %61 : vector<1x10x64xbf16> to vector<10x64xbf16>
    %c10_60 = arith.constant 10 : index
    %c0_61 = arith.constant 0 : index
    %c0_62 = arith.constant 0 : index
    %63 = vector.load %arg2[%c10_60, %c0_61, %c0_62] : memref<16x1x64xbf16, #tpu.memory_space<vmem>>, vector<1x1x64xbf16>
    %64 = vector.shape_cast %63 : vector<1x1x64xbf16> to vector<1x64xbf16>
    %cst_63 = arith.constant dense<0.000000e+00> : vector<1x10xf32>
    %65 = tpu.matmul %64, %62, %cst_63 {dimension_numbers = #tpu.dot_dimension_numbers<[1], [1], [0], [0], [0, 0, 1, 0], [], []>} : vector<1x64xbf16>, vector<10x64xbf16>, vector<1x10xf32> -> vector<1x10xf32>
    %66 = arith.addf %60, %65 : vector<1x10xf32>
    %c0_64 = arith.constant 0 : index
    %c13 = arith.constant 13 : index
    %c0_65 = arith.constant 0 : index
    %67 = vector.load %arg1[%c0_64, %c13, %c0_65] : memref<1x32x64xbf16, #tpu.memory_space<vmem>>, vector<1x10x64xbf16>
    %68 = vector.shape_cast %67 : vector<1x10x64xbf16> to vector<10x64xbf16>
    %c11_66 = arith.constant 11 : index
    %c0_67 = arith.constant 0 : index
    %c0_68 = arith.constant 0 : index
    %69 = vector.load %arg2[%c11_66, %c0_67, %c0_68] : memref<16x1x64xbf16, #tpu.memory_space<vmem>>, vector<1x1x64xbf16>
    %70 = vector.shape_cast %69 : vector<1x1x64xbf16> to vector<1x64xbf16>
    %cst_69 = arith.constant dense<0.000000e+00> : vector<1x10xf32>
    %71 = tpu.matmul %70, %68, %cst_69 {dimension_numbers = #tpu.dot_dimension_numbers<[1], [1], [0], [0], [0, 0, 1, 0], [], []>} : vector<1x64xbf16>, vector<10x64xbf16>, vector<1x10xf32> -> vector<1x10xf32>
    %72 = arith.addf %66, %71 : vector<1x10xf32>
    %c0_70 = arith.constant 0 : index
    %c15 = arith.constant 15 : index
    %c0_71 = arith.constant 0 : index
    %73 = vector.load %arg1[%c0_70, %c15, %c0_71] : memref<1x32x64xbf16, #tpu.memory_space<vmem>>, vector<1x10x64xbf16>
    %74 = vector.shape_cast %73 : vector<1x10x64xbf16> to vector<10x64xbf16>
    %c12_72 = arith.constant 12 : index
    %c0_73 = arith.constant 0 : index
    %c0_74 = arith.constant 0 : index
    %75 = vector.load %arg2[%c12_72, %c0_73, %c0_74] : memref<16x1x64xbf16, #tpu.memory_space<vmem>>, vector<1x1x64xbf16>
    %76 = vector.shape_cast %75 : vector<1x1x64xbf16> to vector<1x64xbf16>
    %cst_75 = arith.constant dense<0.000000e+00> : vector<1x10xf32>
    %77 = tpu.matmul %76, %74, %cst_75 {dimension_numbers = #tpu.dot_dimension_numbers<[1], [1], [0], [0], [0, 0, 1, 0], [], []>} : vector<1x64xbf16>, vector<10x64xbf16>, vector<1x10xf32> -> vector<1x10xf32>
    %78 = arith.addf %72, %77 : vector<1x10xf32>
    %c0_76 = arith.constant 0 : index
    %c16 = arith.constant 16 : index
    %c0_77 = arith.constant 0 : index
    %79 = vector.load %arg1[%c0_76, %c16, %c0_77] : memref<1x32x64xbf16, #tpu.memory_space<vmem>>, vector<1x10x64xbf16>
    %80 = vector.shape_cast %79 : vector<1x10x64xbf16> to vector<10x64xbf16>
    %c13_78 = arith.constant 13 : index
    %c0_79 = arith.constant 0 : index
    %c0_80 = arith.constant 0 : index
    %81 = vector.load %arg2[%c13_78, %c0_79, %c0_80] : memref<16x1x64xbf16, #tpu.memory_space<vmem>>, vector<1x1x64xbf16>
    %82 = vector.shape_cast %81 : vector<1x1x64xbf16> to vector<1x64xbf16>
    %cst_81 = arith.constant dense<0.000000e+00> : vector<1x10xf32>
    %83 = tpu.matmul %82, %80, %cst_81 {dimension_numbers = #tpu.dot_dimension_numbers<[1], [1], [0], [0], [0, 0, 1, 0], [], []>} : vector<1x64xbf16>, vector<10x64xbf16>, vector<1x10xf32> -> vector<1x10xf32>
    %84 = arith.addf %78, %83 : vector<1x10xf32>
    %c0_82 = arith.constant 0 : index
    %c17 = arith.constant 17 : index
    %c0_83 = arith.constant 0 : index
    %85 = vector.load %arg1[%c0_82, %c17, %c0_83] : memref<1x32x64xbf16, #tpu.memory_space<vmem>>, vector<1x10x64xbf16>
    %86 = vector.shape_cast %85 : vector<1x10x64xbf16> to vector<10x64xbf16>
    %c14 = arith.constant 14 : index
    %c0_84 = arith.constant 0 : index
    %c0_85 = arith.constant 0 : index
    %87 = vector.load %arg2[%c14, %c0_84, %c0_85] : memref<16x1x64xbf16, #tpu.memory_space<vmem>>, vector<1x1x64xbf16>
    %88 = vector.shape_cast %87 : vector<1x1x64xbf16> to vector<1x64xbf16>
    %cst_86 = arith.constant dense<0.000000e+00> : vector<1x10xf32>
    %89 = tpu.matmul %88, %86, %cst_86 {dimension_numbers = #tpu.dot_dimension_numbers<[1], [1], [0], [0], [0, 0, 1, 0], [], []>} : vector<1x64xbf16>, vector<10x64xbf16>, vector<1x10xf32> -> vector<1x10xf32>
    %90 = arith.addf %84, %89 : vector<1x10xf32>
    %c0_87 = arith.constant 0 : index
    %c18 = arith.constant 18 : index
    %c0_88 = arith.constant 0 : index
    %91 = vector.load %arg1[%c0_87, %c18, %c0_88] : memref<1x32x64xbf16, #tpu.memory_space<vmem>>, vector<1x10x64xbf16>
    %92 = vector.shape_cast %91 : vector<1x10x64xbf16> to vector<10x64xbf16>
    %c15_89 = arith.constant 15 : index
    %c0_90 = arith.constant 0 : index
    %c0_91 = arith.constant 0 : index
    %93 = vector.load %arg2[%c15_89, %c0_90, %c0_91] : memref<16x1x64xbf16, #tpu.memory_space<vmem>>, vector<1x1x64xbf16>
    %94 = vector.shape_cast %93 : vector<1x1x64xbf16> to vector<1x64xbf16>
    %cst_92 = arith.constant dense<0.000000e+00> : vector<1x10xf32>
    %95 = tpu.matmul %94, %92, %cst_92 {dimension_numbers = #tpu.dot_dimension_numbers<[1], [1], [0], [0], [0, 0, 1, 0], [], []>} : vector<1x64xbf16>, vector<10x64xbf16>, vector<1x10xf32> -> vector<1x10xf32>
    %96 = arith.addf %90, %95 : vector<1x10xf32>
    %c0_93 = arith.constant 0 : index
    %c0_94 = arith.constant 0 : index
    %97 = vector.load %arg3[%c0_93, %c0_94] : memref<1x1xf32, #tpu.memory_space<vmem>>, vector<1x1xf32>
    %98 = vector.broadcast %97 : vector<1x1xf32> to vector<1x10xf32>
    %99 = arith.addf %96, %98 : vector<1x10xf32>
    %cst_95 = arith.constant 0.000000e+00 : f32
    %100 = vector.broadcast %cst_95 : f32 to vector<1x10xf32>
    %101 = arith.subf %100, %99 : vector<1x10xf32>
    %102 = math.exp %101 : vector<1x10xf32>
    %cst_96 = arith.constant 1.000000e+00 : f32
    %103 = vector.broadcast %cst_96 : f32 to vector<1x10xf32>
    %104 = arith.addf %103, %102 : vector<1x10xf32>
    %cst_97 = arith.constant 1.000000e+00 : f32
    %105 = vector.broadcast %cst_97 : f32 to vector<1x10xf32>
    %106 = arith.divf %105, %104 : vector<1x10xf32>
    %c0_98 = arith.constant 0 : index
    %c0_99 = arith.constant 0 : index
    %c0_100 = arith.constant 0 : index
    %107 = vector.load %arg4[%c0_98, %c0_99, %c0_100] : memref<1x1x10xf32, #tpu.memory_space<vmem>>, vector<1x1x10xf32>
    %108 = vector.shape_cast %107 : vector<1x1x10xf32> to vector<1x10xf32>
    %109 = vector.shape_cast %106 : vector<1x10xf32> to vector<1x1x10xf32>
    tpu.vector_store %arg4[%c0_98, %c0_99, %c0_100], %109 {strides = array<i32>} : memref<1x1x10xf32, #tpu.memory_space<vmem>>, vector<1x1x10xf32>,
    return
  }
  func.func @transform_0(%arg0: i32) -> (i32, i32, i32) {
    %c0_i32 = arith.constant 0 : i32
    %c0_i32_0 = arith.constant 0 : i32
    %c0_i32_1 = arith.constant 0 : i32
    return %arg0, %c0_i32, %c0_i32_0 : i32, i32, i32
  }
  func.func @transform_1(%arg0: i32) -> (i32, i32, i32) {
    %c0_i32 = arith.constant 0 : i32
    %c0_i32_0 = arith.constant 0 : i32
    %c0_i32_1 = arith.constant 0 : i32
    %c0_i32_2 = arith.constant 0 : i32
    return %c0_i32, %c0_i32_0, %c0_i32_1 : i32, i32, i32
  }
  func.func @transform_2(%arg0: i32) -> (i32, i32) {
    %c0_i32 = arith.constant 0 : i32
    %c0_i32_0 = arith.constant 0 : i32
    %c0_i32_1 = arith.constant 0 : i32
    return %c0_i32, %c0_i32_0 : i32, i32
  }
  func.func @transform_3(%arg0: i32) -> (i32, i32, i32) {
    %c0_i32 = arith.constant 0 : i32
    %c0_i32_0 = arith.constant 0 : i32
    %c0_i32_1 = arith.constant 0 : i32
    return %arg0, %c0_i32, %c0_i32_0 : i32, i32, i32
  }
}

</mosaic_0001>

<llo_original>
// kernel: _lambda_.5
$region0: #{_lambda_.5}
  #allocation0 [shape = 'u32[]', space=smem, size = 0x4, offset = 0x4, fixed_abs, tag = 'smem constant byte address 0x4 - core index']
  #allocation1 [shape = 'u32[72,128]{1,0:T(1,128)}', space=vmem, size = 0x9000, scoped, tag = 'internal scratch']
  #allocation2 [shape = 'f32[256,8]{1,0:T(8,128)}', space=vmem, size = 0x20000, scoped, tag = 'scratch operand']
  %s0 = inlined_call_operand.vmem [shape: bf16[2,256,48], index: 0, kind: input, shape index: {}]
  %s1 = inlined_call_operand.vmem [shape: bf16[1,48,8], index: 1, kind: input, shape index: {}]
  %s2 = inlined_call_operand.vmem [shape: f32[256,1], index: 2, kind: input, shape index: {}]
  %s3 = inlined_call_operand.vmem [shape: bf16[2,256,8], index: 3, kind: output, shape index: {}]
  %s4 = sld [smem:[#allocation0]]
  $region45: #{_lambda_.5} parent=0
    _
  %s6 = ssub.s32 1, %s4
  %s7 = scalar_select 0, %s6, %s4
  loop: start=0, step=1, limit=4
  $region2: #{_lambda_.5} parent=0 // loop_pre_header
    _
  $region3: #{_lambda_.5} parent=0 // loop_header
    %s9 = sphi 0, %s13
    %p10 = scmp.ge.s32.totalorder %s9, 4
    %s19 = sphi 0, %s21
    %s22 = sphi 0, %s19
    %s23 = sphi 0, %s22
    %s39 = sphi 0, %s23
    %s43 = sphi 0, %s43
    %s45 = sphi 0, %s43
    %s46 = sphi 0, %s45
    %s60 = sphi 0, %s46
    %s64 = sphi 0, %s64
    %s66 = sphi 0, %s64
    %s67 = sphi 0, %s66
    %s81 = sphi 0, %s67
    %s87 = sphi 0, %s89
    %s90 = sphi 0, %s87
    %s91 = sphi 0, %s90
    %s107 = sphi 0, %s91
  $region4: #{_lambda_.5} parent=0 // loop_header_branch
    %12 = sbr.rel (%p10) target = $region8
  $region5: #{_lambda_.5} parent=0 // loop_body
    %s14 = ssub.s32 %s9, 1
    %s15 = ssub.s32 %s9, 2
    %s16 = sadd.s32 %s9, 1
    %s17 = ssub.s32 %s9, %s16
    %p18 = scmp.eq.s32.totalorder %s17, 0
    %s20 = sadd.s32 %s19, 1
    %s21 = scalar_select %p18, %s19, %s20
    %p24 = pneg %p18
    %p25 = scmp.eq.s32.totalorder %s9, 1
    %p26 = por %p24, %p25
    %p27 = scmp.ne.s32.totalorder %s19, %s22
    %p28 = scmp.eq.s32.totalorder %s9, 0
    %p29 = por %p27, %p28
    %p30 = scmp.ne.s32.totalorder %s19, %s22
    %p31 = scmp.eq.s32.totalorder %s14, 1
    %p32 = por %p30, %p31
    %p33 = scmp.ne.s32.totalorder %s22, %s23
    %p34 = scmp.eq.s32.totalorder %s14, 0
    %p35 = por %p33, %p34
    %p36 = scmp.ne.s32.totalorder %s22, %s23
    %p37 = scmp.eq.s32.totalorder %s15, 1
    %p38 = por %p36, %p37
    %p40 = scmp.ne.s32.totalorder %s23, %s39
    %p41 = scmp.eq.s32.totalorder %s15, 0
    %p42 = por %p40, %p41
    %s44 = sadd.s32 %s43, 1
    %p47 = scmp.eq.s32.totalorder %s9, 1
    %p48 = scmp.ne.s32.totalorder %s43, %s45
    %p49 = scmp.eq.s32.totalorder %s9, 0
    %p50 = por %p48, %p49
    %p51 = scmp.ne.s32.totalorder %s43, %s45
    %p52 = scmp.eq.s32.totalorder %s14, 1
    %p53 = por %p51, %p52
    %p54 = scmp.ne.s32.totalorder %s45, %s46
    %p55 = scmp.eq.s32.totalorder %s14, 0
    %p56 = por %p54, %p55
    %p57 = scmp.ne.s32.totalorder %s45, %s46
    %p58 = scmp.eq.s32.totalorder %s15, 1
    %p59 = por %p57, %p58
    %p61 = scmp.ne.s32.totalorder %s46, %s60
    %p62 = scmp.eq.s32.totalorder %s15, 0
    %p63 = por %p61, %p62
    %s65 = sadd.s32 %s64, 1
    %p68 = scmp.eq.s32.totalorder %s9, 1
    %p69 = scmp.ne.s32.totalorder %s64, %s66
    %p70 = scmp.eq.s32.totalorder %s9, 0
    %p71 = por %p69, %p70
    %p72 = scmp.ne.s32.totalorder %s64, %s66
    %p73 = scmp.eq.s32.totalorder %s14, 1
    %p74 = por %p72, %p73
    %p75 = scmp.ne.s32.totalorder %s66, %s67
    %p76 = scmp.eq.s32.totalorder %s14, 0
    %p77 = por %p75, %p76
    %p78 = scmp.ne.s32.totalorder %s66, %s67
    %p79 = scmp.eq.s32.totalorder %s15, 1
    %p80 = por %p78, %p79
    %p82 = scmp.ne.s32.totalorder %s67, %s81
    %p83 = scmp.eq.s32.totalorder %s15, 0
    %p84 = por %p82, %p83
    %s85 = ssub.s32 %s9, %s16
    %p86 = scmp.eq.s32.totalorder %s85, 0
    %s88 = sadd.s32 %s87, 1
    %s89 = scalar_select %p86, %s87, %s88
    %p92 = pneg %p86
    %p93 = scmp.eq.s32.totalorder %s9, 1
    %p94 = por %p92, %p93
    %p95 = scmp.ne.s32.totalorder %s87, %s90
    %p96 = scmp.eq.s32.totalorder %s9, 0
    %p97 = por %p95, %p96
    %p98 = scmp.ne.s32.totalorder %s87, %s90
    %p99 = scmp.eq.s32.totalorder %s14, 1
    %p100 = por %p98, %p99
    %p101 = scmp.ne.s32.totalorder %s90, %s91
    %p102 = scmp.eq.s32.totalorder %s14, 0
    %p103 = por %p101, %p102
    %p104 = scmp.ne.s32.totalorder %s90, %s91
    %p105 = scmp.eq.s32.totalorder %s15, 1
    %p106 = por %p104, %p105
    %p108 = scmp.ne.s32.totalorder %s91, %s107
    %p109 = scmp.eq.s32.totalorder %s15, 0
    %p110 = por %p108, %p109
    %p111 = scmp.le.s32.totalorder 1, %s9
    %p112 = scmp.lt.s32.totalorder %s9, 3
    %p113 = pnand %p111, %p112
    %p114 = pneg %p113
    // Predicated region
    $region9: #{_lambda_.5} parent=5 // pred_check
      _
    $region10: #{_lambda_.5} parent=5 // pred_check_branch
      %116 = sbr.rel (%p113) target = $region12
    $region11: #{_lambda_.5} parent=5 // pred_region
      %s117 = ssub.s32 %s9, 1
      // Predicated region
      $region13: #{_lambda_.5} parent=11 // pred_check
        %p118 = pneg %p56
      $region14: #{_lambda_.5} parent=11 // pred_check_branch
        %120 = sbr.rel (%p118) target = $region16
      $region15: #{_lambda_.5} parent=11 // pred_region
        _
      $region16: #{_lambda_.5} parent=11 // pred_fallthru
        _
      // Predicated region
      $region17: #{_lambda_.5} parent=11 // pred_check
        %p121 = pneg %p77
      $region18: #{_lambda_.5} parent=11 // pred_check_branch
        %123 = sbr.rel (%p121) target = $region20
      $region19: #{_lambda_.5} parent=11 // pred_region
        _
      $region20: #{_lambda_.5} parent=11 // pred_fallthru
        _
    $region12: #{_lambda_.5} parent=5 // pred_fallthru
      _
    %p124 = scmp.lt.s32.totalorder %s9, 2
    // Predicated region
    $region21: #{_lambda_.5} parent=5 // pred_check
      %p125 = pneg %p124
    $region22: #{_lambda_.5} parent=5 // pred_check_branch
      %127 = sbr.rel (%p125) target = $region24
    $region23: #{_lambda_.5} parent=5 // pred_region
      // Predicated region
      $region25: #{_lambda_.5} parent=23 // pred_check
        %p128 = pneg %p29
      $region26: #{_lambda_.5} parent=23 // pred_check_branch
        %130 = sbr.rel (%p128) target = $region28
      $region27: #{_lambda_.5} parent=23 // pred_region
        %p131 = scmp.lt.s32.totalorder %s9, 1
        %s132 = scalar_select %p131, %s9, 1
        %s133 = smul.addr %s132, 32
        %s134 = smul.addr %s133, 4
        %s135 = scalar_lea.vmem %s0, %s134
      $region28: #{_lambda_.5} parent=23 // pred_fallthru
        _
    $region24: #{_lambda_.5} parent=5 // pred_fallthru
      _
    %p136 = scmp.le.s32.totalorder 1, %s9
    %p137 = scmp.lt.s32.totalorder %s9, 3
    %p138 = pnand %p136, %p137
    %p139 = pneg %p138
    // Predicated region
    $region29: #{_lambda_.5} parent=5 // pred_check
      _
    $region30: #{_lambda_.5} parent=5 // pred_check_branch
      %141 = sbr.rel (%p138) target = $region32
    $region31: #{_lambda_.5} parent=5 // pred_region
      %s142 = ssub.s32 %s9, 1
      %p143 = scmp.lt.s32.totalorder %s14, 1
      %s144 = scalar_select %p143, %s14, 1
      %s145 = smul.addr %s144, 32
      %s146 = smul.addr %s145, 4
      %s147 = scalar_lea.vmem %s0, %s146
      %p148 = pneg %p35
      %p149 = pneg %p32
      %p150 = pneg %p56
      %p151 = pneg %p53
      %p152 = pneg %p77
      %p153 = pneg %p74
      %p154 = pneg %p103
      %p155 = pneg %p100
      %p156 = scmp.lt.s32.totalorder %s14, 1
      %s157 = scalar_select %p156, %s14, 1
      %s158 = smul.addr %s157, 32
      %s159 = smul.addr %s158, 4
      %s160 = scalar_lea.vmem %s3, %s159
      %p161 = scmp.lt.s32.totalorder %s14, 1
      %s162 = scalar_select %p161, %s14, 1
      %s163 = smul.addr %s162, 32
      %s164 = smul.addr %s163, 4
      %s165 = scalar_lea.vmem %s0, %s164
      %p166 = scmp.lt.s32.totalorder %s14, 1
      %s167 = scalar_select %p166, %s14, 1
      %s168 = smul.addr %s167, 32
      %s169 = smul.addr %s168, 4
      %s170 = scalar_lea.vmem %s3, %s169
      %v172 = vld [vmem:[%s165] sm:$0xf]
      %v173 = vld [vmem:[%s165 + $0x4] sm:$0xf]
      %v174 = vld [vmem:[%s165 + $0x8] sm:$0xf]
      %v175 = vld [vmem:[%s165 + $0xc] sm:$0xf]
      %v176 = vld [vmem:[%s165 + $0x10] sm:$0xf]
      %v177 = vld [vmem:[%s165 + $0x14] sm:$0xf]
      %v178 = vld [vmem:[%s165 + $0x18] sm:$0xf]
      %v179 = vld [vmem:[%s165 + $0x1c] sm:$0xf]
      %v180 = vld [vmem:[%s165 + $0x20] sm:$0xf]
      %v181 = vld [vmem:[%s165 + $0x24] sm:$0xf]
      %v182 = vld [vmem:[%s165 + $0x28] sm:$0xf]
      %v183 = vld [vmem:[%s165 + $0x2c] sm:$0xf]
      %v184 = vld [vmem:[%s165 + $0x30] sm:$0xf]
      %v185 = vld [vmem:[%s165 + $0x34] sm:$0xf]
      %v186 = vld [vmem:[%s165 + $0x38] sm:$0xf]
      %v187 = vld [vmem:[%s165 + $0x3c] sm:$0xf]
      %v188 = vld [vmem:[%s165 + $0x40] sm:$0xf]
      %v189 = vld [vmem:[%s165 + $0x44] sm:$0xf]
      %v190 = vld [vmem:[%s165 + $0x48] sm:$0xf]
      %v191 = vld [vmem:[%s165 + $0x4c] sm:$0xf]
      %v192 = vld [vmem:[%s165 + $0x50] sm:$0xf]
      %v193 = vld [vmem:[%s165 + $0x54] sm:$0xf]
      %v194 = vld [vmem:[%s165 + $0x58] sm:$0xf]
      %v195 = vld [vmem:[%s165 + $0x5c] sm:$0xf]
      %v196 = vld [vmem:[%s165 + $0x60] sm:$0xf]
      %v197 = vld [vmem:[%s165 + $0x64] sm:$0xf]
      %v198 = vld [vmem:[%s165 + $0x68] sm:$0xf]
      %v199 = vld [vmem:[%s165 + $0x6c] sm:$0xf]
      %v200 = vld [vmem:[%s165 + $0x70] sm:$0xf]
      %v201 = vld [vmem:[%s165 + $0x74] sm:$0xf]
      %v202 = vld [vmem:[%s165 + $0x78] sm:$0xf]
      %v203 = vld [vmem:[%s165 + $0x7c] sm:$0xf]
      %v204 = vld [vmem:[%s1] sm:$0xf]
      %v205 = vld [vmem:[%s1 + $0x4] sm:$0xf]
      %v206 = vld [vmem:[%s1 + $0x8] sm:$0xf]
      %v207 = vld [vmem:[%s1 + $0xc] sm:$0xf]
      %v208 = vld [vmem:[%s1 + $0x10] sm:$0xf]
      %v209 = vld [vmem:[%s1 + $0x14] sm:$0xf]
      %v242 = vunpack.c.l.b16 %v172
      %v243 = vunpack.c.l.b16 %v173
      %v244 = vunpack.c.l.b16 %v174
      %v245 = vunpack.c.l.b16 %v175
      %v246 = vunpack.c.l.b16 %v176
      %v247 = vunpack.c.l.b16 %v177
      %v248 = vunpack.c.l.b16 %v178
      %v249 = vunpack.c.l.b16 %v179
      %v250 = vunpack.c.l.b16 %v180
      %v251 = vunpack.c.l.b16 %v181
      %v252 = vunpack.c.l.b16 %v182
      %v253 = vunpack.c.l.b16 %v183
      %v254 = vunpack.c.l.b16 %v184
      %v255 = vunpack.c.l.b16 %v185
      %v256 = vunpack.c.l.b16 %v186
      %v257 = vunpack.c.l.b16 %v187
      %v258 = vunpack.c.l.b16 %v188
      %v259 = vunpack.c.l.b16 %v189
      %v260 = vunpack.c.l.b16 %v190
      %v261 = vunpack.c.l.b16 %v191
      %v262 = vunpack.c.l.b16 %v192
      %v263 = vunpack.c.l.b16 %v193
      %v264 = vunpack.c.l.b16 %v194
      %v265 = vunpack.c.l.b16 %v195
      %v266 = vunpack.c.l.b16 %v196
      %v267 = vunpack.c.l.b16 %v197
      %v268 = vunpack.c.l.b16 %v198
      %v269 = vunpack.c.l.b16 %v199
      %v270 = vunpack.c.l.b16 %v200
      %v271 = vunpack.c.l.b16 %v201
      %v272 = vunpack.c.l.b16 %v202
      %v273 = vunpack.c.l.b16 %v203
      %v274 = vpack.c.b16 %v243, %v242
      %v275 = vpack.c.b16 %v245, %v244
      %v276 = vpack.c.b16 %v247, %v246
      %v277 = vpack.c.b16 %v249, %v248
      %v278 = vpack.c.b16 %v251, %v250
      %v279 = vpack.c.b16 %v253, %v252
      %v280 = vpack.c.b16 %v255, %v254
      %v281 = vpack.c.b16 %v257, %v256
      %v282 = vpack.c.b16 %v259, %v258
      %v283 = vpack.c.b16 %v261, %v260
      %v284 = vpack.c.b16 %v263, %v262
      %v285 = vpack.c.b16 %v265, %v264
      %v286 = vpack.c.b16 %v267, %v266
      %v287 = vpack.c.b16 %v269, %v268
      %v288 = vpack.c.b16 %v271, %v270
      %v289 = vpack.c.b16 %v273, %v272
      %v296 = vunpack.c.l.b16 %v204
      %v297 = vunpack.c.l.b16 %v205
      %v298 = vunpack.c.l.b16 %v206
      %v299 = vunpack.c.l.b16 %v207
      %v300 = vunpack.c.l.b16 %v208
      %v301 = vunpack.c.l.b16 %v209
      %v302 = vpack.c.b16 %v297, %v296
      %v303 = vpack.c.b16 %v299, %v298
      %v304 = vpack.c.b16 %v301, %v300
      %vm308 = vcmask 392192
      %v310 = vsel %vm308, %v274, 0
      %v313 = vsel %vm308, %v275, 0
      %v316 = vsel %vm308, %v276, 0
      %v319 = vsel %vm308, %v277, 0
      %v322 = vsel %vm308, %v278, 0
      %v325 = vsel %vm308, %v279, 0
      %v328 = vsel %vm308, %v280, 0
      %v331 = vsel %vm308, %v281, 0
      %v334 = vsel %vm308, %v282, 0
      %v337 = vsel %vm308, %v283, 0
      %v340 = vsel %vm308, %v284, 0
      %v343 = vsel %vm308, %v285, 0
      %v346 = vsel %vm308, %v286, 0
      %v349 = vsel %vm308, %v287, 0
      %v352 = vsel %vm308, %v288, 0
      %v355 = vsel %vm308, %v289, 0
      %357 = vmatpush.bf16.msra.mxu0 0
      %358 = vmatpush.bf16.msra.mxu0 0
      %359 = vmatpush.bf16.msra.mxu0 0
      %360 = vmatpush.bf16.msra.mxu0 0
      %361 = vmatpush.bf16.msra.mxu0 0
      %362 = vmatpush.bf16.msra.mxu0 %v304
      %363 = vmatpush.bf16.msra.mxu0 %v303
      %364 = vmatpush.bf16.msra.mxu0 %v302
      %365 = vmatmul.bf16.gmra.mxu0 %v310
      %v366 = vpop.f32.mrf.mxu0
      %v367 = vadd.f32 0.0, %v366
      %v368 = vpop.f32.mrf.mxu0
      %v369 = vadd.f32 0.0, %v368
      %370 = vmatmul.bf16.gmra.mxu0 %v313
      %v371 = vpop.f32.mrf.mxu0
      %v372 = vadd.f32 0.0, %v371
      %v373 = vpop.f32.mrf.mxu0
      %v374 = vadd.f32 0.0, %v373
      %375 = vmatmul.bf16.gmra.mxu0 %v316
      %v376 = vpop.f32.mrf.mxu0
      %v377 = vadd.f32 0.0, %v376
      %v378 = vpop.f32.mrf.mxu0
      %v379 = vadd.f32 0.0, %v378
      %380 = vmatmul.bf16.gmra.mxu0 %v319
      %v381 = vpop.f32.mrf.mxu0
      %v382 = vadd.f32 0.0, %v381
      %v383 = vpop.f32.mrf.mxu0
      %v384 = vadd.f32 0.0, %v383
      %385 = vmatmul.bf16.gmra.mxu0 %v322
      %v386 = vpop.f32.mrf.mxu0
      %v387 = vadd.f32 0.0, %v386
      %v388 = vpop.f32.mrf.mxu0
      %v389 = vadd.f32 0.0, %v388
      %390 = vmatmul.bf16.gmra.mxu0 %v325
      %v391 = vpop.f32.mrf.mxu0
      %v392 = vadd.f32 0.0, %v391
      %v393 = vpop.f32.mrf.mxu0
      %v394 = vadd.f32 0.0, %v393
      %395 = vmatmul.bf16.gmra.mxu0 %v328
      %v396 = vpop.f32.mrf.mxu0
      %v397 = vadd.f32 0.0, %v396
      %v398 = vpop.f32.mrf.mxu0
      %v399 = vadd.f32 0.0, %v398
      %400 = vmatmul.bf16.gmra.mxu0 %v331
      %v401 = vpop.f32.mrf.mxu0
      %v402 = vadd.f32 0.0, %v401
      %v403 = vpop.f32.mrf.mxu0
      %v404 = vadd.f32 0.0, %v403
      %405 = vmatmul.bf16.gmra.mxu0 %v334
      %v406 = vpop.f32.mrf.mxu0
      %v407 = vadd.f32 0.0, %v406
      %v408 = vpop.f32.mrf.mxu0
      %v409 = vadd.f32 0.0, %v408
      %410 = vmatmul.bf16.gmra.mxu0 %v337
      %v411 = vpop.f32.mrf.mxu0
      %v412 = vadd.f32 0.0, %v411
      %v413 = vpop.f32.mrf.mxu0
      %v414 = vadd.f32 0.0, %v413
      %415 = vmatmul.bf16.gmra.mxu0 %v340
      %v416 = vpop.f32.mrf.mxu0
      %v417 = vadd.f32 0.0, %v416
      %v418 = vpop.f32.mrf.mxu0
      %v419 = vadd.f32 0.0, %v418
      %420 = vmatmul.bf16.gmra.mxu0 %v343
      %v421 = vpop.f32.mrf.mxu0
      %v422 = vadd.f32 0.0, %v421
      %v423 = vpop.f32.mrf.mxu0
      %v424 = vadd.f32 0.0, %v423
      %425 = vmatmul.bf16.gmra.mxu0 %v346
      %v426 = vpop.f32.mrf.mxu0
      %v427 = vadd.f32 0.0, %v426
      %v428 = vpop.f32.mrf.mxu0
      %v429 = vadd.f32 0.0, %v428
      %430 = vmatmul.bf16.gmra.mxu0 %v349
      %v431 = vpop.f32.mrf.mxu0
      %v432 = vadd.f32 0.0, %v431
      %v433 = vpop.f32.mrf.mxu0
      %v434 = vadd.f32 0.0, %v433
      %435 = vmatmul.bf16.gmra.mxu0 %v352
      %v436 = vpop.f32.mrf.mxu0
      %v437 = vadd.f32 0.0, %v436
      %v438 = vpop.f32.mrf.mxu0
      %v439 = vadd.f32 0.0, %v438
      %440 = vmatmul.bf16.gmra.mxu0 %v355
      %v441 = vpop.f32.mrf.mxu0
      %v442 = vadd.f32 0.0, %v441
      %v443 = vpop.f32.mrf.mxu0
      %v444 = vadd.f32 0.0, %v443
      %445 = vdwg.mxu0
      %vm446 = vcmask 64512
      %447 = vst.msk [vmem:[#allocation2] sm:$0xff] %vm446, %v367
      %448 = vst.msk [vmem:[#allocation2 + $0x8] sm:$0xff] %vm446, %v369
      %449 = vst.msk [vmem:[#allocation2 + $0x10] sm:$0xff] %vm446, %v372
      %450 = vst.msk [vmem:[#allocation2 + $0x18] sm:$0xff] %vm446, %v374
      %451 = vst.msk [vmem:[#allocation2 + $0x20] sm:$0xff] %vm446, %v377
      %452 = vst.msk [vmem:[#allocation2 + $0x28] sm:$0xff] %vm446, %v379
      %453 = vst.msk [vmem:[#allocation2 + $0x30] sm:$0xff] %vm446, %v382
      %454 = vst.msk [vmem:[#allocation2 + $0x38] sm:$0xff] %vm446, %v384
      %455 = vst.msk [vmem:[#allocation2 + $0x40] sm:$0xff] %vm446, %v387
      %456 = vst.msk [vmem:[#allocation2 + $0x48] sm:$0xff] %vm446, %v389
      %457 = vst.msk [vmem:[#allocation2 + $0x50] sm:$0xff] %vm446, %v392
      %458 = vst.msk [vmem:[#allocation2 + $0x58] sm:$0xff] %vm446, %v394
      %459 = vst.msk [vmem:[#allocation2 + $0x60] sm:$0xff] %vm446, %v397
      %460 = vst.msk [vmem:[#allocation2 + $0x68] sm:$0xff] %vm446, %v399
      %461 = vst.msk [vmem:[#allocation2 + $0x70] sm:$0xff] %vm446, %v402
      %462 = vst.msk [vmem:[#allocation2 + $0x78] sm:$0xff] %vm446, %v404
      %463 = vst.msk [vmem:[#allocation2 + $0x80] sm:$0xff] %vm446, %v407
      %464 = vst.msk [vmem:[#allocation2 + $0x88] sm:$0xff] %vm446, %v409
      %465 = vst.msk [vmem:[#allocation2 + $0x90] sm:$0xff] %vm446, %v412
      %466 = vst.msk [vmem:[#allocation2 + $0x98] sm:$0xff] %vm446, %v414
      %467 = vst.msk [vmem:[#allocation2 + $0xa0] sm:$0xff] %vm446, %v417
      %468 = vst.msk [vmem:[#allocation2 + $0xa8] sm:$0xff] %vm446, %v419
      %469 = vst.msk [vmem:[#allocation2 + $0xb0] sm:$0xff] %vm446, %v422
      %470 = vst.msk [vmem:[#allocation2 + $0xb8] sm:$0xff] %vm446, %v424
      %471 = vst.msk [vmem:[#allocation2 + $0xc0] sm:$0xff] %vm446, %v427
      %472 = vst.msk [vmem:[#allocation2 + $0xc8] sm:$0xff] %vm446, %v429
      %473 = vst.msk [vmem:[#allocation2 + $0xd0] sm:$0xff] %vm446, %v432
      %474 = vst.msk [vmem:[#allocation2 + $0xd8] sm:$0xff] %vm446, %v434
      %475 = vst.msk [vmem:[#allocation2 + $0xe0] sm:$0xff] %vm446, %v437
      %476 = vst.msk [vmem:[#allocation2 + $0xe8] sm:$0xff] %vm446, %v439
      %477 = vst.msk [vmem:[#allocation2 + $0xf0] sm:$0xff] %vm446, %v442
      %478 = vst.msk [vmem:[#allocation2 + $0xf8] sm:$0xff] %vm446, %v444
      %v479 = vld [vmem:[#allocation2] sm:$0xff]
      %v480 = vld [vmem:[#allocation2 + $0x8] sm:$0xff]
      %v481 = vld [vmem:[#allocation2 + $0x10] sm:$0xff]
      %v482 = vld [vmem:[#allocation2 + $0x18] sm:$0xff]
      %v483 = vld [vmem:[#allocation2 + $0x20] sm:$0xff]
      %v484 = vld [vmem:[#allocation2 + $0x28] sm:$0xff]
      %v485 = vld [vmem:[#allocation2 + $0x30] sm:$0xff]
      %v486 = vld [vmem:[#allocation2 + $0x38] sm:$0xff]
      %v487 = vld [vmem:[#allocation2 + $0x40] sm:$0xff]
      %v488 = vld [vmem:[#allocation2 + $0x48] sm:$0xff]
      %v489 = vld [vmem:[#allocation2 + $0x50] sm:$0xff]
      %v490 = vld [vmem:[#allocation2 + $0x58] sm:$0xff]
      %v491 = vld [vmem:[#allocation2 + $0x60] sm:$0xff]
      %v492 = vld [vmem:[#allocation2 + $0x68] sm:$0xff]
      %v493 = vld [vmem:[#allocation2 + $0x70] sm:$0xff]
      %v494 = vld [vmem:[#allocation2 + $0x78] sm:$0xff]
      %v495 = vld [vmem:[#allocation2 + $0x80] sm:$0xff]
      %v496 = vld [vmem:[#allocation2 + $0x88] sm:$0xff]
      %v497 = vld [vmem:[#allocation2 + $0x90] sm:$0xff]
      %v498 = vld [vmem:[#allocation2 + $0x98] sm:$0xff]
      %v499 = vld [vmem:[#allocation2 + $0xa0] sm:$0xff]
      %v500 = vld [vmem:[#allocation2 + $0xa8] sm:$0xff]
      %v501 = vld [vmem:[#allocation2 + $0xb0] sm:$0xff]
      %v502 = vld [vmem:[#allocation2 + $0xb8] sm:$0xff]
      %v503 = vld [vmem:[#allocation2 + $0xc0] sm:$0xff]
      %v504 = vld [vmem:[#allocation2 + $0xc8] sm:$0xff]
      %v505 = vld [vmem:[#allocation2 + $0xd0] sm:$0xff]
      %v506 = vld [vmem:[#allocation2 + $0xd8] sm:$0xff]
      %v507 = vld [vmem:[#allocation2 + $0xe0] sm:$0xff]
      %v508 = vld [vmem:[#allocation2 + $0xe8] sm:$0xff]
      %v509 = vld [vmem:[#allocation2 + $0xf0] sm:$0xff]
      %v510 = vld [vmem:[#allocation2 + $0xf8] sm:$0xff]
      %v511 = vld [vmem:[%s2] sm:$0xff]
      %v512 = vld [vmem:[%s2 + $0x8] sm:$0xff]
      %v513 = vld [vmem:[%s2 + $0x10] sm:$0xff]
      %v514 = vld [vmem:[%s2 + $0x18] sm:$0xff]
      %v515 = vld [vmem:[%s2 + $0x20] sm:$0xff]
      %v516 = vld [vmem:[%s2 + $0x28] sm:$0xff]
      %v517 = vld [vmem:[%s2 + $0x30] sm:$0xff]
      %v518 = vld [vmem:[%s2 + $0x38] sm:$0xff]
      %v519 = vld [vmem:[%s2 + $0x40] sm:$0xff]
      %v520 = vld [vmem:[%s2 + $0x48] sm:$0xff]
      %v521 = vld [vmem:[%s2 + $0x50] sm:$0xff]
      %v522 = vld [vmem:[%s2 + $0x58] sm:$0xff]
      %v523 = vld [vmem:[%s2 + $0x60] sm:$0xff]
      %v524 = vld [vmem:[%s2 + $0x68] sm:$0xff]
      %v525 = vld [vmem:[%s2 + $0x70] sm:$0xff]
      %v526 = vld [vmem:[%s2 + $0x78] sm:$0xff]
      %v527 = vld [vmem:[%s2 + $0x80] sm:$0xff]
      %v528 = vld [vmem:[%s2 + $0x88] sm:$0xff]
      %v529 = vld [vmem:[%s2 + $0x90] sm:$0xff]
      %v530 = vld [vmem:[%s2 + $0x98] sm:$0xff]
      %v531 = vld [vmem:[%s2 + $0xa0] sm:$0xff]
      %v532 = vld [vmem:[%s2 + $0xa8] sm:$0xff]
      %v533 = vld [vmem:[%s2 + $0xb0] sm:$0xff]
      %v534 = vld [vmem:[%s2 + $0xb8] sm:$0xff]
      %v535 = vld [vmem:[%s2 + $0xc0] sm:$0xff]
      %v536 = vld [vmem:[%s2 + $0xc8] sm:$0xff]
      %v537 = vld [vmem:[%s2 + $0xd0] sm:$0xff]
      %v538 = vld [vmem:[%s2 + $0xd8] sm:$0xff]
      %v539 = vld [vmem:[%s2 + $0xe0] sm:$0xff]
      %v540 = vld [vmem:[%s2 + $0xe8] sm:$0xff]
      %v541 = vld [vmem:[%s2 + $0xf0] sm:$0xff]
      %v542 = vld [vmem:[%s2 + $0xf8] sm:$0xff]
      %544 = vset.pattern.permute.xlu0 0
      %545 = vperm.xlu0 %544, %v511
      %v546 = vpop.permute.xlu0 %545
      %549 = vset.pattern.permute.xlu0 0
      %550 = vperm.xlu0 %549, %v512
      %v551 = vpop.permute.xlu0 %550
      %554 = vset.pattern.permute.xlu0 0
      %555 = vperm.xlu0 %554, %v513
      %v556 = vpop.permute.xlu0 %555
      %559 = vset.pattern.permute.xlu0 0
      %560 = vperm.xlu0 %559, %v514
      %v561 = vpop.permute.xlu0 %560
      %564 = vset.pattern.permute.xlu0 0
      %565 = vperm.xlu0 %564, %v515
      %v566 = vpop.permute.xlu0 %565
      %569 = vset.pattern.permute.xlu0 0
      %570 = vperm.xlu0 %569, %v516
      %v571 = vpop.permute.xlu0 %570
      %574 = vset.pattern.permute.xlu0 0
      %575 = vperm.xlu0 %574, %v517
      %v576 = vpop.permute.xlu0 %575
      %579 = vset.pattern.permute.xlu0 0
      %580 = vperm.xlu0 %579, %v518
      %v581 = vpop.permute.xlu0 %580
      %584 = vset.pattern.permute.xlu0 0
      %585 = vperm.xlu0 %584, %v519
      %v586 = vpop.permute.xlu0 %585
      %589 = vset.pattern.permute.xlu0 0
      %590 = vperm.xlu0 %589, %v520
      %v591 = vpop.permute.xlu0 %590
      %594 = vset.pattern.permute.xlu0 0
      %595 = vperm.xlu0 %594, %v521
      %v596 = vpop.permute.xlu0 %595
      %599 = vset.pattern.permute.xlu0 0
      %600 = vperm.xlu0 %599, %v522
      %v601 = vpop.permute.xlu0 %600
      %604 = vset.pattern.permute.xlu0 0
      %605 = vperm.xlu0 %604, %v523
      %v606 = vpop.permute.xlu0 %605
      %609 = vset.pattern.permute.xlu0 0
      %610 = vperm.xlu0 %609, %v524
      %v611 = vpop.permute.xlu0 %610
      %614 = vset.pattern.permute.xlu0 0
      %615 = vperm.xlu0 %614, %v525
      %v616 = vpop.permute.xlu0 %615
      %619 = vset.pattern.permute.xlu0 0
      %620 = vperm.xlu0 %619, %v526
      %v621 = vpop.permute.xlu0 %620
      %624 = vset.pattern.permute.xlu0 0
      %625 = vperm.xlu0 %624, %v527
      %v626 = vpop.permute.xlu0 %625
      %629 = vset.pattern.permute.xlu0 0
      %630 = vperm.xlu0 %629, %v528
      %v631 = vpop.permute.xlu0 %630
      %634 = vset.pattern.permute.xlu0 0
      %635 = vperm.xlu0 %634, %v529
      %v636 = vpop.permute.xlu0 %635
      %639 = vset.pattern.permute.xlu0 0
      %640 = vperm.xlu0 %639, %v530
      %v641 = vpop.permute.xlu0 %640
      %644 = vset.pattern.permute.xlu0 0
      %645 = vperm.xlu0 %644, %v531
      %v646 = vpop.permute.xlu0 %645
      %649 = vset.pattern.permute.xlu0 0
      %650 = vperm.xlu0 %649, %v532
      %v651 = vpop.permute.xlu0 %650
      %654 = vset.pattern.permute.xlu0 0
      %655 = vperm.xlu0 %654, %v533
      %v656 = vpop.permute.xlu0 %655
      %659 = vset.pattern.permute.xlu0 0
      %660 = vperm.xlu0 %659, %v534
      %v661 = vpop.permute.xlu0 %660
      %664 = vset.pattern.permute.xlu0 0
      %665 = vperm.xlu0 %664, %v535
      %v666 = vpop.permute.xlu0 %665
      %669 = vset.pattern.permute.xlu0 0
      %670 = vperm.xlu0 %669, %v536
      %v671 = vpop.permute.xlu0 %670
      %674 = vset.pattern.permute.xlu0 0
      %675 = vperm.xlu0 %674, %v537
      %v676 = vpop.permute.xlu0 %675
      %679 = vset.pattern.permute.xlu0 0
      %680 = vperm.xlu0 %679, %v538
      %v681 = vpop.permute.xlu0 %680
      %684 = vset.pattern.permute.xlu0 0
      %685 = vperm.xlu0 %684, %v539
      %v686 = vpop.permute.xlu0 %685
      %689 = vset.pattern.permute.xlu0 0
      %690 = vperm.xlu0 %689, %v540
      %v691 = vpop.permute.xlu0 %690
      %694 = vset.pattern.permute.xlu0 0
      %695 = vperm.xlu0 %694, %v541
      %v696 = vpop.permute.xlu0 %695
      %699 = vset.pattern.permute.xlu0 0
      %700 = vperm.xlu0 %699, %v542
      %v701 = vpop.permute.xlu0 %700
      %v703 = vmul.f32 %v479, %v546
      %v704 = vmul.f32 %v480, %v551
      %v705 = vmul.f32 %v481, %v556
      %v706 = vmul.f32 %v482, %v561
      %v707 = vmul.f32 %v483, %v566
      %v708 = vmul.f32 %v484, %v571
      %v709 = vmul.f32 %v485, %v576
      %v710 = vmul.f32 %v486, %v581
      %v711 = vmul.f32 %v487, %v586
      %v712 = vmul.f32 %v488, %v591
      %v713 = vmul.f32 %v489, %v596
      %v714 = vmul.f32 %v490, %v601
      %v715 = vmul.f32 %v491, %v606
      %v716 = vmul.f32 %v492, %v611
      %v717 = vmul.f32 %v493, %v616
      %v718 = vmul.f32 %v494, %v621
      %v719 = vmul.f32 %v495, %v626
      %v720 = vmul.f32 %v496, %v631
      %v721 = vmul.f32 %v497, %v636
      %v722 = vmul.f32 %v498, %v641
      %v723 = vmul.f32 %v499, %v646
      %v724 = vmul.f32 %v500, %v651
      %v725 = vmul.f32 %v501, %v656
      %v726 = vmul.f32 %v502, %v661
      %v727 = vmul.f32 %v503, %v666
      %v728 = vmul.f32 %v504, %v671
      %v729 = vmul.f32 %v505, %v676
      %v730 = vmul.f32 %v506, %v681
      %v731 = vmul.f32 %v507, %v686
      %v732 = vmul.f32 %v508, %v691
      %v733 = vmul.f32 %v509, %v696
      %v734 = vmul.f32 %v510, %v701
      %v735 = vsel %vm446, %v703, 0.0
      %v736 = vsel %vm446, %v704, 0.0
      %v737 = vadd.f32 %v735, %v736
      %v738 = vsel %vm446, %v705, 0.0
      %v739 = vadd.f32 %v737, %v738
      %v740 = vsel %vm446, %v706, 0.0
      %v741 = vadd.f32 %v739, %v740
      %v742 = vsel %vm446, %v707, 0.0
      %v743 = vadd.f32 %v741, %v742
      %v744 = vsel %vm446, %v708, 0.0
      %v745 = vadd.f32 %v743, %v744
      %v746 = vsel %vm446, %v709, 0.0
      %v747 = vadd.f32 %v745, %v746
      %v748 = vsel %vm446, %v710, 0.0
      %v749 = vadd.f32 %v747, %v748
      %v750 = vsel %vm446, %v711, 0.0
      %v751 = vadd.f32 %v749, %v750
      %v752 = vsel %vm446, %v712, 0.0
      %v753 = vadd.f32 %v751, %v752
      %v754 = vsel %vm446, %v713, 0.0
      %v755 = vadd.f32 %v753, %v754
      %v756 = vsel %vm446, %v714, 0.0
      %v757 = vadd.f32 %v755, %v756
      %v758 = vsel %vm446, %v715, 0.0
      %v759 = vadd.f32 %v757, %v758
      %v760 = vsel %vm446, %v716, 0.0
      %v761 = vadd.f32 %v759, %v760
      %v762 = vsel %vm446, %v717, 0.0
      %v763 = vadd.f32 %v761, %v762
      %v764 = vsel %vm446, %v718, 0.0
      %v765 = vadd.f32 %v763, %v764
      %v766 = vsel %vm446, %v719, 0.0
      %v767 = vadd.f32 %v765, %v766
      %v768 = vsel %vm446, %v720, 0.0
      %v769 = vadd.f32 %v767, %v768
      %v770 = vsel %vm446, %v721, 0.0
      %v771 = vadd.f32 %v769, %v770
      %v772 = vsel %vm446, %v722, 0.0
      %v773 = vadd.f32 %v771, %v772
      %v774 = vsel %vm446, %v723, 0.0
      %v775 = vadd.f32 %v773, %v774
      %v776 = vsel %vm446, %v724, 0.0
      %v777 = vadd.f32 %v775, %v776
      %v778 = vsel %vm446, %v725, 0.0
      %v779 = vadd.f32 %v777, %v778
      %v780 = vsel %vm446, %v726, 0.0
      %v781 = vadd.f32 %v779, %v780
      %v782 = vsel %vm446, %v727, 0.0
      %v783 = vadd.f32 %v781, %v782
      %v784 = vsel %vm446, %v728, 0.0
      %v785 = vadd.f32 %v783, %v784
      %v786 = vsel %vm446, %v729, 0.0
      %v787 = vadd.f32 %v785, %v786
      %v788 = vsel %vm446, %v730, 0.0
      %v789 = vadd.f32 %v787, %v788
      %v790 = vsel %vm446, %v731, 0.0
      %v791 = vadd.f32 %v789, %v790
      %v792 = vsel %vm446, %v732, 0.0
      %v793 = vadd.f32 %v791, %v792
      %v794 = vsel %vm446, %v733, 0.0
      %v795 = vadd.f32 %v793, %v794
      %v796 = vsel %vm446, %v734, 0.0
      %v797 = vadd.f32 %v795, %v796
      %v798 = vrot.slane %v797, 4
      %v799 = vadd.f32 %v797, %v798
      %v800 = vrot.slane %v799, 2
      %v801 = vadd.f32 %v799, %v800
      %v802 = vrot.slane %v801, 1
      %v803 = vadd.f32 %v801, %v802
      %v804 = vmul.f32 %v703, %v703
      %v805 = vmul.f32 %v704, %v704
      %v806 = vmul.f32 %v705, %v705
      %v807 = vmul.f32 %v706, %v706
      %v808 = vmul.f32 %v707, %v707
      %v809 = vmul.f32 %v708, %v708
      %v810 = vmul.f32 %v709, %v709
      %v811 = vmul.f32 %v710, %v710
      %v812 = vmul.f32 %v711, %v711
      %v813 = vmul.f32 %v712, %v712
      %v814 = vmul.f32 %v713, %v713
      %v815 = vmul.f32 %v714, %v714
      %v816 = vmul.f32 %v715, %v715
      %v817 = vmul.f32 %v716, %v716
      %v818 = vmul.f32 %v717, %v717
      %v819 = vmul.f32 %v718, %v718
      %v820 = vmul.f32 %v719, %v719
      %v821 = vmul.f32 %v720, %v720
      %v822 = vmul.f32 %v721, %v721
      %v823 = vmul.f32 %v722, %v722
      %v824 = vmul.f32 %v723, %v723
      %v825 = vmul.f32 %v724, %v724
      %v826 = vmul.f32 %v725, %v725
      %v827 = vmul.f32 %v726, %v726
      %v828 = vmul.f32 %v727, %v727
      %v829 = vmul.f32 %v728, %v728
      %v830 = vmul.f32 %v729, %v729
      %v831 = vmul.f32 %v730, %v730
      %v832 = vmul.f32 %v731, %v731
      %v833 = vmul.f32 %v732, %v732
      %v834 = vmul.f32 %v733, %v733
      %v835 = vmul.f32 %v734, %v734
      %v836 = vsel %vm446, %v804, 0.0
      %v837 = vsel %vm446, %v805, 0.0
      %v838 = vadd.f32 %v836, %v837
      %v839 = vsel %vm446, %v806, 0.0
      %v840 = vadd.f32 %v838, %v839
      %v841 = vsel %vm446, %v807, 0.0
      %v842 = vadd.f32 %v840, %v841
      %v843 = vsel %vm446, %v808, 0.0
      %v844 = vadd.f32 %v842, %v843
      %v845 = vsel %vm446, %v809, 0.0
      %v846 = vadd.f32 %v844, %v845
      %v847 = vsel %vm446, %v810, 0.0
      %v848 = vadd.f32 %v846, %v847
      %v849 = vsel %vm446, %v811, 0.0
      %v850 = vadd.f32 %v848, %v849
      %v851 = vsel %vm446, %v812, 0.0
      %v852 = vadd.f32 %v850, %v851
      %v853 = vsel %vm446, %v813, 0.0
      %v854 = vadd.f32 %v852, %v853
      %v855 = vsel %vm446, %v814, 0.0
      %v856 = vadd.f32 %v854, %v855
      %v857 = vsel %vm446, %v815, 0.0
      %v858 = vadd.f32 %v856, %v857
      %v859 = vsel %vm446, %v816, 0.0
      %v860 = vadd.f32 %v858, %v859
      %v861 = vsel %vm446, %v817, 0.0
      %v862 = vadd.f32 %v860, %v861
      %v863 = vsel %vm446, %v818, 0.0
      %v864 = vadd.f32 %v862, %v863
      %v865 = vsel %vm446, %v819, 0.0
      %v866 = vadd.f32 %v864, %v865
      %v867 = vsel %vm446, %v820, 0.0
      %v868 = vadd.f32 %v866, %v867
      %v869 = vsel %vm446, %v821, 0.0
      %v870 = vadd.f32 %v868, %v869
      %v871 = vsel %vm446, %v822, 0.0
      %v872 = vadd.f32 %v870, %v871
      %v873 = vsel %vm446, %v823, 0.0
      %v874 = vadd.f32 %v872, %v873
      %v875 = vsel %vm446, %v824, 0.0
      %v876 = vadd.f32 %v874, %v875
      %v877 = vsel %vm446, %v825, 0.0
      %v878 = vadd.f32 %v876, %v877
      %v879 = vsel %vm446, %v826, 0.0
      %v880 = vadd.f32 %v878, %v879
      %v881 = vsel %vm446, %v827, 0.0
      %v882 = vadd.f32 %v880, %v881
      %v883 = vsel %vm446, %v828, 0.0
      %v884 = vadd.f32 %v882, %v883
      %v885 = vsel %vm446, %v829, 0.0
      %v886 = vadd.f32 %v884, %v885
      %v887 = vsel %vm446, %v830, 0.0
      %v888 = vadd.f32 %v886, %v887
      %v889 = vsel %vm446, %v831, 0.0
      %v890 = vadd.f32 %v888, %v889
      %v891 = vsel %vm446, %v832, 0.0
      %v892 = vadd.f32 %v890, %v891
      %v893 = vsel %vm446, %v833, 0.0
      %v894 = vadd.f32 %v892, %v893
      %v895 = vsel %vm446, %v834, 0.0
      %v896 = vadd.f32 %v894, %v895
      %v897 = vsel %vm446, %v835, 0.0
      %v898 = vadd.f32 %v896, %v897
      %v899 = vrot.slane %v898, 4
      %v900 = vadd.f32 %v898, %v899
      %v901 = vrot.slane %v900, 2
      %v902 = vadd.f32 %v900, %v901
      %v903 = vrot.slane %v902, 1
      %v904 = vadd.f32 %v902, %v903
      %v905 = vmul.f32 %v803, 0.00390625
      %v906 = vmul.f32 %v904, 0.00390625
      %v907 = vmul.f32 %v905, %v905
      %v908 = vsub.f32 %v906, %v907
      %v909 = vmax.f32 %v908, 0.0
      %v910 = vsub.f32 %v703, %v905
      %v911 = vsub.f32 %v704, %v905
      %v912 = vsub.f32 %v705, %v905
      %v913 = vsub.f32 %v706, %v905
      %v914 = vsub.f32 %v707, %v905
      %v915 = vsub.f32 %v708, %v905
      %v916 = vsub.f32 %v709, %v905
      %v917 = vsub.f32 %v710, %v905
      %v918 = vsub.f32 %v711, %v905
      %v919 = vsub.f32 %v712, %v905
      %v920 = vsub.f32 %v713, %v905
      %v921 = vsub.f32 %v714, %v905
      %v922 = vsub.f32 %v715, %v905
      %v923 = vsub.f32 %v716, %v905
      %v924 = vsub.f32 %v717, %v905
      %v925 = vsub.f32 %v718, %v905
      %v926 = vsub.f32 %v719, %v905
      %v927 = vsub.f32 %v720, %v905
      %v928 = vsub.f32 %v721, %v905
      %v929 = vsub.f32 %v722, %v905
      %v930 = vsub.f32 %v723, %v905
      %v931 = vsub.f32 %v724, %v905
      %v932 = vsub.f32 %v725, %v905
      %v933 = vsub.f32 %v726, %v905
      %v934 = vsub.f32 %v727, %v905
      %v935 = vsub.f32 %v728, %v905
      %v936 = vsub.f32 %v729, %v905
      %v937 = vsub.f32 %v730, %v905
      %v938 = vsub.f32 %v731, %v905
      %v939 = vsub.f32 %v732, %v905
      %v940 = vsub.f32 %v733, %v905
      %v941 = vsub.f32 %v734, %v905
      %v942 = vadd.f32 %v909, 1e-05
      %v943 = vrsqrt.pop %v942
      %v944 = vmul.f32 %v943, %v942
      %v945 = vmul.f32 %v944, %v943
      %v946 = vmul.f32 0.5, %v945
      %v947 = vsub.f32 1.5, %v946
      %v948 = vmul.f32 %v943, %v947
      %vm949 = vweird.f32 %v942
      %vm950 = vweird.f32 %v943
      %vm951 = vmor %vm949, %vm950
      %v952 = vsel %vm951, %v943, %v948
      %v953 = vmul.f32 %v910, %v952
      %v954 = vmul.f32 %v911, %v952
      %v955 = vmul.f32 %v912, %v952
      %v956 = vmul.f32 %v913, %v952
      %v957 = vmul.f32 %v914, %v952
      %v958 = vmul.f32 %v915, %v952
      %v959 = vmul.f32 %v916, %v952
      %v960 = vmul.f32 %v917, %v952
      %v961 = vmul.f32 %v918, %v952
      %v962 = vmul.f32 %v919, %v952
      %v963 = vmul.f32 %v920, %v952
      %v964 = vmul.f32 %v921, %v952
      %v965 = vmul.f32 %v922, %v952
      %v966 = vmul.f32 %v923, %v952
      %v967 = vmul.f32 %v924, %v952
      %v968 = vmul.f32 %v925, %v952
      %v969 = vmul.f32 %v926, %v952
      %v970 = vmul.f32 %v927, %v952
      %v971 = vmul.f32 %v928, %v952
      %v972 = vmul.f32 %v929, %v952
      %v973 = vmul.f32 %v930, %v952
      %v974 = vmul.f32 %v931, %v952
      %v975 = vmul.f32 %v932, %v952
      %v976 = vmul.f32 %v933, %v952
      %v977 = vmul.f32 %v934, %v952
      %v978 = vmul.f32 %v935, %v952
      %v979 = vmul.f32 %v936, %v952
      %v980 = vmul.f32 %v937, %v952
      %v981 = vmul.f32 %v938, %v952
      %v982 = vmul.f32 %v939, %v952
      %v983 = vmul.f32 %v940, %v952
      %v984 = vmul.f32 %v941, %v952
      %vm985 = vcmp.ge.f32.partialorder %v953, 0.0
      %vm986 = vcmp.ge.f32.partialorder %v954, 0.0
      %vm987 = vcmp.ge.f32.partialorder %v955, 0.0
      %vm988 = vcmp.ge.f32.partialorder %v956, 0.0
      %vm989 = vcmp.ge.f32.partialorder %v957, 0.0
      %vm990 = vcmp.ge.f32.partialorder %v958, 0.0
      %vm991 = vcmp.ge.f32.partialorder %v959, 0.0
      %vm992 = vcmp.ge.f32.partialorder %v960, 0.0
      %vm993 = vcmp.ge.f32.partialorder %v961, 0.0
      %vm994 = vcmp.ge.f32.partialorder %v962, 0.0
      %vm995 = vcmp.ge.f32.partialorder %v963, 0.0
      %vm996 = vcmp.ge.f32.partialorder %v964, 0.0
      %vm997 = vcmp.ge.f32.partialorder %v965, 0.0
      %vm998 = vcmp.ge.f32.partialorder %v966, 0.0
      %vm999 = vcmp.ge.f32.partialorder %v967, 0.0
      %vm1000 = vcmp.ge.f32.partialorder %v968, 0.0
      %vm1001 = vcmp.ge.f32.partialorder %v969, 0.0
      %vm1002 = vcmp.ge.f32.partialorder %v970, 0.0
      %vm1003 = vcmp.ge.f32.partialorder %v971, 0.0
      %vm1004 = vcmp.ge.f32.partialorder %v972, 0.0
      %vm1005 = vcmp.ge.f32.partialorder %v973, 0.0
      %vm1006 = vcmp.ge.f32.partialorder %v974, 0.0
      %vm1007 = vcmp.ge.f32.partialorder %v975, 0.0
      %vm1008 = vcmp.ge.f32.partialorder %v976, 0.0
      %vm1009 = vcmp.ge.f32.partialorder %v977, 0.0
      %vm1010 = vcmp.ge.f32.partialorder %v978, 0.0
      %vm1011 = vcmp.ge.f32.partialorder %v979, 0.0
      %vm1012 = vcmp.ge.f32.partialorder %v980, 0.0
      %vm1013 = vcmp.ge.f32.partialorder %v981, 0.0
      %vm1014 = vcmp.ge.f32.partialorder %v982, 0.0
      %vm1015 = vcmp.ge.f32.partialorder %v983, 0.0
      %vm1016 = vcmp.ge.f32.partialorder %v984, 0.0
      %v1017 = vmul.f32 %v953, 0.2
      %v1018 = vmul.f32 %v954, 0.2
      %v1019 = vmul.f32 %v955, 0.2
      %v1020 = vmul.f32 %v956, 0.2
      %v1021 = vmul.f32 %v957, 0.2
      %v1022 = vmul.f32 %v958, 0.2
      %v1023 = vmul.f32 %v959, 0.2
      %v1024 = vmul.f32 %v960, 0.2
      %v1025 = vmul.f32 %v961, 0.2
      %v1026 = vmul.f32 %v962, 0.2
      %v1027 = vmul.f32 %v963, 0.2
      %v1028 = vmul.f32 %v964, 0.2
      %v1029 = vmul.f32 %v965, 0.2
      %v1030 = vmul.f32 %v966, 0.2
      %v1031 = vmul.f32 %v967, 0.2
      %v1032 = vmul.f32 %v968, 0.2
      %v1033 = vmul.f32 %v969, 0.2
      %v1034 = vmul.f32 %v970, 0.2
      %v1035 = vmul.f32 %v971, 0.2
      %v1036 = vmul.f32 %v972, 0.2
      %v1037 = vmul.f32 %v973, 0.2
      %v1038 = vmul.f32 %v974, 0.2
      %v1039 = vmul.f32 %v975, 0.2
      %v1040 = vmul.f32 %v976, 0.2
      %v1041 = vmul.f32 %v977, 0.2
      %v1042 = vmul.f32 %v978, 0.2
      %v1043 = vmul.f32 %v979, 0.2
      %v1044 = vmul.f32 %v980, 0.2
      %v1045 = vmul.f32 %v981, 0.2
      %v1046 = vmul.f32 %v982, 0.2
      %v1047 = vmul.f32 %v983, 0.2
      %v1048 = vmul.f32 %v984, 0.2
      %v1049 = vsel %vm985, %v953, %v1017
      %v1050 = vsel %vm986, %v954, %v1018
      %v1051 = vsel %vm987, %v955, %v1019
      %v1052 = vsel %vm988, %v956, %v1020
      %v1053 = vsel %vm989, %v957, %v1021
      %v1054 = vsel %vm990, %v958, %v1022
      %v1055 = vsel %vm991, %v959, %v1023
      %v1056 = vsel %vm992, %v960, %v1024
      %v1057 = vsel %vm993, %v961, %v1025
      %v1058 = vsel %vm994, %v962, %v1026
      %v1059 = vsel %vm995, %v963, %v1027
      %v1060 = vsel %vm996, %v964, %v1028
      %v1061 = vsel %vm997, %v965, %v1029
      %v1062 = vsel %vm998, %v966, %v1030
      %v1063 = vsel %vm999, %v967, %v1031
      %v1064 = vsel %vm1000, %v968, %v1032
      %v1065 = vsel %vm1001, %v969, %v1033
      %v1066 = vsel %vm1002, %v970, %v1034
      %v1067 = vsel %vm1003, %v971, %v1035
      %v1068 = vsel %vm1004, %v972, %v1036
      %v1069 = vsel %vm1005, %v973, %v1037
      %v1070 = vsel %vm1006, %v974, %v1038
      %v1071 = vsel %vm1007, %v975, %v1039
      %v1072 = vsel %vm1008, %v976, %v1040
      %v1073 = vsel %vm1009, %v977, %v1041
      %v1074 = vsel %vm1010, %v978, %v1042
      %v1075 = vsel %vm1011, %v979, %v1043
      %v1076 = vsel %vm1012, %v980, %v1044
      %v1077 = vsel %vm1013, %v981, %v1045
      %v1078 = vsel %vm1014, %v982, %v1046
      %v1079 = vsel %vm1015, %v983, %v1047
      %v1080 = vsel %vm1016, %v984, %v1048
      %v1081 = vpack.c.bf16 %v1049, %v1049
      %v1082 = vpack.c.bf16 %v1050, %v1050
      %v1083 = vpack.c.bf16 %v1051, %v1051
      %v1084 = vpack.c.bf16 %v1052, %v1052
      %v1085 = vpack.c.bf16 %v1053, %v1053
      %v1086 = vpack.c.bf16 %v1054, %v1054
      %v1087 = vpack.c.bf16 %v1055, %v1055
      %v1088 = vpack.c.bf16 %v1056, %v1056
      %v1089 = vpack.c.bf16 %v1057, %v1057
      %v1090 = vpack.c.bf16 %v1058, %v1058
      %v1091 = vpack.c.bf16 %v1059, %v1059
      %v1092 = vpack.c.bf16 %v1060, %v1060
      %v1093 = vpack.c.bf16 %v1061, %v1061
      %v1094 = vpack.c.bf16 %v1062, %v1062
      %v1095 = vpack.c.bf16 %v1063, %v1063
      %v1096 = vpack.c.bf16 %v1064, %v1064
      %v1097 = vpack.c.bf16 %v1065, %v1065
      %v1098 = vpack.c.bf16 %v1066, %v1066
      %v1099 = vpack.c.bf16 %v1067, %v1067
      %v1100 = vpack.c.bf16 %v1068, %v1068
      %v1101 = vpack.c.bf16 %v1069, %v1069
      %v1102 = vpack.c.bf16 %v1070, %v1070
      %v1103 = vpack.c.bf16 %v1071, %v1071
      %v1104 = vpack.c.bf16 %v1072, %v1072
      %v1105 = vpack.c.bf16 %v1073, %v1073
      %v1106 = vpack.c.bf16 %v1074, %v1074
      %v1107 = vpack.c.bf16 %v1075, %v1075
      %v1108 = vpack.c.bf16 %v1076, %v1076
      %v1109 = vpack.c.bf16 %v1077, %v1077
      %v1110 = vpack.c.bf16 %v1078, %v1078
      %v1111 = vpack.c.bf16 %v1079, %v1079
      %v1112 = vpack.c.bf16 %v1080, %v1080
      %vm1113 = vcmask 60416
      %1114 = vst.msk [vmem:[%s170] sm:$0xf] %vm1113, %v1081
      %1115 = vst.msk [vmem:[%s170 + $0x4] sm:$0xf] %vm1113, %v1082
      %1116 = vst.msk [vmem:[%s170 + $0x8] sm:$0xf] %vm1113, %v1083
      %1117 = vst.msk [vmem:[%s170 + $0xc] sm:$0xf] %vm1113, %v1084
      %1118 = vst.msk [vmem:[%s170 + $0x10] sm:$0xf] %vm1113, %v1085
      %1119 = vst.msk [vmem:[%s170 + $0x14] sm:$0xf] %vm1113, %v1086
      %1120 = vst.msk [vmem:[%s170 + $0x18] sm:$0xf] %vm1113, %v1087
      %1121 = vst.msk [vmem:[%s170 + $0x1c] sm:$0xf] %vm1113, %v1088
      %1122 = vst.msk [vmem:[%s170 + $0x20] sm:$0xf] %vm1113, %v1089
      %1123 = vst.msk [vmem:[%s170 + $0x24] sm:$0xf] %vm1113, %v1090
      %1124 = vst.msk [vmem:[%s170 + $0x28] sm:$0xf] %vm1113, %v1091
      %1125 = vst.msk [vmem:[%s170 + $0x2c] sm:$0xf] %vm1113, %v1092
      %1126 = vst.msk [vmem:[%s170 + $0x30] sm:$0xf] %vm1113, %v1093
      %1127 = vst.msk [vmem:[%s170 + $0x34] sm:$0xf] %vm1113, %v1094
      %1128 = vst.msk [vmem:[%s170 + $0x38] sm:$0xf] %vm1113, %v1095
      %1129 = vst.msk [vmem:[%s170 + $0x3c] sm:$0xf] %vm1113, %v1096
      %1130 = vst.msk [vmem:[%s170 + $0x40] sm:$0xf] %vm1113, %v1097
      %1131 = vst.msk [vmem:[%s170 + $0x44] sm:$0xf] %vm1113, %v1098
      %1132 = vst.msk [vmem:[%s170 + $0x48] sm:$0xf] %vm1113, %v1099
      %1133 = vst.msk [vmem:[%s170 + $0x4c] sm:$0xf] %vm1113, %v1100
      %1134 = vst.msk [vmem:[%s170 + $0x50] sm:$0xf] %vm1113, %v1101
      %1135 = vst.msk [vmem:[%s170 + $0x54] sm:$0xf] %vm1113, %v1102
      %1136 = vst.msk [vmem:[%s170 + $0x58] sm:$0xf] %vm1113, %v1103
      %1137 = vst.msk [vmem:[%s170 + $0x5c] sm:$0xf] %vm1113, %v1104
      %1138 = vst.msk [vmem:[%s170 + $0x60] sm:$0xf] %vm1113, %v1105
      %1139 = vst.msk [vmem:[%s170 + $0x64] sm:$0xf] %vm1113, %v1106
      %1140 = vst.msk [vmem:[%s170 + $0x68] sm:$0xf] %vm1113, %v1107
      %1141 = vst.msk [vmem:[%s170 + $0x6c] sm:$0xf] %vm1113, %v1108
      %1142 = vst.msk [vmem:[%s170 + $0x70] sm:$0xf] %vm1113, %v1109
      %1143 = vst.msk [vmem:[%s170 + $0x74] sm:$0xf] %vm1113, %v1110
      %1144 = vst.msk [vmem:[%s170 + $0x78] sm:$0xf] %vm1113, %v1111
      %1145 = vst.msk [vmem:[%s170 + $0x7c] sm:$0xf] %vm1113, %v1112
      %p1146 = scmp.lt.s32.totalorder %s14, 1
      %s1147 = scalar_select %p1146, %s14, 1
      %s1148 = smul.addr %s1147, 32
      %s1149 = smul.addr %s1148, 4
      %s1150 = scalar_lea.vmem %s3, %s1149
      // Predicated region
      $region33: #{_lambda_.5} parent=31 // pred_check
        %p1151 = pneg %p100
      $region34: #{_lambda_.5} parent=31 // pred_check_branch
        %1153 = sbr.rel (%p1151) target = $region36
      $region35: #{_lambda_.5} parent=31 // pred_region
        _
      $region36: #{_lambda_.5} parent=31 // pred_fallthru
        _
    $region32: #{_lambda_.5} parent=5 // pred_fallthru
      _
    %p1154 = scmp.le.s32.totalorder 2, %s9
    // Predicated region
    $region37: #{_lambda_.5} parent=5 // pred_check
      %p1155 = pneg %p1154
    $region38: #{_lambda_.5} parent=5 // pred_check_branch
      %1157 = sbr.rel (%p1155) target = $region40
    $region39: #{_lambda_.5} parent=5 // pred_region
      %s1158 = ssub.s32 %s9, 2
      // Predicated region
      $region41: #{_lambda_.5} parent=39 // pred_check
        %p1159 = pneg %p106
      $region42: #{_lambda_.5} parent=39 // pred_check_branch
        %1161 = sbr.rel (%p1159) target = $region44
      $region43: #{_lambda_.5} parent=39 // pred_region
        %p1162 = scmp.lt.s32.totalorder %s15, 1
        %s1163 = scalar_select %p1162, %s15, 1
        %s1164 = smul.addr %s1163, 32
        %s1165 = smul.addr %s1164, 4
        %s1166 = scalar_lea.vmem %s3, %s1165
      $region44: #{_lambda_.5} parent=39 // pred_fallthru
        _
    $region40: #{_lambda_.5} parent=5 // pred_fallthru
      _
  $region6: #{_lambda_.5} parent=0 // loop_footer
    %s13 = sadd.s32 1, %s9
  $region7: #{_lambda_.5} parent=0 // loop_footer_branch
    %8 = sbr.rel target = $region3
  $region8: #{_lambda_.5} parent=0 // loop_exit
    _

// kernel: _lambda_.6
$region0: #{_lambda_.6}
  #allocation0 [shape = 'u32[]', space=smem, size = 0x4, offset = 0x4, fixed_abs, tag = 'smem constant byte address 0x4 - core index']
  #allocation1 [shape = 'u32[72,128]{1,0:T(1,128)}', space=vmem, size = 0x9000, scoped, tag = 'internal scratch']
  #allocation2 [shape = 'f32[72,16]{1,0:T(8,128)}', space=vmem, size = 0x9000, scoped, tag = 'scratch operand']
  %s0 = inlined_call_operand.vmem [shape: bf16[2,88,32], index: 0, kind: input, shape index: {}]
  %s1 = inlined_call_operand.vmem [shape: bf16[4,32,16], index: 1, kind: input, shape index: {}]
  %s2 = inlined_call_operand.vmem [shape: f32[72,1], index: 2, kind: input, shape index: {}]
  %s3 = inlined_call_operand.vmem [shape: bf16[2,72,16], index: 3, kind: output, shape index: {}]
  %s4 = sld [smem:[#allocation0]]
  $region45: #{_lambda_.6} parent=0
    _
  %s6 = ssub.s32 1, %s4
  %s7 = scalar_select 0, %s6, %s4
  loop: start=0, step=1, limit=4
  $region2: #{_lambda_.6} parent=0 // loop_pre_header
    _
  $region3: #{_lambda_.6} parent=0 // loop_header
    %s9 = sphi 0, %s13
    %p10 = scmp.ge.s32.totalorder %s9, 4
    %s19 = sphi 0, %s21
    %s22 = sphi 0, %s19
    %s23 = sphi 0, %s22
    %s39 = sphi 0, %s23
    %s43 = sphi 0, %s43
    %s45 = sphi 0, %s43
    %s46 = sphi 0, %s45
    %s60 = sphi 0, %s46
    %s64 = sphi 0, %s64
    %s66 = sphi 0, %s64
    %s67 = sphi 0, %s66
    %s81 = sphi 0, %s67
    %s87 = sphi 0, %s89
    %s90 = sphi 0, %s87
    %s91 = sphi 0, %s90
    %s107 = sphi 0, %s91
  $region4: #{_lambda_.6} parent=0 // loop_header_branch
    %12 = sbr.rel (%p10) target = $region8
  $region5: #{_lambda_.6} parent=0 // loop_body
    %s14 = ssub.s32 %s9, 1
    %s15 = ssub.s32 %s9, 2
    %s16 = sadd.s32 %s9, 1
    %s17 = ssub.s32 %s9, %s16
    %p18 = scmp.eq.s32.totalorder %s17, 0
    %s20 = sadd.s32 %s19, 1
    %s21 = scalar_select %p18, %s19, %s20
    %p24 = pneg %p18
    %p25 = scmp.eq.s32.totalorder %s9, 1
    %p26 = por %p24, %p25
    %p27 = scmp.ne.s32.totalorder %s19, %s22
    %p28 = scmp.eq.s32.totalorder %s9, 0
    %p29 = por %p27, %p28
    %p30 = scmp.ne.s32.totalorder %s19, %s22
    %p31 = scmp.eq.s32.totalorder %s14, 1
    %p32 = por %p30, %p31
    %p33 = scmp.ne.s32.totalorder %s22, %s23
    %p34 = scmp.eq.s32.totalorder %s14, 0
    %p35 = por %p33, %p34
    %p36 = scmp.ne.s32.totalorder %s22, %s23
    %p37 = scmp.eq.s32.totalorder %s15, 1
    %p38 = por %p36, %p37
    %p40 = scmp.ne.s32.totalorder %s23, %s39
    %p41 = scmp.eq.s32.totalorder %s15, 0
    %p42 = por %p40, %p41
    %s44 = sadd.s32 %s43, 1
    %p47 = scmp.eq.s32.totalorder %s9, 1
    %p48 = scmp.ne.s32.totalorder %s43, %s45
    %p49 = scmp.eq.s32.totalorder %s9, 0
    %p50 = por %p48, %p49
    %p51 = scmp.ne.s32.totalorder %s43, %s45
    %p52 = scmp.eq.s32.totalorder %s14, 1
    %p53 = por %p51, %p52
    %p54 = scmp.ne.s32.totalorder %s45, %s46
    %p55 = scmp.eq.s32.totalorder %s14, 0
    %p56 = por %p54, %p55
    %p57 = scmp.ne.s32.totalorder %s45, %s46
    %p58 = scmp.eq.s32.totalorder %s15, 1
    %p59 = por %p57, %p58
    %p61 = scmp.ne.s32.totalorder %s46, %s60
    %p62 = scmp.eq.s32.totalorder %s15, 0
    %p63 = por %p61, %p62
    %s65 = sadd.s32 %s64, 1
    %p68 = scmp.eq.s32.totalorder %s9, 1
    %p69 = scmp.ne.s32.totalorder %s64, %s66
    %p70 = scmp.eq.s32.totalorder %s9, 0
    %p71 = por %p69, %p70
    %p72 = scmp.ne.s32.totalorder %s64, %s66
    %p73 = scmp.eq.s32.totalorder %s14, 1
    %p74 = por %p72, %p73
    %p75 = scmp.ne.s32.totalorder %s66, %s67
    %p76 = scmp.eq.s32.totalorder %s14, 0
    %p77 = por %p75, %p76
    %p78 = scmp.ne.s32.totalorder %s66, %s67
    %p79 = scmp.eq.s32.totalorder %s15, 1
    %p80 = por %p78, %p79
    %p82 = scmp.ne.s32.totalorder %s67, %s81
    %p83 = scmp.eq.s32.totalorder %s15, 0
    %p84 = por %p82, %p83
    %s85 = ssub.s32 %s9, %s16
    %p86 = scmp.eq.s32.totalorder %s85, 0
    %s88 = sadd.s32 %s87, 1
    %s89 = scalar_select %p86, %s87, %s88
    %p92 = pneg %p86
    %p93 = scmp.eq.s32.totalorder %s9, 1
    %p94 = por %p92, %p93
    %p95 = scmp.ne.s32.totalorder %s87, %s90
    %p96 = scmp.eq.s32.totalorder %s9, 0
    %p97 = por %p95, %p96
    %p98 = scmp.ne.s32.totalorder %s87, %s90
    %p99 = scmp.eq.s32.totalorder %s14, 1
    %p100 = por %p98, %p99
    %p101 = scmp.ne.s32.totalorder %s90, %s91
    %p102 = scmp.eq.s32.totalorder %s14, 0
    %p103 = por %p101, %p102
    %p104 = scmp.ne.s32.totalorder %s90, %s91
    %p105 = scmp.eq.s32.totalorder %s15, 1
    %p106 = por %p104, %p105
    %p108 = scmp.ne.s32.totalorder %s91, %s107
    %p109 = scmp.eq.s32.totalorder %s15, 0
    %p110 = por %p108, %p109
    %p111 = scmp.le.s32.totalorder 1, %s9
    %p112 = scmp.lt.s32.totalorder %s9, 3
    %p113 = pnand %p111, %p112
    %p114 = pneg %p113
    // Predicated region
    $region9: #{_lambda_.6} parent=5 // pred_check
      _
    $region10: #{_lambda_.6} parent=5 // pred_check_branch
      %116 = sbr.rel (%p113) target = $region12
    $region11: #{_lambda_.6} parent=5 // pred_region
      %s117 = ssub.s32 %s9, 1
      // Predicated region
      $region13: #{_lambda_.6} parent=11 // pred_check
        %p118 = pneg %p56
      $region14: #{_lambda_.6} parent=11 // pred_check_branch
        %120 = sbr.rel (%p118) target = $region16
      $region15: #{_lambda_.6} parent=11 // pred_region
        _
      $region16: #{_lambda_.6} parent=11 // pred_fallthru
        _
      // Predicated region
      $region17: #{_lambda_.6} parent=11 // pred_check
        %p121 = pneg %p77
      $region18: #{_lambda_.6} parent=11 // pred_check_branch
        %123 = sbr.rel (%p121) target = $region20
      $region19: #{_lambda_.6} parent=11 // pred_region
        _
      $region20: #{_lambda_.6} parent=11 // pred_fallthru
        _
    $region12: #{_lambda_.6} parent=5 // pred_fallthru
      _
    %p124 = scmp.lt.s32.totalorder %s9, 2
    // Predicated region
    $region21: #{_lambda_.6} parent=5 // pred_check
      %p125 = pneg %p124
    $region22: #{_lambda_.6} parent=5 // pred_check_branch
      %127 = sbr.rel (%p125) target = $region24
    $region23: #{_lambda_.6} parent=5 // pred_region
      // Predicated region
      $region25: #{_lambda_.6} parent=23 // pred_check
        %p128 = pneg %p29
      $region26: #{_lambda_.6} parent=23 // pred_check_branch
        %130 = sbr.rel (%p128) target = $region28
      $region27: #{_lambda_.6} parent=23 // pred_region
        %p131 = scmp.lt.s32.totalorder %s9, 1
        %s132 = scalar_select %p131, %s9, 1
        %s133 = smul.addr %s132, 11
        %s134 = smul.addr %s133, 4
        %s135 = scalar_lea.vmem %s0, %s134
      $region28: #{_lambda_.6} parent=23 // pred_fallthru
        _
    $region24: #{_lambda_.6} parent=5 // pred_fallthru
      _
    %p136 = scmp.le.s32.totalorder 1, %s9
    %p137 = scmp.lt.s32.totalorder %s9, 3
    %p138 = pnand %p136, %p137
    %p139 = pneg %p138
    // Predicated region
    $region29: #{_lambda_.6} parent=5 // pred_check
      _
    $region30: #{_lambda_.6} parent=5 // pred_check_branch
      %141 = sbr.rel (%p138) target = $region32
    $region31: #{_lambda_.6} parent=5 // pred_region
      %s142 = ssub.s32 %s9, 1
      %p143 = scmp.lt.s32.totalorder %s14, 1
      %s144 = scalar_select %p143, %s14, 1
      %s145 = smul.addr %s144, 11
      %s146 = smul.addr %s145, 4
      %s147 = scalar_lea.vmem %s0, %s146
      %p148 = pneg %p35
      %p149 = pneg %p32
      %p150 = pneg %p56
      %p151 = pneg %p53
      %p152 = pneg %p77
      %p153 = pneg %p74
      %p154 = pneg %p103
      %p155 = pneg %p100
      %p156 = scmp.lt.s32.totalorder %s14, 1
      %s157 = scalar_select %p156, %s14, 1
      %s158 = smul.addr %s157, 9
      %s159 = smul.addr %s158, 4
      %s160 = scalar_lea.vmem %s3, %s159
      %p161 = scmp.lt.s32.totalorder %s14, 1
      %s162 = scalar_select %p161, %s14, 1
      %s163 = smul.addr %s162, 11
      %s164 = smul.addr %s163, 4
      %s165 = scalar_lea.vmem %s0, %s164
      %p166 = scmp.lt.s32.totalorder %s14, 1
      %s167 = scalar_select %p166, %s14, 1
      %s168 = smul.addr %s167, 9
      %s169 = smul.addr %s168, 4
      %s170 = scalar_lea.vmem %s3, %s169
      %v172 = vld [vmem:[%s165] sm:$0xf]
      %v173 = vld [vmem:[%s165 + $0x4] sm:$0xf]
      %v174 = vld [vmem:[%s165 + $0x8] sm:$0xf]
      %v175 = vld [vmem:[%s165 + $0xc] sm:$0xf]
      %v176 = vld [vmem:[%s165 + $0x10] sm:$0xf]
      %v177 = vld [vmem:[%s165 + $0x14] sm:$0xf]
      %v178 = vld [vmem:[%s165 + $0x18] sm:$0xf]
      %v179 = vld [vmem:[%s165 + $0x1c] sm:$0xf]
      %v180 = vld [vmem:[%s165 + $0x20] sm:$0xf]
      %v181 = vld [vmem:[%s1] sm:$0xf]
      %v182 = vld [vmem:[%s1 + $0x4] sm:$0xf]
      %v183 = vld [vmem:[%s1 + $0x8] sm:$0xf]
      %v184 = vld [vmem:[%s1 + $0xc] sm:$0xf]
      %v194 = vunpack.c.l.b16 %v172
      %v195 = vunpack.c.l.b16 %v173
      %v196 = vunpack.c.l.b16 %v174
      %v197 = vunpack.c.l.b16 %v175
      %v198 = vunpack.c.l.b16 %v176
      %v199 = vunpack.c.l.b16 %v177
      %v200 = vunpack.c.l.b16 %v178
      %v201 = vunpack.c.l.b16 %v179
      %v202 = vunpack.c.l.b16 %v180
      %v203 = vpack.c.b16 %v195, %v194
      %v204 = vpack.c.b16 %v197, %v196
      %v205 = vpack.c.b16 %v199, %v198
      %v206 = vpack.c.b16 %v201, %v200
      %v207 = vpack.c.b16 %v202, %v202
      %v212 = vunpack.c.l.b16 %v181
      %v213 = vunpack.c.l.b16 %v182
      %v214 = vunpack.c.l.b16 %v183
      %v215 = vunpack.c.l.b16 %v184
      %v216 = vpack.c.b16 %v213, %v212
      %v217 = vpack.c.b16 %v215, %v214
      %vm220 = vcmask 261120
      %v222 = vsel %vm220, %v203, 0
      %v225 = vsel %vm220, %v204, 0
      %v228 = vsel %vm220, %v205, 0
      %v231 = vsel %vm220, %v206, 0
      %v234 = vsel %vm220, %v207, 0
      %236 = vmatpush.bf16.msra.mxu0 0
      %237 = vmatpush.bf16.msra.mxu0 0
      %238 = vmatpush.bf16.msra.mxu0 0
      %239 = vmatpush.bf16.msra.mxu0 0
      %240 = vmatpush.bf16.msra.mxu0 0
      %241 = vmatpush.bf16.msra.mxu0 0
      %242 = vmatpush.bf16.msra.mxu0 %v217
      %243 = vmatpush.bf16.msra.mxu0 %v216
      %244 = vmatmul.bf16.gmra.mxu0 %v222
      %v245 = vpop.f32.mrf.mxu0
      %v246 = vadd.f32 0.0, %v245
      %v247 = vpop.f32.mrf.mxu0
      %v248 = vadd.f32 0.0, %v247
      %249 = vmatmul.bf16.gmra.mxu0 %v225
      %v250 = vpop.f32.mrf.mxu0
      %v251 = vadd.f32 0.0, %v250
      %v252 = vpop.f32.mrf.mxu0
      %v253 = vadd.f32 0.0, %v252
      %254 = vmatmul.bf16.gmra.mxu0 %v228
      %v255 = vpop.f32.mrf.mxu0
      %v256 = vadd.f32 0.0, %v255
      %v257 = vpop.f32.mrf.mxu0
      %v258 = vadd.f32 0.0, %v257
      %259 = vmatmul.bf16.gmra.mxu0 %v231
      %v260 = vpop.f32.mrf.mxu0
      %v261 = vadd.f32 0.0, %v260
      %v262 = vpop.f32.mrf.mxu0
      %v263 = vadd.f32 0.0, %v262
      %264 = vmatmul.bf16.gmra.mxu0 %v234
      %v265 = vpop.f32.mrf.mxu0
      %v266 = vadd.f32 0.0, %v265
      %v267 = vpop.f32.mrf.mxu0
      %268 = vdwg.mxu0
      %vm269 = vcmask 130048
      %270 = vst.msk [vmem:[#allocation2] sm:$0xff] %vm269, %v246
      %271 = vst.msk [vmem:[#allocation2 + $0x8] sm:$0xff] %vm269, %v248
      %272 = vst.msk [vmem:[#allocation2 + $0x10] sm:$0xff] %vm269, %v251
      %273 = vst.msk [vmem:[#allocation2 + $0x18] sm:$0xff] %vm269, %v253
      %274 = vst.msk [vmem:[#allocation2 + $0x20] sm:$0xff] %vm269, %v256
      %275 = vst.msk [vmem:[#allocation2 + $0x28] sm:$0xff] %vm269, %v258
      %276 = vst.msk [vmem:[#allocation2 + $0x30] sm:$0xff] %vm269, %v261
      %277 = vst.msk [vmem:[#allocation2 + $0x38] sm:$0xff] %vm269, %v263
      %278 = vst.msk [vmem:[#allocation2 + $0x40] sm:$0xff] %vm269, %v266
      %v279 = vld [vmem:[%s165] sm:$0xf]
      %v280 = vld [vmem:[%s165 + $0x4] sm:$0xf]
      %v281 = vld [vmem:[%s165 + $0x8] sm:$0xf]
      %v282 = vld [vmem:[%s165 + $0xc] sm:$0xf]
      %v283 = vld [vmem:[%s165 + $0x10] sm:$0xf]
      %v284 = vld [vmem:[%s165 + $0x14] sm:$0xf]
      %v285 = vld [vmem:[%s165 + $0x18] sm:$0xf]
      %v286 = vld [vmem:[%s165 + $0x1c] sm:$0xf]
      %v287 = vld [vmem:[%s165 + $0x20] sm:$0xf]
      %v288 = vld [vmem:[%s165 + $0x24] sm:$0x1]
      %s289 = scalar_lea.vmem %s1, 16
      %v290 = vld [vmem:[%s289] sm:$0xf]
      %v291 = vld [vmem:[%s289 + $0x4] sm:$0xf]
      %v292 = vld [vmem:[%s289 + $0x8] sm:$0xf]
      %v293 = vld [vmem:[%s289 + $0xc] sm:$0xf]
      %v304 = vunpack.c.l.b16 %v279
      %v305 = vunpack.c.l.b16 %v280
      %v306 = vunpack.c.l.b16 %v281
      %v307 = vunpack.c.l.b16 %v282
      %v308 = vunpack.c.l.b16 %v283
      %v309 = vunpack.c.l.b16 %v284
      %v310 = vunpack.c.l.b16 %v285
      %v311 = vunpack.c.l.b16 %v286
      %v312 = vunpack.c.l.b16 %v287
      %v313 = vunpack.c.l.b16 %v288
      %v314 = vpack.c.b16 %v305, %v304
      %v315 = vpack.c.b16 %v307, %v306
      %v316 = vpack.c.b16 %v309, %v308
      %v317 = vpack.c.b16 %v311, %v310
      %v318 = vpack.c.b16 %v313, %v312
      %vm319 = vsmask.f32 7424
      %v321 = vshrl.u32 %v314, 16
      %v323 = vshll.u32 %v314, 16
      %v325 = vrot.slane %v323, 1
      %v326 = vor.u32 %v321, %v325
      %v328 = vshll.u32 %v315, 16
      %v330 = vrot.slane %v328, 1
      %v331 = vsel %vm319, %v326, %v330
      %v332 = vshrl.u32 %v315, 16
      %v334 = vor.u32 %v332, %v330
      %v336 = vshll.u32 %v316, 16
      %v338 = vrot.slane %v336, 1
      %v339 = vsel %vm319, %v334, %v338
      %v340 = vshrl.u32 %v316, 16
      %v342 = vor.u32 %v340, %v338
      %v344 = vshll.u32 %v317, 16
      %v346 = vrot.slane %v344, 1
      %v347 = vsel %vm319, %v342, %v346
      %v348 = vshrl.u32 %v317, 16
      %v350 = vor.u32 %v348, %v346
      %v352 = vshll.u32 %v318, 16
      %v354 = vrot.slane %v352, 1
      %v355 = vsel %vm319, %v350, %v354
      %v356 = vshrl.u32 %v318, 16
      %v358 = vor.u32 %v356, %v354
      %v363 = vunpack.c.l.b16 %v290
      %v364 = vunpack.c.l.b16 %v291
      %v365 = vunpack.c.l.b16 %v292
      %v366 = vunpack.c.l.b16 %v293
      %v367 = vpack.c.b16 %v364, %v363
      %v368 = vpack.c.b16 %v366, %v365
      %v372 = vsel %vm220, %v331, 0
      %v375 = vsel %vm220, %v339, 0
      %v378 = vsel %vm220, %v347, 0
      %v381 = vsel %vm220, %v355, 0
      %v384 = vsel %vm220, %v358, 0
      %386 = vmatpush.bf16.msra.mxu0 0
      %387 = vmatpush.bf16.msra.mxu0 0
      %388 = vmatpush.bf16.msra.mxu0 0
      %389 = vmatpush.bf16.msra.mxu0 0
      %390 = vmatpush.bf16.msra.mxu0 0
      %391 = vmatpush.bf16.msra.mxu0 0
      %392 = vmatpush.bf16.msra.mxu0 %v368
      %393 = vmatpush.bf16.msra.mxu0 %v367
      %394 = vmatmul.bf16.gmra.mxu0 %v372
      %v395 = vpop.f32.mrf.mxu0
      %v396 = vadd.f32 0.0, %v395
      %v397 = vpop.f32.mrf.mxu0
      %v398 = vadd.f32 0.0, %v397
      %399 = vmatmul.bf16.gmra.mxu0 %v375
      %v400 = vpop.f32.mrf.mxu0
      %v401 = vadd.f32 0.0, %v400
      %v402 = vpop.f32.mrf.mxu0
      %v403 = vadd.f32 0.0, %v402
      %404 = vmatmul.bf16.gmra.mxu0 %v378
      %v405 = vpop.f32.mrf.mxu0
      %v406 = vadd.f32 0.0, %v405
      %v407 = vpop.f32.mrf.mxu0
      %v408 = vadd.f32 0.0, %v407
      %409 = vmatmul.bf16.gmra.mxu0 %v381
      %v410 = vpop.f32.mrf.mxu0
      %v411 = vadd.f32 0.0, %v410
      %v412 = vpop.f32.mrf.mxu0
      %v413 = vadd.f32 0.0, %v412
      %414 = vmatmul.bf16.gmra.mxu0 %v384
      %v415 = vpop.f32.mrf.mxu0
      %v416 = vadd.f32 0.0, %v415
      %v417 = vpop.f32.mrf.mxu0
      %418 = vdwg.mxu0
      %v419 = vld [vmem:[#allocation2] sm:$0xff]
      %v420 = vld [vmem:[#allocation2 + $0x8] sm:$0xff]
      %v421 = vld [vmem:[#allocation2 + $0x10] sm:$0xff]
      %v422 = vld [vmem:[#allocation2 + $0x18] sm:$0xff]
      %v423 = vld [vmem:[#allocation2 + $0x20] sm:$0xff]
      %v424 = vld [vmem:[#allocation2 + $0x28] sm:$0xff]
      %v425 = vld [vmem:[#allocation2 + $0x30] sm:$0xff]
      %v426 = vld [vmem:[#allocation2 + $0x38] sm:$0xff]
      %v427 = vld [vmem:[#allocation2 + $0x40] sm:$0xff]
      %v428 = vadd.f32 %v419, %v396
      %v429 = vadd.f32 %v420, %v398
      %v430 = vadd.f32 %v421, %v401
      %v431 = vadd.f32 %v422, %v403
      %v432 = vadd.f32 %v423, %v406
      %v433 = vadd.f32 %v424, %v408
      %v434 = vadd.f32 %v425, %v411
      %v435 = vadd.f32 %v426, %v413
      %v436 = vadd.f32 %v427, %v416
      %437 = vst.msk [vmem:[#allocation2] sm:$0xff] %vm269, %v428
      %438 = vst.msk [vmem:[#allocation2 + $0x8] sm:$0xff] %vm269, %v429
      %439 = vst.msk [vmem:[#allocation2 + $0x10] sm:$0xff] %vm269, %v430
      %440 = vst.msk [vmem:[#allocation2 + $0x18] sm:$0xff] %vm269, %v431
      %441 = vst.msk [vmem:[#allocation2 + $0x20] sm:$0xff] %vm269, %v432
      %442 = vst.msk [vmem:[#allocation2 + $0x28] sm:$0xff] %vm269, %v433
      %443 = vst.msk [vmem:[#allocation2 + $0x30] sm:$0xff] %vm269, %v434
      %444 = vst.msk [vmem:[#allocation2 + $0x38] sm:$0xff] %vm269, %v435
      %445 = vst.msk [vmem:[#allocation2 + $0x40] sm:$0xff] %vm269, %v436
      %v446 = vld [vmem:[%s165 + $0x4] sm:$0xf]
      %v447 = vld [vmem:[%s165 + $0x8] sm:$0xf]
      %v448 = vld [vmem:[%s165 + $0xc] sm:$0xf]
      %v449 = vld [vmem:[%s165 + $0x10] sm:$0xf]
      %v450 = vld [vmem:[%s165 + $0x14] sm:$0xf]
      %v451 = vld [vmem:[%s165 + $0x18] sm:$0xf]
      %v452 = vld [vmem:[%s165 + $0x1c] sm:$0xf]
      %v453 = vld [vmem:[%s165 + $0x20] sm:$0xf]
      %v454 = vld [vmem:[%s165 + $0x24] sm:$0xf]
      %v455 = vld [vmem:[%s165 + $0x28] sm:$0x1]
      %s456 = scalar_lea.vmem %s1, 32
      %v457 = vld [vmem:[%s456] sm:$0xf]
      %v458 = vld [vmem:[%s456 + $0x4] sm:$0xf]
      %v459 = vld [vmem:[%s456 + $0x8] sm:$0xf]
      %v460 = vld [vmem:[%s456 + $0xc] sm:$0xf]
      %v471 = vunpack.c.l.b16 %v446
      %v472 = vunpack.c.l.b16 %v447
      %v473 = vunpack.c.l.b16 %v448
      %v474 = vunpack.c.l.b16 %v449
      %v475 = vunpack.c.l.b16 %v450
      %v476 = vunpack.c.l.b16 %v451
      %v477 = vunpack.c.l.b16 %v452
      %v478 = vunpack.c.l.b16 %v453
      %v479 = vunpack.c.l.b16 %v454
      %v480 = vunpack.c.l.b16 %v455
      %v481 = vpack.c.b16 %v472, %v471
      %v482 = vpack.c.b16 %v474, %v473
      %v483 = vpack.c.b16 %v476, %v475
      %v484 = vpack.c.b16 %v478, %v477
      %v485 = vpack.c.b16 %v480, %v479
      %v487 = vshrl.u32 %v481, 16
      %v489 = vshll.u32 %v481, 16
      %v491 = vrot.slane %v489, 1
      %v492 = vor.u32 %v487, %v491
      %v494 = vshll.u32 %v482, 16
      %v496 = vrot.slane %v494, 1
      %v497 = vsel %vm319, %v492, %v496
      %v498 = vshrl.u32 %v482, 16
      %v500 = vor.u32 %v498, %v496
      %v502 = vshll.u32 %v483, 16
      %v504 = vrot.slane %v502, 1
      %v505 = vsel %vm319, %v500, %v504
      %v506 = vshrl.u32 %v483, 16
      %v508 = vor.u32 %v506, %v504
      %v510 = vshll.u32 %v484, 16
      %v512 = vrot.slane %v510, 1
      %v513 = vsel %vm319, %v508, %v512
      %v514 = vshrl.u32 %v484, 16
      %v516 = vor.u32 %v514, %v512
      %v518 = vshll.u32 %v485, 16
      %v520 = vrot.slane %v518, 1
      %v521 = vsel %vm319, %v516, %v520
      %v522 = vshrl.u32 %v485, 16
      %v524 = vor.u32 %v522, %v520
      %v529 = vunpack.c.l.b16 %v457
      %v530 = vunpack.c.l.b16 %v458
      %v531 = vunpack.c.l.b16 %v459
      %v532 = vunpack.c.l.b16 %v460
      %v533 = vpack.c.b16 %v530, %v529
      %v534 = vpack.c.b16 %v532, %v531
      %v538 = vsel %vm220, %v497, 0
      %v541 = vsel %vm220, %v505, 0
      %v544 = vsel %vm220, %v513, 0
      %v547 = vsel %vm220, %v521, 0
      %v550 = vsel %vm220, %v524, 0
      %552 = vmatpush.bf16.msra.mxu0 0
      %553 = vmatpush.bf16.msra.mxu0 0
      %554 = vmatpush.bf16.msra.mxu0 0
      %555 = vmatpush.bf16.msra.mxu0 0
      %556 = vmatpush.bf16.msra.mxu0 0
      %557 = vmatpush.bf16.msra.mxu0 0
      %558 = vmatpush.bf16.msra.mxu0 %v534
      %559 = vmatpush.bf16.msra.mxu0 %v533
      %560 = vmatmul.bf16.gmra.mxu0 %v538
      %v561 = vpop.f32.mrf.mxu0
      %v562 = vadd.f32 0.0, %v561
      %v563 = vpop.f32.mrf.mxu0
      %v564 = vadd.f32 0.0, %v563
      %565 = vmatmul.bf16.gmra.mxu0 %v541
      %v566 = vpop.f32.mrf.mxu0
      %v567 = vadd.f32 0.0, %v566
      %v568 = vpop.f32.mrf.mxu0
      %v569 = vadd.f32 0.0, %v568
      %570 = vmatmul.bf16.gmra.mxu0 %v544
      %v571 = vpop.f32.mrf.mxu0
      %v572 = vadd.f32 0.0, %v571
      %v573 = vpop.f32.mrf.mxu0
      %v574 = vadd.f32 0.0, %v573
      %575 = vmatmul.bf16.gmra.mxu0 %v547
      %v576 = vpop.f32.mrf.mxu0
      %v577 = vadd.f32 0.0, %v576
      %v578 = vpop.f32.mrf.mxu0
      %v579 = vadd.f32 0.0, %v578
      %580 = vmatmul.bf16.gmra.mxu0 %v550
      %v581 = vpop.f32.mrf.mxu0
      %v582 = vadd.f32 0.0, %v581
      %v583 = vpop.f32.mrf.mxu0
      %584 = vdwg.mxu0
      %v585 = vld [vmem:[#allocation2] sm:$0xff]
      %v586 = vld [vmem:[#allocation2 + $0x8] sm:$0xff]
      %v587 = vld [vmem:[#allocation2 + $0x10] sm:$0xff]
      %v588 = vld [vmem:[#allocation2 + $0x18] sm:$0xff]
      %v589 = vld [vmem:[#allocation2 + $0x20] sm:$0xff]
      %v590 = vld [vmem:[#allocation2 + $0x28] sm:$0xff]
      %v591 = vld [vmem:[#allocation2 + $0x30] sm:$0xff]
      %v592 = vld [vmem:[#allocation2 + $0x38] sm:$0xff]
      %v593 = vld [vmem:[#allocation2 + $0x40] sm:$0xff]
      %v594 = vadd.f32 %v585, %v562
      %v595 = vadd.f32 %v586, %v564
      %v596 = vadd.f32 %v587, %v567
      %v597 = vadd.f32 %v588, %v569
      %v598 = vadd.f32 %v589, %v572
      %v599 = vadd.f32 %v590, %v574
      %v600 = vadd.f32 %v591, %v577
      %v601 = vadd.f32 %v592, %v579
      %v602 = vadd.f32 %v593, %v582
      %603 = vst.msk [vmem:[#allocation2] sm:$0xff] %vm269, %v594
      %604 = vst.msk [vmem:[#allocation2 + $0x8] sm:$0xff] %vm269, %v595
      %605 = vst.msk [vmem:[#allocation2 + $0x10] sm:$0xff] %vm269, %v596
      %606 = vst.msk [vmem:[#allocation2 + $0x18] sm:$0xff] %vm269, %v597
      %607 = vst.msk [vmem:[#allocation2 + $0x20] sm:$0xff] %vm269, %v598
      %608 = vst.msk [vmem:[#allocation2 + $0x28] sm:$0xff] %vm269, %v599
      %609 = vst.msk [vmem:[#allocation2 + $0x30] sm:$0xff] %vm269, %v600
      %610 = vst.msk [vmem:[#allocation2 + $0x38] sm:$0xff] %vm269, %v601
      %611 = vst.msk [vmem:[#allocation2 + $0x40] sm:$0xff] %vm269, %v602
      %v612 = vld [vmem:[%s165 + $0x4] sm:$0xe]
      %v613 = vld [vmem:[%s165 + $0x8] sm:$0xf]
      %v614 = vld [vmem:[%s165 + $0xc] sm:$0xf]
      %v615 = vld [vmem:[%s165 + $0x10] sm:$0xf]
      %v616 = vld [vmem:[%s165 + $0x14] sm:$0xf]
      %v617 = vld [vmem:[%s165 + $0x18] sm:$0xf]
      %v618 = vld [vmem:[%s165 + $0x1c] sm:$0xf]
      %v619 = vld [vmem:[%s165 + $0x20] sm:$0xf]
      %v620 = vld [vmem:[%s165 + $0x24] sm:$0xf]
      %v621 = vld [vmem:[%s165 + $0x28] sm:$0x1]
      %s622 = scalar_lea.vmem %s1, 48
      %v623 = vld [vmem:[%s622] sm:$0xf]
      %v624 = vld [vmem:[%s622 + $0x4] sm:$0xf]
      %v625 = vld [vmem:[%s622 + $0x8] sm:$0xf]
      %v626 = vld [vmem:[%s622 + $0xc] sm:$0xf]
      %v637 = vunpack.c.l.b16 %v612
      %v638 = vunpack.c.l.b16 %v613
      %v639 = vunpack.c.l.b16 %v614
      %v640 = vunpack.c.l.b16 %v615
      %v641 = vunpack.c.l.b16 %v616
      %v642 = vunpack.c.l.b16 %v617
      %v643 = vunpack.c.l.b16 %v618
      %v644 = vunpack.c.l.b16 %v619
      %v645 = vunpack.c.l.b16 %v620
      %v646 = vunpack.c.l.b16 %v621
      %v647 = vpack.c.b16 %v638, %v637
      %v648 = vpack.c.b16 %v640, %v639
      %v649 = vpack.c.b16 %v642, %v641
      %v650 = vpack.c.b16 %v644, %v643
      %v651 = vpack.c.b16 %v646, %v645
      %vm652 = vcmask 1046528
      %v653 = vrot.slane %v647, 1
      %v654 = vrot.slane %v648, 1
      %v655 = vsel %vm652, %v653, %v654
      %v656 = vrot.slane %v649, 1
      %v657 = vsel %vm652, %v654, %v656
      %v658 = vrot.slane %v650, 1
      %v659 = vsel %vm652, %v656, %v658
      %v660 = vrot.slane %v651, 1
      %v661 = vsel %vm652, %v658, %v660
      %v666 = vunpack.c.l.b16 %v623
      %v667 = vunpack.c.l.b16 %v624
      %v668 = vunpack.c.l.b16 %v625
      %v669 = vunpack.c.l.b16 %v626
      %v670 = vpack.c.b16 %v667, %v666
      %v671 = vpack.c.b16 %v669, %v668
      %v675 = vsel %vm220, %v655, 0
      %v678 = vsel %vm220, %v657, 0
      %v681 = vsel %vm220, %v659, 0
      %v684 = vsel %vm220, %v661, 0
      %v687 = vsel %vm220, %v660, 0
      %689 = vmatpush.bf16.msra.mxu0 0
      %690 = vmatpush.bf16.msra.mxu0 0
      %691 = vmatpush.bf16.msra.mxu0 0
      %692 = vmatpush.bf16.msra.mxu0 0
      %693 = vmatpush.bf16.msra.mxu0 0
      %694 = vmatpush.bf16.msra.mxu0 0
      %695 = vmatpush.bf16.msra.mxu0 %v671
      %696 = vmatpush.bf16.msra.mxu0 %v670
      %697 = vmatmul.bf16.gmra.mxu0 %v675
      %v698 = vpop.f32.mrf.mxu0
      %v699 = vadd.f32 0.0, %v698
      %v700 = vpop.f32.mrf.mxu0
      %v701 = vadd.f32 0.0, %v700
      %702 = vmatmul.bf16.gmra.mxu0 %v678
      %v703 = vpop.f32.mrf.mxu0
      %v704 = vadd.f32 0.0, %v703
      %v705 = vpop.f32.mrf.mxu0
      %v706 = vadd.f32 0.0, %v705
      %707 = vmatmul.bf16.gmra.mxu0 %v681
      %v708 = vpop.f32.mrf.mxu0
      %v709 = vadd.f32 0.0, %v708
      %v710 = vpop.f32.mrf.mxu0
      %v711 = vadd.f32 0.0, %v710
      %712 = vmatmul.bf16.gmra.mxu0 %v684
      %v713 = vpop.f32.mrf.mxu0
      %v714 = vadd.f32 0.0, %v713
      %v715 = vpop.f32.mrf.mxu0
      %v716 = vadd.f32 0.0, %v715
      %717 = vmatmul.bf16.gmra.mxu0 %v687
      %v718 = vpop.f32.mrf.mxu0
      %v719 = vadd.f32 0.0, %v718
      %v720 = vpop.f32.mrf.mxu0
      %721 = vdwg.mxu0
      %v722 = vld [vmem:[#allocation2] sm:$0xff]
      %v723 = vld [vmem:[#allocation2 + $0x8] sm:$0xff]
      %v724 = vld [vmem:[#allocation2 + $0x10] sm:$0xff]
      %v725 = vld [vmem:[#allocation2 + $0x18] sm:$0xff]
      %v726 = vld [vmem:[#allocation2 + $0x20] sm:$0xff]
      %v727 = vld [vmem:[#allocation2 + $0x28] sm:$0xff]
      %v728 = vld [vmem:[#allocation2 + $0x30] sm:$0xff]
      %v729 = vld [vmem:[#allocation2 + $0x38] sm:$0xff]
      %v730 = vld [vmem:[#allocation2 + $0x40] sm:$0xff]
      %v731 = vadd.f32 %v722, %v699
      %v732 = vadd.f32 %v723, %v701
      %v733 = vadd.f32 %v724, %v704
      %v734 = vadd.f32 %v725, %v706
      %v735 = vadd.f32 %v726, %v709
      %v736 = vadd.f32 %v727, %v711
      %v737 = vadd.f32 %v728, %v714
      %v738 = vadd.f32 %v729, %v716
      %v739 = vadd.f32 %v730, %v719
      %740 = vst.msk [vmem:[#allocation2] sm:$0xff] %vm269, %v731
      %741 = vst.msk [vmem:[#allocation2 + $0x8] sm:$0xff] %vm269, %v732
      %742 = vst.msk [vmem:[#allocation2 + $0x10] sm:$0xff] %vm269, %v733
      %743 = vst.msk [vmem:[#allocation2 + $0x18] sm:$0xff] %vm269, %v734
      %744 = vst.msk [vmem:[#allocation2 + $0x20] sm:$0xff] %vm269, %v735
      %745 = vst.msk [vmem:[#allocation2 + $0x28] sm:$0xff] %vm269, %v736
      %746 = vst.msk [vmem:[#allocation2 + $0x30] sm:$0xff] %vm269, %v737
      %747 = vst.msk [vmem:[#allocation2 + $0x38] sm:$0xff] %vm269, %v738
      %748 = vst.msk [vmem:[#allocation2 + $0x40] sm:$0xff] %vm269, %v739
      %v749 = vld [vmem:[#allocation2] sm:$0xff]
      %v750 = vld [vmem:[#allocation2 + $0x8] sm:$0xff]
      %v751 = vld [vmem:[#allocation2 + $0x10] sm:$0xff]
      %v752 = vld [vmem:[#allocation2 + $0x18] sm:$0xff]
      %v753 = vld [vmem:[#allocation2 + $0x20] sm:$0xff]
      %v754 = vld [vmem:[#allocation2 + $0x28] sm:$0xff]
      %v755 = vld [vmem:[#allocation2 + $0x30] sm:$0xff]
      %v756 = vld [vmem:[#allocation2 + $0x38] sm:$0xff]
      %v757 = vld [vmem:[#allocation2 + $0x40] sm:$0xff]
      %v758 = vld [vmem:[%s2] sm:$0xff]
      %v759 = vld [vmem:[%s2 + $0x8] sm:$0xff]
      %v760 = vld [vmem:[%s2 + $0x10] sm:$0xff]
      %v761 = vld [vmem:[%s2 + $0x18] sm:$0xff]
      %v762 = vld [vmem:[%s2 + $0x20] sm:$0xff]
      %v763 = vld [vmem:[%s2 + $0x28] sm:$0xff]
      %v764 = vld [vmem:[%s2 + $0x30] sm:$0xff]
      %v765 = vld [vmem:[%s2 + $0x38] sm:$0xff]
      %v766 = vld [vmem:[%s2 + $0x40] sm:$0xff]
      %768 = vset.pattern.permute.xlu0 0
      %769 = vperm.xlu0 %768, %v758
      %v770 = vpop.permute.xlu0 %769
      %773 = vset.pattern.permute.xlu0 0
      %774 = vperm.xlu0 %773, %v759
      %v775 = vpop.permute.xlu0 %774
      %778 = vset.pattern.permute.xlu0 0
      %779 = vperm.xlu0 %778, %v760
      %v780 = vpop.permute.xlu0 %779
      %783 = vset.pattern.permute.xlu0 0
      %784 = vperm.xlu0 %783, %v761
      %v785 = vpop.permute.xlu0 %784
      %788 = vset.pattern.permute.xlu0 0
      %789 = vperm.xlu0 %788, %v762
      %v790 = vpop.permute.xlu0 %789
      %793 = vset.pattern.permute.xlu0 0
      %794 = vperm.xlu0 %793, %v763
      %v795 = vpop.permute.xlu0 %794
      %798 = vset.pattern.permute.xlu0 0
      %799 = vperm.xlu0 %798, %v764
      %v800 = vpop.permute.xlu0 %799
      %803 = vset.pattern.permute.xlu0 0
      %804 = vperm.xlu0 %803, %v765
      %v805 = vpop.permute.xlu0 %804
      %808 = vset.pattern.permute.xlu0 0
      %809 = vperm.xlu0 %808, %v766
      %v810 = vpop.permute.xlu0 %809
      %v812 = vmul.f32 %v749, %v770
      %v813 = vmul.f32 %v750, %v775
      %v814 = vmul.f32 %v751, %v780
      %v815 = vmul.f32 %v752, %v785
      %v816 = vmul.f32 %v753, %v790
      %v817 = vmul.f32 %v754, %v795
      %v818 = vmul.f32 %v755, %v800
      %v819 = vmul.f32 %v756, %v805
      %v820 = vmul.f32 %v757, %v810
      %v821 = vsel %vm269, %v812, 0.0
      %v822 = vsel %vm269, %v813, 0.0
      %v823 = vadd.f32 %v821, %v822
      %v824 = vsel %vm269, %v814, 0.0
      %v825 = vadd.f32 %v823, %v824
      %v826 = vsel %vm269, %v815, 0.0
      %v827 = vadd.f32 %v825, %v826
      %v828 = vsel %vm269, %v816, 0.0
      %v829 = vadd.f32 %v827, %v828
      %v830 = vsel %vm269, %v817, 0.0
      %v831 = vadd.f32 %v829, %v830
      %v832 = vsel %vm269, %v818, 0.0
      %v833 = vadd.f32 %v831, %v832
      %v834 = vsel %vm269, %v819, 0.0
      %v835 = vadd.f32 %v833, %v834
      %v836 = vsel %vm269, %v820, 0.0
      %v837 = vadd.f32 %v835, %v836
      %v838 = vrot.slane %v837, 4
      %v839 = vadd.f32 %v837, %v838
      %v840 = vrot.slane %v839, 2
      %v841 = vadd.f32 %v839, %v840
      %v842 = vrot.slane %v841, 1
      %v843 = vadd.f32 %v841, %v842
      %v844 = vmul.f32 %v812, %v812
      %v845 = vmul.f32 %v813, %v813
      %v846 = vmul.f32 %v814, %v814
      %v847 = vmul.f32 %v815, %v815
      %v848 = vmul.f32 %v816, %v816
      %v849 = vmul.f32 %v817, %v817
      %v850 = vmul.f32 %v818, %v818
      %v851 = vmul.f32 %v819, %v819
      %v852 = vmul.f32 %v820, %v820
      %v853 = vsel %vm269, %v844, 0.0
      %v854 = vsel %vm269, %v845, 0.0
      %v855 = vadd.f32 %v853, %v854
      %v856 = vsel %vm269, %v846, 0.0
      %v857 = vadd.f32 %v855, %v856
      %v858 = vsel %vm269, %v847, 0.0
      %v859 = vadd.f32 %v857, %v858
      %v860 = vsel %vm269, %v848, 0.0
      %v861 = vadd.f32 %v859, %v860
      %v862 = vsel %vm269, %v849, 0.0
      %v863 = vadd.f32 %v861, %v862
      %v864 = vsel %vm269, %v850, 0.0
      %v865 = vadd.f32 %v863, %v864
      %v866 = vsel %vm269, %v851, 0.0
      %v867 = vadd.f32 %v865, %v866
      %v868 = vsel %vm269, %v852, 0.0
      %v869 = vadd.f32 %v867, %v868
      %v870 = vrot.slane %v869, 4
      %v871 = vadd.f32 %v869, %v870
      %v872 = vrot.slane %v871, 2
      %v873 = vadd.f32 %v871, %v872
      %v874 = vrot.slane %v873, 1
      %v875 = vadd.f32 %v873, %v874
      %v876 = vmul.f32 %v843, 0.015625
      %v877 = vmul.f32 %v875, 0.015625
      %v878 = vmul.f32 %v876, %v876
      %v879 = vsub.f32 %v877, %v878
      %v880 = vmax.f32 %v879, 0.0
      %v881 = vsub.f32 %v812, %v876
      %v882 = vsub.f32 %v813, %v876
      %v883 = vsub.f32 %v814, %v876
      %v884 = vsub.f32 %v815, %v876
      %v885 = vsub.f32 %v816, %v876
      %v886 = vsub.f32 %v817, %v876
      %v887 = vsub.f32 %v818, %v876
      %v888 = vsub.f32 %v819, %v876
      %v889 = vsub.f32 %v820, %v876
      %v890 = vadd.f32 %v880, 1e-05
      %v891 = vrsqrt.pop %v890
      %v892 = vmul.f32 %v891, %v890
      %v893 = vmul.f32 %v892, %v891
      %v894 = vmul.f32 0.5, %v893
      %v895 = vsub.f32 1.5, %v894
      %v896 = vmul.f32 %v891, %v895
      %vm897 = vweird.f32 %v890
      %vm898 = vweird.f32 %v891
      %vm899 = vmor %vm897, %vm898
      %v900 = vsel %vm899, %v891, %v896
      %v901 = vmul.f32 %v881, %v900
      %v902 = vmul.f32 %v882, %v900
      %v903 = vmul.f32 %v883, %v900
      %v904 = vmul.f32 %v884, %v900
      %v905 = vmul.f32 %v885, %v900
      %v906 = vmul.f32 %v886, %v900
      %v907 = vmul.f32 %v887, %v900
      %v908 = vmul.f32 %v888, %v900
      %v909 = vmul.f32 %v889, %v900
      %vm910 = vcmp.ge.f32.partialorder %v901, 0.0
      %vm911 = vcmp.ge.f32.partialorder %v902, 0.0
      %vm912 = vcmp.ge.f32.partialorder %v903, 0.0
      %vm913 = vcmp.ge.f32.partialorder %v904, 0.0
      %vm914 = vcmp.ge.f32.partialorder %v905, 0.0
      %vm915 = vcmp.ge.f32.partialorder %v906, 0.0
      %vm916 = vcmp.ge.f32.partialorder %v907, 0.0
      %vm917 = vcmp.ge.f32.partialorder %v908, 0.0
      %vm918 = vcmp.ge.f32.partialorder %v909, 0.0
      %v919 = vmul.f32 %v901, 0.2
      %v920 = vmul.f32 %v902, 0.2
      %v921 = vmul.f32 %v903, 0.2
      %v922 = vmul.f32 %v904, 0.2
      %v923 = vmul.f32 %v905, 0.2
      %v924 = vmul.f32 %v906, 0.2
      %v925 = vmul.f32 %v907, 0.2
      %v926 = vmul.f32 %v908, 0.2
      %v927 = vmul.f32 %v909, 0.2
      %v928 = vsel %vm910, %v901, %v919
      %v929 = vsel %vm911, %v902, %v920
      %v930 = vsel %vm912, %v903, %v921
      %v931 = vsel %vm913, %v904, %v922
      %v932 = vsel %vm914, %v905, %v923
      %v933 = vsel %vm915, %v906, %v924
      %v934 = vsel %vm916, %v907, %v925
      %v935 = vsel %vm917, %v908, %v926
      %v936 = vsel %vm918, %v909, %v927
      %v937 = vpack.c.bf16 %v928, %v928
      %v938 = vpack.c.bf16 %v929, %v929
      %v939 = vpack.c.bf16 %v930, %v930
      %v940 = vpack.c.bf16 %v931, %v931
      %v941 = vpack.c.bf16 %v932, %v932
      %v942 = vpack.c.bf16 %v933, %v933
      %v943 = vpack.c.bf16 %v934, %v934
      %v944 = vpack.c.bf16 %v935, %v935
      %v945 = vpack.c.bf16 %v936, %v936
      %vm946 = vcmask 125952
      %947 = vst.msk [vmem:[%s170] sm:$0xf] %vm946, %v937
      %948 = vst.msk [vmem:[%s170 + $0x4] sm:$0xf] %vm946, %v938
      %949 = vst.msk [vmem:[%s170 + $0x8] sm:$0xf] %vm946, %v939
      %950 = vst.msk [vmem:[%s170 + $0xc] sm:$0xf] %vm946, %v940
      %951 = vst.msk [vmem:[%s170 + $0x10] sm:$0xf] %vm946, %v941
      %952 = vst.msk [vmem:[%s170 + $0x14] sm:$0xf] %vm946, %v942
      %953 = vst.msk [vmem:[%s170 + $0x18] sm:$0xf] %vm946, %v943
      %954 = vst.msk [vmem:[%s170 + $0x1c] sm:$0xf] %vm946, %v944
      %955 = vst.msk [vmem:[%s170 + $0x20] sm:$0xf] %vm946, %v945
      %p956 = scmp.lt.s32.totalorder %s14, 1
      %s957 = scalar_select %p956, %s14, 1
      %s958 = smul.addr %s957, 9
      %s959 = smul.addr %s958, 4
      %s960 = scalar_lea.vmem %s3, %s959
      // Predicated region
      $region33: #{_lambda_.6} parent=31 // pred_check
        %p961 = pneg %p100
      $region34: #{_lambda_.6} parent=31 // pred_check_branch
        %963 = sbr.rel (%p961) target = $region36
      $region35: #{_lambda_.6} parent=31 // pred_region
        _
      $region36: #{_lambda_.6} parent=31 // pred_fallthru
        _
    $region32: #{_lambda_.6} parent=5 // pred_fallthru
      _
    %p964 = scmp.le.s32.totalorder 2, %s9
    // Predicated region
    $region37: #{_lambda_.6} parent=5 // pred_check
      %p965 = pneg %p964
    $region38: #{_lambda_.6} parent=5 // pred_check_branch
      %967 = sbr.rel (%p965) target = $region40
    $region39: #{_lambda_.6} parent=5 // pred_region
      %s968 = ssub.s32 %s9, 2
      // Predicated region
      $region41: #{_lambda_.6} parent=39 // pred_check
        %p969 = pneg %p106
      $region42: #{_lambda_.6} parent=39 // pred_check_branch
        %971 = sbr.rel (%p969) target = $region44
      $region43: #{_lambda_.6} parent=39 // pred_region
        %p972 = scmp.lt.s32.totalorder %s15, 1
        %s973 = scalar_select %p972, %s15, 1
        %s974 = smul.addr %s973, 9
        %s975 = smul.addr %s974, 4
        %s976 = scalar_lea.vmem %s3, %s975
      $region44: #{_lambda_.6} parent=39 // pred_fallthru
        _
    $region40: #{_lambda_.6} parent=5 // pred_fallthru
      _
  $region6: #{_lambda_.6} parent=0 // loop_footer
    %s13 = sadd.s32 1, %s9
  $region7: #{_lambda_.6} parent=0 // loop_footer_branch
    %8 = sbr.rel target = $region3
  $region8: #{_lambda_.6} parent=0 // loop_exit
    _

// kernel: _lambda_.7
$region0: #{_lambda_.7}
  #allocation0 [shape = 'u32[]', space=smem, size = 0x4, offset = 0x4, fixed_abs, tag = 'smem constant byte address 0x4 - core index']
  #allocation1 [shape = 'u32[72,128]{1,0:T(1,128)}', space=vmem, size = 0x9000, scoped, tag = 'internal scratch']
  #allocation2 [shape = 'f32[20,32]{1,0:T(8,128)}', space=vmem, size = 0x3000, scoped, tag = 'scratch operand']
  %s0 = inlined_call_operand.vmem [shape: bf16[2,32,64], index: 0, kind: input, shape index: {}]
  %s1 = inlined_call_operand.vmem [shape: bf16[4,64,32], index: 1, kind: input, shape index: {}]
  %s2 = inlined_call_operand.vmem [shape: f32[20,1], index: 2, kind: input, shape index: {}]
  %s3 = inlined_call_operand.vmem [shape: bf16[2,20,32], index: 3, kind: output, shape index: {}]
  %s4 = sld [smem:[#allocation0]]
  $region45: #{_lambda_.7} parent=0
    _
  %s6 = ssub.s32 1, %s4
  %s7 = scalar_select 0, %s6, %s4
  loop: start=0, step=1, limit=4
  $region2: #{_lambda_.7} parent=0 // loop_pre_header
    _
  $region3: #{_lambda_.7} parent=0 // loop_header
    %s9 = sphi 0, %s13
    %p10 = scmp.ge.s32.totalorder %s9, 4
    %s19 = sphi 0, %s21
    %s22 = sphi 0, %s19
    %s23 = sphi 0, %s22
    %s39 = sphi 0, %s23
    %s43 = sphi 0, %s43
    %s45 = sphi 0, %s43
    %s46 = sphi 0, %s45
    %s60 = sphi 0, %s46
    %s64 = sphi 0, %s64
    %s66 = sphi 0, %s64
    %s67 = sphi 0, %s66
    %s81 = sphi 0, %s67
    %s87 = sphi 0, %s89
    %s90 = sphi 0, %s87
    %s91 = sphi 0, %s90
    %s107 = sphi 0, %s91
  $region4: #{_lambda_.7} parent=0 // loop_header_branch
    %12 = sbr.rel (%p10) target = $region8
  $region5: #{_lambda_.7} parent=0 // loop_body
    %s14 = ssub.s32 %s9, 1
    %s15 = ssub.s32 %s9, 2
    %s16 = sadd.s32 %s9, 1
    %s17 = ssub.s32 %s9, %s16
    %p18 = scmp.eq.s32.totalorder %s17, 0
    %s20 = sadd.s32 %s19, 1
    %s21 = scalar_select %p18, %s19, %s20
    %p24 = pneg %p18
    %p25 = scmp.eq.s32.totalorder %s9, 1
    %p26 = por %p24, %p25
    %p27 = scmp.ne.s32.totalorder %s19, %s22
    %p28 = scmp.eq.s32.totalorder %s9, 0
    %p29 = por %p27, %p28
    %p30 = scmp.ne.s32.totalorder %s19, %s22
    %p31 = scmp.eq.s32.totalorder %s14, 1
    %p32 = por %p30, %p31
    %p33 = scmp.ne.s32.totalorder %s22, %s23
    %p34 = scmp.eq.s32.totalorder %s14, 0
    %p35 = por %p33, %p34
    %p36 = scmp.ne.s32.totalorder %s22, %s23
    %p37 = scmp.eq.s32.totalorder %s15, 1
    %p38 = por %p36, %p37
    %p40 = scmp.ne.s32.totalorder %s23, %s39
    %p41 = scmp.eq.s32.totalorder %s15, 0
    %p42 = por %p40, %p41
    %s44 = sadd.s32 %s43, 1
    %p47 = scmp.eq.s32.totalorder %s9, 1
    %p48 = scmp.ne.s32.totalorder %s43, %s45
    %p49 = scmp.eq.s32.totalorder %s9, 0
    %p50 = por %p48, %p49
    %p51 = scmp.ne.s32.totalorder %s43, %s45
    %p52 = scmp.eq.s32.totalorder %s14, 1
    %p53 = por %p51, %p52
    %p54 = scmp.ne.s32.totalorder %s45, %s46
    %p55 = scmp.eq.s32.totalorder %s14, 0
    %p56 = por %p54, %p55
    %p57 = scmp.ne.s32.totalorder %s45, %s46
    %p58 = scmp.eq.s32.totalorder %s15, 1
    %p59 = por %p57, %p58
    %p61 = scmp.ne.s32.totalorder %s46, %s60
    %p62 = scmp.eq.s32.totalorder %s15, 0
    %p63 = por %p61, %p62
    %s65 = sadd.s32 %s64, 1
    %p68 = scmp.eq.s32.totalorder %s9, 1
    %p69 = scmp.ne.s32.totalorder %s64, %s66
    %p70 = scmp.eq.s32.totalorder %s9, 0
    %p71 = por %p69, %p70
    %p72 = scmp.ne.s32.totalorder %s64, %s66
    %p73 = scmp.eq.s32.totalorder %s14, 1
    %p74 = por %p72, %p73
    %p75 = scmp.ne.s32.totalorder %s66, %s67
    %p76 = scmp.eq.s32.totalorder %s14, 0
    %p77 = por %p75, %p76
    %p78 = scmp.ne.s32.totalorder %s66, %s67
    %p79 = scmp.eq.s32.totalorder %s15, 1
    %p80 = por %p78, %p79
    %p82 = scmp.ne.s32.totalorder %s67, %s81
    %p83 = scmp.eq.s32.totalorder %s15, 0
    %p84 = por %p82, %p83
    %s85 = ssub.s32 %s9, %s16
    %p86 = scmp.eq.s32.totalorder %s85, 0
    %s88 = sadd.s32 %s87, 1
    %s89 = scalar_select %p86, %s87, %s88
    %p92 = pneg %p86
    %p93 = scmp.eq.s32.totalorder %s9, 1
    %p94 = por %p92, %p93
    %p95 = scmp.ne.s32.totalorder %s87, %s90
    %p96 = scmp.eq.s32.totalorder %s9, 0
    %p97 = por %p95, %p96
    %p98 = scmp.ne.s32.totalorder %s87, %s90
    %p99 = scmp.eq.s32.totalorder %s14, 1
    %p100 = por %p98, %p99
    %p101 = scmp.ne.s32.totalorder %s90, %s91
    %p102 = scmp.eq.s32.totalorder %s14, 0
    %p103 = por %p101, %p102
    %p104 = scmp.ne.s32.totalorder %s90, %s91
    %p105 = scmp.eq.s32.totalorder %s15, 1
    %p106 = por %p104, %p105
    %p108 = scmp.ne.s32.totalorder %s91, %s107
    %p109 = scmp.eq.s32.totalorder %s15, 0
    %p110 = por %p108, %p109
    %p111 = scmp.le.s32.totalorder 1, %s9
    %p112 = scmp.lt.s32.totalorder %s9, 3
    %p113 = pnand %p111, %p112
    %p114 = pneg %p113
    // Predicated region
    $region9: #{_lambda_.7} parent=5 // pred_check
      _
    $region10: #{_lambda_.7} parent=5 // pred_check_branch
      %116 = sbr.rel (%p113) target = $region12
    $region11: #{_lambda_.7} parent=5 // pred_region
      %s117 = ssub.s32 %s9, 1
      // Predicated region
      $region13: #{_lambda_.7} parent=11 // pred_check
        %p118 = pneg %p56
      $region14: #{_lambda_.7} parent=11 // pred_check_branch
        %120 = sbr.rel (%p118) target = $region16
      $region15: #{_lambda_.7} parent=11 // pred_region
        _
      $region16: #{_lambda_.7} parent=11 // pred_fallthru
        _
      // Predicated region
      $region17: #{_lambda_.7} parent=11 // pred_check
        %p121 = pneg %p77
      $region18: #{_lambda_.7} parent=11 // pred_check_branch
        %123 = sbr.rel (%p121) target = $region20
      $region19: #{_lambda_.7} parent=11 // pred_region
        _
      $region20: #{_lambda_.7} parent=11 // pred_fallthru
        _
    $region12: #{_lambda_.7} parent=5 // pred_fallthru
      _
    %p124 = scmp.lt.s32.totalorder %s9, 2
    // Predicated region
    $region21: #{_lambda_.7} parent=5 // pred_check
      %p125 = pneg %p124
    $region22: #{_lambda_.7} parent=5 // pred_check_branch
      %127 = sbr.rel (%p125) target = $region24
    $region23: #{_lambda_.7} parent=5 // pred_region
      // Predicated region
      $region25: #{_lambda_.7} parent=23 // pred_check
        %p128 = pneg %p29
      $region26: #{_lambda_.7} parent=23 // pred_check_branch
        %130 = sbr.rel (%p128) target = $region28
      $region27: #{_lambda_.7} parent=23 // pred_region
        %p131 = scmp.lt.s32.totalorder %s9, 1
        %s132 = scalar_select %p131, %s9, 1
        %s133 = smul.addr %s132, 4
        %s134 = smul.addr %s133, 4
        %s135 = scalar_lea.vmem %s0, %s134
      $region28: #{_lambda_.7} parent=23 // pred_fallthru
        _
    $region24: #{_lambda_.7} parent=5 // pred_fallthru
      _
    %p136 = scmp.le.s32.totalorder 1, %s9
    %p137 = scmp.lt.s32.totalorder %s9, 3
    %p138 = pnand %p136, %p137
    %p139 = pneg %p138
    // Predicated region
    $region29: #{_lambda_.7} parent=5 // pred_check
      _
    $region30: #{_lambda_.7} parent=5 // pred_check_branch
      %141 = sbr.rel (%p138) target = $region32
    $region31: #{_lambda_.7} parent=5 // pred_region
      %s142 = ssub.s32 %s9, 1
      %p143 = scmp.lt.s32.totalorder %s14, 1
      %s144 = scalar_select %p143, %s14, 1
      %s145 = smul.addr %s144, 4
      %s146 = smul.addr %s145, 4
      %s147 = scalar_lea.vmem %s0, %s146
      %p148 = pneg %p35
      %p149 = pneg %p32
      %p150 = pneg %p56
      %p151 = pneg %p53
      %p152 = pneg %p77
      %p153 = pneg %p74
      %p154 = pneg %p103
      %p155 = pneg %p100
      %p156 = scmp.lt.s32.totalorder %s14, 1
      %s157 = scalar_select %p156, %s14, 1
      %s158 = smul.addr %s157, 3
      %s159 = smul.addr %s158, 4
      %s160 = scalar_lea.vmem %s3, %s159
      %p161 = scmp.lt.s32.totalorder %s14, 1
      %s162 = scalar_select %p161, %s14, 1
      %s163 = smul.addr %s162, 4
      %s164 = smul.addr %s163, 4
      %s165 = scalar_lea.vmem %s0, %s164
      %p166 = scmp.lt.s32.totalorder %s14, 1
      %s167 = scalar_select %p166, %s14, 1
      %s168 = smul.addr %s167, 3
      %s169 = smul.addr %s168, 4
      %s170 = scalar_lea.vmem %s3, %s169
      %v172 = vld [vmem:[%s165] sm:$0xf]
      %v173 = vld [vmem:[%s165 + $0x4] sm:$0xf]
      %v174 = vld [vmem:[%s165 + $0x8] sm:$0x3]
      %v175 = vld [vmem:[%s1] sm:$0xf]
      %v176 = vld [vmem:[%s1 + $0x4] sm:$0xf]
      %v177 = vld [vmem:[%s1 + $0x8] sm:$0xf]
      %v178 = vld [vmem:[%s1 + $0xc] sm:$0xf]
      %v179 = vld [vmem:[%s1 + $0x10] sm:$0xf]
      %v180 = vld [vmem:[%s1 + $0x14] sm:$0xf]
      %v181 = vld [vmem:[%s1 + $0x18] sm:$0xf]
      %v182 = vld [vmem:[%s1 + $0x1c] sm:$0xf]
      %v186 = vunpack.c.l.b16 %v172
      %v187 = vunpack.c.l.b16 %v173
      %v188 = vunpack.c.l.b16 %v174
      %v189 = vpack.c.b16 %v187, %v186
      %v190 = vpack.c.b16 %v188, %v188
      %v199 = vunpack.c.l.b16 %v175
      %v200 = vunpack.c.l.b16 %v176
      %v201 = vunpack.c.l.b16 %v177
      %v202 = vunpack.c.l.b16 %v178
      %v203 = vunpack.c.l.b16 %v179
      %v204 = vunpack.c.l.b16 %v180
      %v205 = vunpack.c.l.b16 %v181
      %v206 = vunpack.c.l.b16 %v182
      %v207 = vpack.c.b16 %v200, %v199
      %v208 = vpack.c.b16 %v202, %v201
      %v209 = vpack.c.b16 %v204, %v203
      %v210 = vpack.c.b16 %v206, %v205
      %vm215 = vcmask 523264
      %v217 = vsel %vm215, %v189, 0
      %v220 = vsel %vm215, %v190, 0
      %222 = vmatpush.bf16.msra.mxu0 0
      %223 = vmatpush.bf16.msra.mxu0 0
      %224 = vmatpush.bf16.msra.mxu0 0
      %225 = vmatpush.bf16.msra.mxu0 0
      %226 = vmatpush.bf16.msra.mxu0 %v210
      %227 = vmatpush.bf16.msra.mxu0 %v209
      %228 = vmatpush.bf16.msra.mxu0 %v208
      %229 = vmatpush.bf16.msra.mxu0 %v207
      %230 = vmatmul.bf16.gmra.mxu0 %v217
      %v231 = vpop.f32.mrf.mxu0
      %v232 = vadd.f32 0.0, %v231
      %v233 = vpop.f32.mrf.mxu0
      %v234 = vadd.f32 0.0, %v233
      %235 = vmatmul.bf16.gmra.mxu0 %v220
      %v236 = vpop.f32.mrf.mxu0
      %v237 = vadd.f32 0.0, %v236
      %v238 = vpop.f32.mrf.mxu0
      %239 = vdwg.mxu0
      %vm240 = vcmask 261120
      %241 = vst.msk [vmem:[#allocation2] sm:$0xff] %vm240, %v232
      %242 = vst.msk [vmem:[#allocation2 + $0x8] sm:$0xff] %vm240, %v234
      %vm243 = vcmask 257024
      %244 = vst.msk [vmem:[#allocation2 + $0x10] sm:$0xf] %vm243, %v237
      %v245 = vld [vmem:[%s165] sm:$0xf]
      %v246 = vld [vmem:[%s165 + $0x4] sm:$0xf]
      %v247 = vld [vmem:[%s165 + $0x8] sm:$0x7]
      %s248 = scalar_lea.vmem %s1, 32
      %v249 = vld [vmem:[%s248] sm:$0xf]
      %v250 = vld [vmem:[%s248 + $0x4] sm:$0xf]
      %v251 = vld [vmem:[%s248 + $0x8] sm:$0xf]
      %v252 = vld [vmem:[%s248 + $0xc] sm:$0xf]
      %v253 = vld [vmem:[%s248 + $0x10] sm:$0xf]
      %v254 = vld [vmem:[%s248 + $0x14] sm:$0xf]
      %v255 = vld [vmem:[%s248 + $0x18] sm:$0xf]
      %v256 = vld [vmem:[%s248 + $0x1c] sm:$0xf]
      %v260 = vunpack.c.l.b16 %v245
      %v261 = vunpack.c.l.b16 %v246
      %v262 = vunpack.c.l.b16 %v247
      %v263 = vpack.c.b16 %v261, %v260
      %v264 = vpack.c.b16 %v262, %v262
      %vm265 = vsmask.f32 7424
      %v267 = vshrl.u32 %v263, 16
      %v269 = vshll.u32 %v263, 16
      %v271 = vrot.slane %v269, 1
      %v272 = vor.u32 %v267, %v271
      %v274 = vshll.u32 %v264, 16
      %v276 = vrot.slane %v274, 1
      %v277 = vsel %vm265, %v272, %v276
      %v278 = vshrl.u32 %v264, 16
      %v280 = vor.u32 %v278, %v276
      %v289 = vunpack.c.l.b16 %v249
      %v290 = vunpack.c.l.b16 %v250
      %v291 = vunpack.c.l.b16 %v251
      %v292 = vunpack.c.l.b16 %v252
      %v293 = vunpack.c.l.b16 %v253
      %v294 = vunpack.c.l.b16 %v254
      %v295 = vunpack.c.l.b16 %v255
      %v296 = vunpack.c.l.b16 %v256
      %v297 = vpack.c.b16 %v290, %v289
      %v298 = vpack.c.b16 %v292, %v291
      %v299 = vpack.c.b16 %v294, %v293
      %v300 = vpack.c.b16 %v296, %v295
      %v306 = vsel %vm215, %v277, 0
      %v309 = vsel %vm215, %v280, 0
      %311 = vmatpush.bf16.msra.mxu0 0
      %312 = vmatpush.bf16.msra.mxu0 0
      %313 = vmatpush.bf16.msra.mxu0 0
      %314 = vmatpush.bf16.msra.mxu0 0
      %315 = vmatpush.bf16.msra.mxu0 %v300
      %316 = vmatpush.bf16.msra.mxu0 %v299
      %317 = vmatpush.bf16.msra.mxu0 %v298
      %318 = vmatpush.bf16.msra.mxu0 %v297
      %319 = vmatmul.bf16.gmra.mxu0 %v306
      %v320 = vpop.f32.mrf.mxu0
      %v321 = vadd.f32 0.0, %v320
      %v322 = vpop.f32.mrf.mxu0
      %v323 = vadd.f32 0.0, %v322
      %324 = vmatmul.bf16.gmra.mxu0 %v309
      %v325 = vpop.f32.mrf.mxu0
      %v326 = vadd.f32 0.0, %v325
      %v327 = vpop.f32.mrf.mxu0
      %328 = vdwg.mxu0
      %v329 = vld [vmem:[#allocation2] sm:$0xff]
      %v330 = vld [vmem:[#allocation2 + $0x8] sm:$0xff]
      %v331 = vld [vmem:[#allocation2 + $0x10] sm:$0xf]
      %v332 = vadd.f32 %v329, %v321
      %v333 = vadd.f32 %v330, %v323
      %v334 = vadd.f32 %v331, %v326
      %335 = vst.msk [vmem:[#allocation2] sm:$0xff] %vm240, %v332
      %336 = vst.msk [vmem:[#allocation2 + $0x8] sm:$0xff] %vm240, %v333
      %337 = vst.msk [vmem:[#allocation2 + $0x10] sm:$0xf] %vm243, %v334
      %v338 = vld [vmem:[%s165] sm:$0xc]
      %v339 = vld [vmem:[%s165 + $0x4] sm:$0xf]
      %v340 = vld [vmem:[%s165 + $0x8] sm:$0xf]
      %v341 = vld [vmem:[%s165 + $0xc] sm:$0x1]
      %s342 = scalar_lea.vmem %s1, 64
      %v343 = vld [vmem:[%s342] sm:$0xf]
      %v344 = vld [vmem:[%s342 + $0x4] sm:$0xf]
      %v345 = vld [vmem:[%s342 + $0x8] sm:$0xf]
      %v346 = vld [vmem:[%s342 + $0xc] sm:$0xf]
      %v347 = vld [vmem:[%s342 + $0x10] sm:$0xf]
      %v348 = vld [vmem:[%s342 + $0x14] sm:$0xf]
      %v349 = vld [vmem:[%s342 + $0x18] sm:$0xf]
      %v350 = vld [vmem:[%s342 + $0x1c] sm:$0xf]
      %v355 = vunpack.c.l.b16 %v338
      %v356 = vunpack.c.l.b16 %v339
      %v357 = vunpack.c.l.b16 %v340
      %v358 = vunpack.c.l.b16 %v341
      %v359 = vpack.c.b16 %v356, %v355
      %v360 = vpack.c.b16 %v358, %v357
      %vm361 = vsmask.f32 5376
      %v363 = vshrl.u32 %v359, 16
      %v365 = vrot.slane %v363, 2
      %v366 = vshll.u32 %v359, 16
      %v368 = vrot.slane %v366, 3
      %v369 = vor.u32 %v365, %v368
      %v371 = vshrl.u32 %v360, 16
      %v373 = vrot.slane %v371, 2
      %v374 = vshll.u32 %v360, 16
      %v376 = vrot.slane %v374, 3
      %v377 = vor.u32 %v373, %v376
      %v378 = vsel %vm361, %v369, %v377
      %v387 = vunpack.c.l.b16 %v343
      %v388 = vunpack.c.l.b16 %v344
      %v389 = vunpack.c.l.b16 %v345
      %v390 = vunpack.c.l.b16 %v346
      %v391 = vunpack.c.l.b16 %v347
      %v392 = vunpack.c.l.b16 %v348
      %v393 = vunpack.c.l.b16 %v349
      %v394 = vunpack.c.l.b16 %v350
      %v395 = vpack.c.b16 %v388, %v387
      %v396 = vpack.c.b16 %v390, %v389
      %v397 = vpack.c.b16 %v392, %v391
      %v398 = vpack.c.b16 %v394, %v393
      %v404 = vsel %vm215, %v378, 0
      %v407 = vsel %vm215, %v377, 0
      %409 = vmatpush.bf16.msra.mxu0 0
      %410 = vmatpush.bf16.msra.mxu0 0
      %411 = vmatpush.bf16.msra.mxu0 0
      %412 = vmatpush.bf16.msra.mxu0 0
      %413 = vmatpush.bf16.msra.mxu0 %v398
      %414 = vmatpush.bf16.msra.mxu0 %v397
      %415 = vmatpush.bf16.msra.mxu0 %v396
      %416 = vmatpush.bf16.msra.mxu0 %v395
      %417 = vmatmul.bf16.gmra.mxu0 %v404
      %v418 = vpop.f32.mrf.mxu0
      %v419 = vadd.f32 0.0, %v418
      %v420 = vpop.f32.mrf.mxu0
      %v421 = vadd.f32 0.0, %v420
      %422 = vmatmul.bf16.gmra.mxu0 %v407
      %v423 = vpop.f32.mrf.mxu0
      %v424 = vadd.f32 0.0, %v423
      %v425 = vpop.f32.mrf.mxu0
      %426 = vdwg.mxu0
      %v427 = vld [vmem:[#allocation2] sm:$0xff]
      %v428 = vld [vmem:[#allocation2 + $0x8] sm:$0xff]
      %v429 = vld [vmem:[#allocation2 + $0x10] sm:$0xf]
      %v430 = vadd.f32 %v427, %v419
      %v431 = vadd.f32 %v428, %v421
      %v432 = vadd.f32 %v429, %v424
      %433 = vst.msk [vmem:[#allocation2] sm:$0xff] %vm240, %v430
      %434 = vst.msk [vmem:[#allocation2 + $0x8] sm:$0xff] %vm240, %v431
      %435 = vst.msk [vmem:[#allocation2 + $0x10] sm:$0xf] %vm243, %v432
      %v436 = vld [vmem:[%s165] sm:$0x8]
      %v437 = vld [vmem:[%s165 + $0x4] sm:$0xf]
      %v438 = vld [vmem:[%s165 + $0x8] sm:$0xf]
      %v439 = vld [vmem:[%s165 + $0xc] sm:$0x1]
      %s440 = scalar_lea.vmem %s1, 96
      %v441 = vld [vmem:[%s440] sm:$0xf]
      %v442 = vld [vmem:[%s440 + $0x4] sm:$0xf]
      %v443 = vld [vmem:[%s440 + $0x8] sm:$0xf]
      %v444 = vld [vmem:[%s440 + $0xc] sm:$0xf]
      %v445 = vld [vmem:[%s440 + $0x10] sm:$0xf]
      %v446 = vld [vmem:[%s440 + $0x14] sm:$0xf]
      %v447 = vld [vmem:[%s440 + $0x18] sm:$0xf]
      %v448 = vld [vmem:[%s440 + $0x1c] sm:$0xf]
      %v453 = vunpack.c.l.b16 %v436
      %v454 = vunpack.c.l.b16 %v437
      %v455 = vunpack.c.l.b16 %v438
      %v456 = vunpack.c.l.b16 %v439
      %v457 = vpack.c.b16 %v454, %v453
      %v458 = vpack.c.b16 %v456, %v455
      %vm459 = vcmask 1044480
      %v460 = vrot.slane %v457, 3
      %v461 = vrot.slane %v458, 3
      %v462 = vsel %vm459, %v460, %v461
      %v471 = vunpack.c.l.b16 %v441
      %v472 = vunpack.c.l.b16 %v442
      %v473 = vunpack.c.l.b16 %v443
      %v474 = vunpack.c.l.b16 %v444
      %v475 = vunpack.c.l.b16 %v445
      %v476 = vunpack.c.l.b16 %v446
      %v477 = vunpack.c.l.b16 %v447
      %v478 = vunpack.c.l.b16 %v448
      %v479 = vpack.c.b16 %v472, %v471
      %v480 = vpack.c.b16 %v474, %v473
      %v481 = vpack.c.b16 %v476, %v475
      %v482 = vpack.c.b16 %v478, %v477
      %v488 = vsel %vm215, %v462, 0
      %v491 = vsel %vm215, %v461, 0
      %493 = vmatpush.bf16.msra.mxu0 0
      %494 = vmatpush.bf16.msra.mxu0 0
      %495 = vmatpush.bf16.msra.mxu0 0
      %496 = vmatpush.bf16.msra.mxu0 0
      %497 = vmatpush.bf16.msra.mxu0 %v482
      %498 = vmatpush.bf16.msra.mxu0 %v481
      %499 = vmatpush.bf16.msra.mxu0 %v480
      %500 = vmatpush.bf16.msra.mxu0 %v479
      %501 = vmatmul.bf16.gmra.mxu0 %v488
      %v502 = vpop.f32.mrf.mxu0
      %v503 = vadd.f32 0.0, %v502
      %v504 = vpop.f32.mrf.mxu0
      %v505 = vadd.f32 0.0, %v504
      %506 = vmatmul.bf16.gmra.mxu0 %v491
      %v507 = vpop.f32.mrf.mxu0
      %v508 = vadd.f32 0.0, %v507
      %v509 = vpop.f32.mrf.mxu0
      %510 = vdwg.mxu0
      %v511 = vld [vmem:[#allocation2] sm:$0xff]
      %v512 = vld [vmem:[#allocation2 + $0x8] sm:$0xff]
      %v513 = vld [vmem:[#allocation2 + $0x10] sm:$0xf]
      %v514 = vadd.f32 %v511, %v503
      %v515 = vadd.f32 %v512, %v505
      %v516 = vadd.f32 %v513, %v508
      %517 = vst.msk [vmem:[#allocation2] sm:$0xff] %vm240, %v514
      %518 = vst.msk [vmem:[#allocation2 + $0x8] sm:$0xff] %vm240, %v515
      %519 = vst.msk [vmem:[#allocation2 + $0x10] sm:$0xf] %vm243, %v516
      %v520 = vld [vmem:[#allocation2] sm:$0xff]
      %v521 = vld [vmem:[#allocation2 + $0x8] sm:$0xff]
      %v522 = vld [vmem:[#allocation2 + $0x10] sm:$0xf]
      %v523 = vld [vmem:[%s2] sm:$0xff]
      %v524 = vld [vmem:[%s2 + $0x8] sm:$0xff]
      %v525 = vld [vmem:[%s2 + $0x10] sm:$0xf]
      %527 = vset.pattern.permute.xlu0 0
      %528 = vperm.xlu0 %527, %v523
      %v529 = vpop.permute.xlu0 %528
      %532 = vset.pattern.permute.xlu0 0
      %533 = vperm.xlu0 %532, %v524
      %v534 = vpop.permute.xlu0 %533
      %537 = vset.pattern.permute.xlu0 0
      %538 = vperm.xlu0 %537, %v525
      %v539 = vpop.permute.xlu0 %538
      %v541 = vmul.f32 %v520, %v529
      %v542 = vmul.f32 %v521, %v534
      %v543 = vmul.f32 %v522, %v539
      %v544 = vsel %vm240, %v541, 0.0
      %v545 = vsel %vm240, %v542, 0.0
      %v546 = vadd.f32 %v544, %v545
      %v547 = vsel %vm243, %v543, 0.0
      %v548 = vadd.f32 %v546, %v547
      %v549 = vrot.slane %v548, 4
      %v550 = vadd.f32 %v548, %v549
      %v551 = vrot.slane %v550, 2
      %v552 = vadd.f32 %v550, %v551
      %v553 = vrot.slane %v552, 1
      %v554 = vadd.f32 %v552, %v553
      %v555 = vmul.f32 %v541, %v541
      %v556 = vmul.f32 %v542, %v542
      %v557 = vmul.f32 %v543, %v543
      %v558 = vsel %vm240, %v555, 0.0
      %v559 = vsel %vm240, %v556, 0.0
      %v560 = vadd.f32 %v558, %v559
      %v561 = vsel %vm243, %v557, 0.0
      %v562 = vadd.f32 %v560, %v561
      %v563 = vrot.slane %v562, 4
      %v564 = vadd.f32 %v562, %v563
      %v565 = vrot.slane %v564, 2
      %v566 = vadd.f32 %v564, %v565
      %v567 = vrot.slane %v566, 1
      %v568 = vadd.f32 %v566, %v567
      %v569 = vmul.f32 %v554, 0.0625
      %v570 = vmul.f32 %v568, 0.0625
      %v571 = vmul.f32 %v569, %v569
      %v572 = vsub.f32 %v570, %v571
      %v573 = vmax.f32 %v572, 0.0
      %v574 = vsub.f32 %v541, %v569
      %v575 = vsub.f32 %v542, %v569
      %v576 = vsub.f32 %v543, %v569
      %v577 = vadd.f32 %v573, 1e-05
      %v578 = vrsqrt.pop %v577
      %v579 = vmul.f32 %v578, %v577
      %v580 = vmul.f32 %v579, %v578
      %v581 = vmul.f32 0.5, %v580
      %v582 = vsub.f32 1.5, %v581
      %v583 = vmul.f32 %v578, %v582
      %vm584 = vweird.f32 %v577
      %vm585 = vweird.f32 %v578
      %vm586 = vmor %vm584, %vm585
      %v587 = vsel %vm586, %v578, %v583
      %v588 = vmul.f32 %v574, %v587
      %v589 = vmul.f32 %v575, %v587
      %v590 = vmul.f32 %v576, %v587
      %vm591 = vcmp.ge.f32.partialorder %v588, 0.0
      %vm592 = vcmp.ge.f32.partialorder %v589, 0.0
      %vm593 = vcmp.ge.f32.partialorder %v590, 0.0
      %v594 = vmul.f32 %v588, 0.2
      %v595 = vmul.f32 %v589, 0.2
      %v596 = vmul.f32 %v590, 0.2
      %v597 = vsel %vm591, %v588, %v594
      %v598 = vsel %vm592, %v589, %v595
      %v599 = vsel %vm593, %v590, %v596
      %v600 = vpack.c.bf16 %v597, %v597
      %v601 = vpack.c.bf16 %v598, %v598
      %v602 = vpack.c.bf16 %v599, %v599
      %603 = vst.msk [vmem:[%s170] sm:$0xf] %vm243, %v600
      %604 = vst.msk [vmem:[%s170 + $0x4] sm:$0xf] %vm243, %v601
      %vm605 = vcmask 254976
      %606 = vst.msk [vmem:[%s170 + $0x8] sm:$0x3] %vm605, %v602
      %p607 = scmp.lt.s32.totalorder %s14, 1
      %s608 = scalar_select %p607, %s14, 1
      %s609 = smul.addr %s608, 3
      %s610 = smul.addr %s609, 4
      %s611 = scalar_lea.vmem %s3, %s610
      // Predicated region
      $region33: #{_lambda_.7} parent=31 // pred_check
        %p612 = pneg %p100
      $region34: #{_lambda_.7} parent=31 // pred_check_branch
        %614 = sbr.rel (%p612) target = $region36
      $region35: #{_lambda_.7} parent=31 // pred_region
        _
      $region36: #{_lambda_.7} parent=31 // pred_fallthru
        _
    $region32: #{_lambda_.7} parent=5 // pred_fallthru
      _
    %p615 = scmp.le.s32.totalorder 2, %s9
    // Predicated region
    $region37: #{_lambda_.7} parent=5 // pred_check
      %p616 = pneg %p615
    $region38: #{_lambda_.7} parent=5 // pred_check_branch
      %618 = sbr.rel (%p616) target = $region40
    $region39: #{_lambda_.7} parent=5 // pred_region
      %s619 = ssub.s32 %s9, 2
      // Predicated region
      $region41: #{_lambda_.7} parent=39 // pred_check
        %p620 = pneg %p106
      $region42: #{_lambda_.7} parent=39 // pred_check_branch
        %622 = sbr.rel (%p620) target = $region44
      $region43: #{_lambda_.7} parent=39 // pred_region
        %p623 = scmp.lt.s32.totalorder %s15, 1
        %s624 = scalar_select %p623, %s15, 1
        %s625 = smul.addr %s624, 3
        %s626 = smul.addr %s625, 4
        %s627 = scalar_lea.vmem %s3, %s626
      $region44: #{_lambda_.7} parent=39 // pred_fallthru
        _
    $region40: #{_lambda_.7} parent=5 // pred_fallthru
      _
  $region6: #{_lambda_.7} parent=0 // loop_footer
    %s13 = sadd.s32 1, %s9
  $region7: #{_lambda_.7} parent=0 // loop_footer_branch
    %8 = sbr.rel target = $region3
  $region8: #{_lambda_.7} parent=0 // loop_exit
    _

// kernel: _lambda_.9
$region0: #{_lambda_.9}
  #allocation0 [shape = 'u32[]', space=smem, size = 0x4, offset = 0x4, fixed_abs, tag = 'smem constant byte address 0x4 - core index']
  #allocation1 [shape = 'u32[72,128]{1,0:T(1,128)}', space=vmem, size = 0x9000, scoped, tag = 'internal scratch']
  #allocation2 [shape = 'f32[1,1]{1,0:T(1,128)S(1)}', space=vmem, size = 0x200, scoped, tag = 'scoped memory for _lambda_.9']
  %s0 = inlined_call_operand.vmem [shape: bf16[2,32,64], index: 0, kind: input, shape index: {}]
  %s1 = inlined_call_operand.vmem [shape: bf16[16,1,64], index: 1, kind: input, shape index: {}]
  %s2 = inlined_call_operand.<no memory space> [shape: f32[1,1], index: 2, kind: input, shape index: {}]
  %s3 = inlined_call_operand.vmem [shape: f32[2,1,10], index: 3, kind: output, shape index: {}]
  %s4 = sld [smem:[#allocation0]]
  $region45: #{_lambda_.9} parent=0
    _
  %s6 = ssub.s32 1, %s4
  %s7 = scalar_select 0, %s6, %s4
  %v8 = vstv %s2
  %9 = vst [vmem:[#allocation2] sm:$0x1] %v8
  loop: start=0, step=1, limit=4
  $region2: #{_lambda_.9} parent=0 // loop_pre_header
    _
  $region3: #{_lambda_.9} parent=0 // loop_header
    %s11 = sphi 0, %s15
    %p12 = scmp.ge.s32.totalorder %s11, 4
    %s21 = sphi 0, %s23
    %s24 = sphi 0, %s21
    %s25 = sphi 0, %s24
    %s41 = sphi 0, %s25
    %s45 = sphi 0, %s45
    %s47 = sphi 0, %s45
    %s48 = sphi 0, %s47
    %s62 = sphi 0, %s48
    %s66 = sphi 0, %s66
    %s68 = sphi 0, %s66
    %s69 = sphi 0, %s68
    %s83 = sphi 0, %s69
    %s89 = sphi 0, %s91
    %s92 = sphi 0, %s89
    %s93 = sphi 0, %s92
    %s109 = sphi 0, %s93
  $region4: #{_lambda_.9} parent=0 // loop_header_branch
    %14 = sbr.rel (%p12) target = $region8
  $region5: #{_lambda_.9} parent=0 // loop_body
    %s16 = ssub.s32 %s11, 1
    %s17 = ssub.s32 %s11, 2
    %s18 = sadd.s32 %s11, 1
    %s19 = ssub.s32 %s11, %s18
    %p20 = scmp.eq.s32.totalorder %s19, 0
    %s22 = sadd.s32 %s21, 1
    %s23 = scalar_select %p20, %s21, %s22
    %p26 = pneg %p20
    %p27 = scmp.eq.s32.totalorder %s11, 1
    %p28 = por %p26, %p27
    %p29 = scmp.ne.s32.totalorder %s21, %s24
    %p30 = scmp.eq.s32.totalorder %s11, 0
    %p31 = por %p29, %p30
    %p32 = scmp.ne.s32.totalorder %s21, %s24
    %p33 = scmp.eq.s32.totalorder %s16, 1
    %p34 = por %p32, %p33
    %p35 = scmp.ne.s32.totalorder %s24, %s25
    %p36 = scmp.eq.s32.totalorder %s16, 0
    %p37 = por %p35, %p36
    %p38 = scmp.ne.s32.totalorder %s24, %s25
    %p39 = scmp.eq.s32.totalorder %s17, 1
    %p40 = por %p38, %p39
    %p42 = scmp.ne.s32.totalorder %s25, %s41
    %p43 = scmp.eq.s32.totalorder %s17, 0
    %p44 = por %p42, %p43
    %s46 = sadd.s32 %s45, 1
    %p49 = scmp.eq.s32.totalorder %s11, 1
    %p50 = scmp.ne.s32.totalorder %s45, %s47
    %p51 = scmp.eq.s32.totalorder %s11, 0
    %p52 = por %p50, %p51
    %p53 = scmp.ne.s32.totalorder %s45, %s47
    %p54 = scmp.eq.s32.totalorder %s16, 1
    %p55 = por %p53, %p54
    %p56 = scmp.ne.s32.totalorder %s47, %s48
    %p57 = scmp.eq.s32.totalorder %s16, 0
    %p58 = por %p56, %p57
    %p59 = scmp.ne.s32.totalorder %s47, %s48
    %p60 = scmp.eq.s32.totalorder %s17, 1
    %p61 = por %p59, %p60
    %p63 = scmp.ne.s32.totalorder %s48, %s62
    %p64 = scmp.eq.s32.totalorder %s17, 0
    %p65 = por %p63, %p64
    %s67 = sadd.s32 %s66, 1
    %p70 = scmp.eq.s32.totalorder %s11, 1
    %p71 = scmp.ne.s32.totalorder %s66, %s68
    %p72 = scmp.eq.s32.totalorder %s11, 0
    %p73 = por %p71, %p72
    %p74 = scmp.ne.s32.totalorder %s66, %s68
    %p75 = scmp.eq.s32.totalorder %s16, 1
    %p76 = por %p74, %p75
    %p77 = scmp.ne.s32.totalorder %s68, %s69
    %p78 = scmp.eq.s32.totalorder %s16, 0
    %p79 = por %p77, %p78
    %p80 = scmp.ne.s32.totalorder %s68, %s69
    %p81 = scmp.eq.s32.totalorder %s17, 1
    %p82 = por %p80, %p81
    %p84 = scmp.ne.s32.totalorder %s69, %s83
    %p85 = scmp.eq.s32.totalorder %s17, 0
    %p86 = por %p84, %p85
    %s87 = ssub.s32 %s11, %s18
    %p88 = scmp.eq.s32.totalorder %s87, 0
    %s90 = sadd.s32 %s89, 1
    %s91 = scalar_select %p88, %s89, %s90
    %p94 = pneg %p88
    %p95 = scmp.eq.s32.totalorder %s11, 1
    %p96 = por %p94, %p95
    %p97 = scmp.ne.s32.totalorder %s89, %s92
    %p98 = scmp.eq.s32.totalorder %s11, 0
    %p99 = por %p97, %p98
    %p100 = scmp.ne.s32.totalorder %s89, %s92
    %p101 = scmp.eq.s32.totalorder %s16, 1
    %p102 = por %p100, %p101
    %p103 = scmp.ne.s32.totalorder %s92, %s93
    %p104 = scmp.eq.s32.totalorder %s16, 0
    %p105 = por %p103, %p104
    %p106 = scmp.ne.s32.totalorder %s92, %s93
    %p107 = scmp.eq.s32.totalorder %s17, 1
    %p108 = por %p106, %p107
    %p110 = scmp.ne.s32.totalorder %s93, %s109
    %p111 = scmp.eq.s32.totalorder %s17, 0
    %p112 = por %p110, %p111
    %p113 = scmp.le.s32.totalorder 1, %s11
    %p114 = scmp.lt.s32.totalorder %s11, 3
    %p115 = pnand %p113, %p114
    %p116 = pneg %p115
    // Predicated region
    $region9: #{_lambda_.9} parent=5 // pred_check
      _
    $region10: #{_lambda_.9} parent=5 // pred_check_branch
      %118 = sbr.rel (%p115) target = $region12
    $region11: #{_lambda_.9} parent=5 // pred_region
      %s119 = ssub.s32 %s11, 1
      // Predicated region
      $region13: #{_lambda_.9} parent=11 // pred_check
        %p120 = pneg %p58
      $region14: #{_lambda_.9} parent=11 // pred_check_branch
        %122 = sbr.rel (%p120) target = $region16
      $region15: #{_lambda_.9} parent=11 // pred_region
        _
      $region16: #{_lambda_.9} parent=11 // pred_fallthru
        _
      // Predicated region
      $region17: #{_lambda_.9} parent=11 // pred_check
        %p123 = pneg %p79
      $region18: #{_lambda_.9} parent=11 // pred_check_branch
        %125 = sbr.rel (%p123) target = $region20
      $region19: #{_lambda_.9} parent=11 // pred_region
        _
      $region20: #{_lambda_.9} parent=11 // pred_fallthru
        _
    $region12: #{_lambda_.9} parent=5 // pred_fallthru
      _
    %p126 = scmp.lt.s32.totalorder %s11, 2
    // Predicated region
    $region21: #{_lambda_.9} parent=5 // pred_check
      %p127 = pneg %p126
    $region22: #{_lambda_.9} parent=5 // pred_check_branch
      %129 = sbr.rel (%p127) target = $region24
    $region23: #{_lambda_.9} parent=5 // pred_region
      // Predicated region
      $region25: #{_lambda_.9} parent=23 // pred_check
        %p130 = pneg %p31
      $region26: #{_lambda_.9} parent=23 // pred_check_branch
        %132 = sbr.rel (%p130) target = $region28
      $region27: #{_lambda_.9} parent=23 // pred_region
        %p133 = scmp.lt.s32.totalorder %s11, 1
        %s134 = scalar_select %p133, %s11, 1
        %s135 = smul.addr %s134, 4
        %s136 = smul.addr %s135, 4
        %s137 = scalar_lea.vmem %s0, %s136
      $region28: #{_lambda_.9} parent=23 // pred_fallthru
        _
    $region24: #{_lambda_.9} parent=5 // pred_fallthru
      _
    %p138 = scmp.le.s32.totalorder 1, %s11
    %p139 = scmp.lt.s32.totalorder %s11, 3
    %p140 = pnand %p138, %p139
    %p141 = pneg %p140
    // Predicated region
    $region29: #{_lambda_.9} parent=5 // pred_check
      _
    $region30: #{_lambda_.9} parent=5 // pred_check_branch
      %143 = sbr.rel (%p140) target = $region32
    $region31: #{_lambda_.9} parent=5 // pred_region
      %s144 = ssub.s32 %s11, 1
      %p145 = scmp.lt.s32.totalorder %s16, 1
      %s146 = scalar_select %p145, %s16, 1
      %s147 = smul.addr %s146, 4
      %s148 = smul.addr %s147, 4
      %s149 = scalar_lea.vmem %s0, %s148
      %p150 = pneg %p37
      %p151 = pneg %p34
      %p152 = pneg %p58
      %p153 = pneg %p55
      %p154 = pneg %p79
      %p155 = pneg %p76
      %p156 = pneg %p105
      %p157 = pneg %p102
      %p158 = scmp.lt.s32.totalorder %s16, 1
      %s159 = scalar_select %p158, %s16, 1
      %s160 = scalar_lea.vmem %s3, %s159
      %p161 = scmp.lt.s32.totalorder %s16, 1
      %s162 = scalar_select %p161, %s16, 1
      %s163 = smul.addr %s162, 4
      %s164 = smul.addr %s163, 4
      %s165 = scalar_lea.vmem %s0, %s164
      %p166 = scmp.lt.s32.totalorder %s16, 1
      %s167 = scalar_select %p166, %s16, 1
      %s168 = scalar_lea.vmem %s3, %s167
      %v170 = vld [vmem:[%s165] sm:$0xf]
      %v171 = vld [vmem:[%s165 + $0x4] sm:$0x1]
      %v172 = vld [vmem:[%s1] sm:$0x1]
      %v173 = vld [vmem:[%s165 + $0x4] sm:$0x3]
      %s174 = scalar_lea.vmem %s1, 1
      %v175 = vld [vmem:[%s174] sm:$0x1]
      %v178 = vunpack.c.l.b16 %v170
      %v179 = vunpack.c.l.b16 %v173
      %v180 = vpack.c.b16 %v179, %v178
      %v182 = vshrl.u32 %v180, 16
      %v184 = vshll.u32 %v180, 16
      %v186 = vrot.slane %v184, 1
      %v187 = vor.u32 %v182, %v186
      %vm188 = vcmask 523264
      %v190 = vsel %vm188, %v175, 0
      %v193 = vsel %vm188, %v187, 0
      %195 = vmatpush.bf16.xpose.msra.mxu0 0
      %196 = vmatpush.bf16.xpose.msra.mxu0 0
      %197 = vmatpush.bf16.xpose.msra.mxu0 0
      %198 = vmatpush.bf16.xpose.msra.mxu0 0
      %199 = vmatpush.bf16.xpose.msra.mxu0 0
      %200 = vmatpush.bf16.xpose.msra.mxu0 0
      %201 = vmatpush.bf16.xpose.msra.mxu0 0
      %202 = vmatpush.bf16.xpose.msra.mxu0 %v193
      %203 = vmatmul.bf16.gmra.mxu0 %v190
      %v204 = vpop.f32.mrf.mxu0
      %v205 = vadd.f32 0.0, %v204
      %v206 = vpop.f32.mrf.mxu0
      %207 = vdwg.mxu0
      %v209 = vunpack.c.l.b16 %v171
      %v210 = vpack.c.b16 %v209, %v178
      %v212 = vsel %vm188, %v172, 0
      %v215 = vsel %vm188, %v210, 0
      %217 = vmatpush.bf16.xpose.msra.mxu0 0
      %218 = vmatpush.bf16.xpose.msra.mxu0 0
      %219 = vmatpush.bf16.xpose.msra.mxu0 0
      %220 = vmatpush.bf16.xpose.msra.mxu0 0
      %221 = vmatpush.bf16.xpose.msra.mxu0 0
      %222 = vmatpush.bf16.xpose.msra.mxu0 0
      %223 = vmatpush.bf16.xpose.msra.mxu0 0
      %224 = vmatpush.bf16.xpose.msra.mxu0 %v215
      %225 = vmatmul.bf16.gmra.mxu0 %v212
      %v226 = vpop.f32.mrf.mxu0
      %v227 = vadd.f32 %v205, %v226
      %v228 = vpop.f32.mrf.mxu0
      %229 = vdwg.mxu0
      %v230 = vld [vmem:[%s165] sm:$0xe]
      %s231 = scalar_lea.vmem %s1, 2
      %v232 = vld [vmem:[%s231] sm:$0x1]
      %v234 = vunpack.c.l.b16 %v230
      %v235 = vpack.c.b16 %v179, %v234
      %v236 = vrot.slane %v235, 1
      %v238 = vsel %vm188, %v232, 0
      %v241 = vsel %vm188, %v236, 0
      %243 = vmatpush.bf16.xpose.msra.mxu0 0
      %244 = vmatpush.bf16.xpose.msra.mxu0 0
      %245 = vmatpush.bf16.xpose.msra.mxu0 0
      %246 = vmatpush.bf16.xpose.msra.mxu0 0
      %247 = vmatpush.bf16.xpose.msra.mxu0 0
      %248 = vmatpush.bf16.xpose.msra.mxu0 0
      %249 = vmatpush.bf16.xpose.msra.mxu0 0
      %250 = vmatpush.bf16.xpose.msra.mxu0 %v241
      %251 = vmatmul.bf16.gmra.mxu0 %v238
      %v252 = vpop.f32.mrf.mxu0
      %v253 = vadd.f32 0.0, %v252
      %v254 = vpop.f32.mrf.mxu0
      %255 = vdwg.mxu0
      %v256 = vadd.f32 %v227, %v253
      %v257 = vld [vmem:[%s165 + $0x4] sm:$0x7]
      %s258 = scalar_lea.vmem %s1, 3
      %v259 = vld [vmem:[%s258] sm:$0x1]
      %v261 = vunpack.c.l.b16 %v257
      %v262 = vpack.c.b16 %v261, %v234
      %v264 = vshrl.u32 %v262, 16
      %v266 = vrot.slane %v264, 1
      %v267 = vshll.u32 %v262, 16
      %v269 = vrot.slane %v267, 2
      %v270 = vor.u32 %v266, %v269
      %v272 = vsel %vm188, %v259, 0
      %v275 = vsel %vm188, %v270, 0
      %277 = vmatpush.bf16.xpose.msra.mxu0 0
      %278 = vmatpush.bf16.xpose.msra.mxu0 0
      %279 = vmatpush.bf16.xpose.msra.mxu0 0
      %280 = vmatpush.bf16.xpose.msra.mxu0 0
      %281 = vmatpush.bf16.xpose.msra.mxu0 0
      %282 = vmatpush.bf16.xpose.msra.mxu0 0
      %283 = vmatpush.bf16.xpose.msra.mxu0 0
      %284 = vmatpush.bf16.xpose.msra.mxu0 %v275
      %285 = vmatmul.bf16.gmra.mxu0 %v272
      %v286 = vpop.f32.mrf.mxu0
      %v287 = vadd.f32 0.0, %v286
      %v288 = vpop.f32.mrf.mxu0
      %289 = vdwg.mxu0
      %v290 = vadd.f32 %v256, %v287
      %v291 = vld [vmem:[%s165] sm:$0xc]
      %v292 = vld [vmem:[%s165 + $0x4] sm:$0xf]
      %s293 = scalar_lea.vmem %s1, 4
      %v294 = vld [vmem:[%s293] sm:$0x1]
      %v297 = vunpack.c.l.b16 %v291
      %v298 = vunpack.c.l.b16 %v292
      %v299 = vpack.c.b16 %v298, %v297
      %v301 = vshrl.u32 %v299, 16
      %v303 = vrot.slane %v301, 2
      %v304 = vshll.u32 %v299, 16
      %v306 = vrot.slane %v304, 3
      %v307 = vor.u32 %v303, %v306
      %v309 = vsel %vm188, %v294, 0
      %v312 = vsel %vm188, %v307, 0
      %314 = vmatpush.bf16.xpose.msra.mxu0 0
      %315 = vmatpush.bf16.xpose.msra.mxu0 0
      %316 = vmatpush.bf16.xpose.msra.mxu0 0
      %317 = vmatpush.bf16.xpose.msra.mxu0 0
      %318 = vmatpush.bf16.xpose.msra.mxu0 0
      %319 = vmatpush.bf16.xpose.msra.mxu0 0
      %320 = vmatpush.bf16.xpose.msra.mxu0 0
      %321 = vmatpush.bf16.xpose.msra.mxu0 %v312
      %322 = vmatmul.bf16.gmra.mxu0 %v309
      %v323 = vpop.f32.mrf.mxu0
      %v324 = vadd.f32 0.0, %v323
      %v325 = vpop.f32.mrf.mxu0
      %326 = vdwg.mxu0
      %v327 = vadd.f32 %v290, %v324
      %v328 = vld [vmem:[%s165] sm:$0x8]
      %s329 = scalar_lea.vmem %s1, 5
      %v330 = vld [vmem:[%s329] sm:$0x1]
      %v332 = vunpack.c.l.b16 %v328
      %v333 = vpack.c.b16 %v298, %v332
      %v334 = vrot.slane %v333, 3
      %v336 = vsel %vm188, %v330, 0
      %v339 = vsel %vm188, %v334, 0
      %341 = vmatpush.bf16.xpose.msra.mxu0 0
      %342 = vmatpush.bf16.xpose.msra.mxu0 0
      %343 = vmatpush.bf16.xpose.msra.mxu0 0
      %344 = vmatpush.bf16.xpose.msra.mxu0 0
      %345 = vmatpush.bf16.xpose.msra.mxu0 0
      %346 = vmatpush.bf16.xpose.msra.mxu0 0
      %347 = vmatpush.bf16.xpose.msra.mxu0 0
      %348 = vmatpush.bf16.xpose.msra.mxu0 %v339
      %349 = vmatmul.bf16.gmra.mxu0 %v336
      %v350 = vpop.f32.mrf.mxu0
      %v351 = vadd.f32 0.0, %v350
      %v352 = vpop.f32.mrf.mxu0
      %353 = vdwg.mxu0
      %v354 = vadd.f32 %v327, %v351
      %v355 = vld [vmem:[%s165] sm:$0x8]
      %v356 = vld [vmem:[%s165 + $0x4] sm:$0xf]
      %v357 = vld [vmem:[%s165 + $0x8] sm:$0x1]
      %s358 = scalar_lea.vmem %s1, 6
      %v359 = vld [vmem:[%s358] sm:$0x1]
      %v363 = vunpack.c.l.b16 %v355
      %v364 = vunpack.c.l.b16 %v356
      %v365 = vunpack.c.l.b16 %v357
      %v366 = vpack.c.b16 %v364, %v363
      %v367 = vpack.c.b16 %v365, %v365
      %vm368 = vsmask.f32 4352
      %v370 = vshrl.u32 %v366, 16
      %v372 = vrot.slane %v370, 3
      %v373 = vshll.u32 %v366, 16
      %v375 = vrot.slane %v373, 4
      %v376 = vor.u32 %v372, %v375
      %v378 = vshll.u32 %v367, 16
      %v380 = vrot.slane %v378, 4
      %v381 = vsel %vm368, %v376, %v380
      %v383 = vsel %vm188, %v359, 0
      %v386 = vsel %vm188, %v381, 0
      %388 = vmatpush.bf16.xpose.msra.mxu0 0
      %389 = vmatpush.bf16.xpose.msra.mxu0 0
      %390 = vmatpush.bf16.xpose.msra.mxu0 0
      %391 = vmatpush.bf16.xpose.msra.mxu0 0
      %392 = vmatpush.bf16.xpose.msra.mxu0 0
      %393 = vmatpush.bf16.xpose.msra.mxu0 0
      %394 = vmatpush.bf16.xpose.msra.mxu0 0
      %395 = vmatpush.bf16.xpose.msra.mxu0 %v386
      %396 = vmatmul.bf16.gmra.mxu0 %v383
      %v397 = vpop.f32.mrf.mxu0
      %v398 = vadd.f32 0.0, %v397
      %v399 = vpop.f32.mrf.mxu0
      %400 = vdwg.mxu0
      %v401 = vadd.f32 %v354, %v398
      %s402 = scalar_lea.vmem %s1, 7
      %v403 = vld [vmem:[%s402] sm:$0x1]
      %v404 = vpack.c.b16 %v365, %v364
      %v406 = vsel %vm188, %v403, 0
      %v409 = vsel %vm188, %v404, 0
      %411 = vmatpush.bf16.xpose.msra.mxu0 0
      %412 = vmatpush.bf16.xpose.msra.mxu0 0
      %413 = vmatpush.bf16.xpose.msra.mxu0 0
      %414 = vmatpush.bf16.xpose.msra.mxu0 0
      %415 = vmatpush.bf16.xpose.msra.mxu0 0
      %416 = vmatpush.bf16.xpose.msra.mxu0 0
      %417 = vmatpush.bf16.xpose.msra.mxu0 0
      %418 = vmatpush.bf16.xpose.msra.mxu0 %v409
      %419 = vmatmul.bf16.gmra.mxu0 %v406
      %v420 = vpop.f32.mrf.mxu0
      %v421 = vadd.f32 0.0, %v420
      %v422 = vpop.f32.mrf.mxu0
      %423 = vdwg.mxu0
      %v424 = vadd.f32 %v401, %v421
      %v425 = vld [vmem:[%s165 + $0x4] sm:$0xe]
      %v426 = vld [vmem:[%s165 + $0x8] sm:$0x3]
      %s427 = scalar_lea.vmem %s1, 8
      %v428 = vld [vmem:[%s427] sm:$0x1]
      %v431 = vunpack.c.l.b16 %v425
      %v432 = vunpack.c.l.b16 %v426
      %v433 = vpack.c.b16 %v432, %v431
      %v434 = vrot.slane %v433, 1
      %v436 = vsel %vm188, %v428, 0
      %v439 = vsel %vm188, %v434, 0
      %441 = vmatpush.bf16.xpose.msra.mxu0 0
      %442 = vmatpush.bf16.xpose.msra.mxu0 0
      %443 = vmatpush.bf16.xpose.msra.mxu0 0
      %444 = vmatpush.bf16.xpose.msra.mxu0 0
      %445 = vmatpush.bf16.xpose.msra.mxu0 0
      %446 = vmatpush.bf16.xpose.msra.mxu0 0
      %447 = vmatpush.bf16.xpose.msra.mxu0 0
      %448 = vmatpush.bf16.xpose.msra.mxu0 %v439
      %449 = vmatmul.bf16.gmra.mxu0 %v436
      %v450 = vpop.f32.mrf.mxu0
      %v451 = vadd.f32 0.0, %v450
      %v452 = vpop.f32.mrf.mxu0
      %453 = vdwg.mxu0
      %v454 = vadd.f32 %v424, %v451
      %v455 = vld [vmem:[%s165 + $0x8] sm:$0x7]
      %s456 = scalar_lea.vmem %s1, 9
      %v457 = vld [vmem:[%s456] sm:$0x1]
      %v459 = vunpack.c.l.b16 %v455
      %v460 = vpack.c.b16 %v459, %v431
      %v462 = vshrl.u32 %v460, 16
      %v464 = vrot.slane %v462, 1
      %v465 = vshll.u32 %v460, 16
      %v467 = vrot.slane %v465, 2
      %v468 = vor.u32 %v464, %v467
      %v470 = vsel %vm188, %v457, 0
      %v473 = vsel %vm188, %v468, 0
      %475 = vmatpush.bf16.xpose.msra.mxu0 0
      %476 = vmatpush.bf16.xpose.msra.mxu0 0
      %477 = vmatpush.bf16.xpose.msra.mxu0 0
      %478 = vmatpush.bf16.xpose.msra.mxu0 0
      %479 = vmatpush.bf16.xpose.msra.mxu0 0
      %480 = vmatpush.bf16.xpose.msra.mxu0 0
      %481 = vmatpush.bf16.xpose.msra.mxu0 0
      %482 = vmatpush.bf16.xpose.msra.mxu0 %v473
      %483 = vmatmul.bf16.gmra.mxu0 %v470
      %v484 = vpop.f32.mrf.mxu0
      %v485 = vadd.f32 0.0, %v484
      %v486 = vpop.f32.mrf.mxu0
      %487 = vdwg.mxu0
      %v488 = vadd.f32 %v454, %v485
      %v489 = vld [vmem:[%s165 + $0x4] sm:$0xc]
      %s490 = scalar_lea.vmem %s1, 10
      %v491 = vld [vmem:[%s490] sm:$0x1]
      %v493 = vunpack.c.l.b16 %v489
      %v494 = vpack.c.b16 %v459, %v493
      %v495 = vrot.slane %v494, 2
      %v497 = vsel %vm188, %v491, 0
      %v500 = vsel %vm188, %v495, 0
      %502 = vmatpush.bf16.xpose.msra.mxu0 0
      %503 = vmatpush.bf16.xpose.msra.mxu0 0
      %504 = vmatpush.bf16.xpose.msra.mxu0 0
      %505 = vmatpush.bf16.xpose.msra.mxu0 0
      %506 = vmatpush.bf16.xpose.msra.mxu0 0
      %507 = vmatpush.bf16.xpose.msra.mxu0 0
      %508 = vmatpush.bf16.xpose.msra.mxu0 0
      %509 = vmatpush.bf16.xpose.msra.mxu0 %v500
      %510 = vmatmul.bf16.gmra.mxu0 %v497
      %v511 = vpop.f32.mrf.mxu0
      %v512 = vadd.f32 0.0, %v511
      %v513 = vpop.f32.mrf.mxu0
      %514 = vdwg.mxu0
      %v515 = vadd.f32 %v488, %v512
      %v516 = vld [vmem:[%s165 + $0x8] sm:$0xf]
      %s517 = scalar_lea.vmem %s1, 11
      %v518 = vld [vmem:[%s517] sm:$0x1]
      %v520 = vunpack.c.l.b16 %v516
      %v521 = vpack.c.b16 %v520, %v493
      %v523 = vshrl.u32 %v521, 16
      %v525 = vrot.slane %v523, 2
      %v526 = vshll.u32 %v521, 16
      %v528 = vrot.slane %v526, 3
      %v529 = vor.u32 %v525, %v528
      %v531 = vsel %vm188, %v518, 0
      %v534 = vsel %vm188, %v529, 0
      %536 = vmatpush.bf16.xpose.msra.mxu0 0
      %537 = vmatpush.bf16.xpose.msra.mxu0 0
      %538 = vmatpush.bf16.xpose.msra.mxu0 0
      %539 = vmatpush.bf16.xpose.msra.mxu0 0
      %540 = vmatpush.bf16.xpose.msra.mxu0 0
      %541 = vmatpush.bf16.xpose.msra.mxu0 0
      %542 = vmatpush.bf16.xpose.msra.mxu0 0
      %543 = vmatpush.bf16.xpose.msra.mxu0 %v534
      %544 = vmatmul.bf16.gmra.mxu0 %v531
      %v545 = vpop.f32.mrf.mxu0
      %v546 = vadd.f32 0.0, %v545
      %v547 = vpop.f32.mrf.mxu0
      %548 = vdwg.mxu0
      %v549 = vadd.f32 %v515, %v546
      %v550 = vld [vmem:[%s165 + $0x4] sm:$0x8]
      %v551 = vld [vmem:[%s165 + $0x8] sm:$0xf]
      %v552 = vld [vmem:[%s165 + $0xc] sm:$0x1]
      %s553 = scalar_lea.vmem %s1, 12
      %v554 = vld [vmem:[%s553] sm:$0x1]
      %v558 = vunpack.c.l.b16 %v550
      %v559 = vunpack.c.l.b16 %v551
      %v560 = vunpack.c.l.b16 %v552
      %v561 = vpack.c.b16 %v559, %v558
      %v562 = vpack.c.b16 %v560, %v560
      %v564 = vshrl.u32 %v561, 16
      %v566 = vrot.slane %v564, 3
      %v567 = vshll.u32 %v561, 16
      %v569 = vrot.slane %v567, 4
      %v570 = vor.u32 %v566, %v569
      %v572 = vshll.u32 %v562, 16
      %v574 = vrot.slane %v572, 4
      %v575 = vsel %vm368, %v570, %v574
      %v577 = vsel %vm188, %v554, 0
      %v580 = vsel %vm188, %v575, 0
      %582 = vmatpush.bf16.xpose.msra.mxu0 0
      %583 = vmatpush.bf16.xpose.msra.mxu0 0
      %584 = vmatpush.bf16.xpose.msra.mxu0 0
      %585 = vmatpush.bf16.xpose.msra.mxu0 0
      %586 = vmatpush.bf16.xpose.msra.mxu0 0
      %587 = vmatpush.bf16.xpose.msra.mxu0 0
      %588 = vmatpush.bf16.xpose.msra.mxu0 0
      %589 = vmatpush.bf16.xpose.msra.mxu0 %v580
      %590 = vmatmul.bf16.gmra.mxu0 %v577
      %v591 = vpop.f32.mrf.mxu0
      %v592 = vadd.f32 0.0, %v591
      %v593 = vpop.f32.mrf.mxu0
      %594 = vdwg.mxu0
      %v595 = vadd.f32 %v549, %v592
      %s596 = scalar_lea.vmem %s1, 13
      %v597 = vld [vmem:[%s596] sm:$0x1]
      %v598 = vpack.c.b16 %v560, %v559
      %v600 = vsel %vm188, %v597, 0
      %v603 = vsel %vm188, %v598, 0
      %605 = vmatpush.bf16.xpose.msra.mxu0 0
      %606 = vmatpush.bf16.xpose.msra.mxu0 0
      %607 = vmatpush.bf16.xpose.msra.mxu0 0
      %608 = vmatpush.bf16.xpose.msra.mxu0 0
      %609 = vmatpush.bf16.xpose.msra.mxu0 0
      %610 = vmatpush.bf16.xpose.msra.mxu0 0
      %611 = vmatpush.bf16.xpose.msra.mxu0 0
      %612 = vmatpush.bf16.xpose.msra.mxu0 %v603
      %613 = vmatmul.bf16.gmra.mxu0 %v600
      %v614 = vpop.f32.mrf.mxu0
      %v615 = vadd.f32 0.0, %v614
      %v616 = vpop.f32.mrf.mxu0
      %617 = vdwg.mxu0
      %v618 = vadd.f32 %v595, %v615
      %v619 = vld [vmem:[%s165 + $0xc] sm:$0x3]
      %s620 = scalar_lea.vmem %s1, 14
      %v621 = vld [vmem:[%s620] sm:$0x1]
      %v623 = vunpack.c.l.b16 %v619
      %v624 = vpack.c.b16 %v623, %v559
      %v626 = vshrl.u32 %v624, 16
      %v628 = vshll.u32 %v624, 16
      %v630 = vrot.slane %v628, 1
      %v631 = vor.u32 %v626, %v630
      %v633 = vsel %vm188, %v621, 0
      %v636 = vsel %vm188, %v631, 0
      %638 = vmatpush.bf16.xpose.msra.mxu0 0
      %639 = vmatpush.bf16.xpose.msra.mxu0 0
      %640 = vmatpush.bf16.xpose.msra.mxu0 0
      %641 = vmatpush.bf16.xpose.msra.mxu0 0
      %642 = vmatpush.bf16.xpose.msra.mxu0 0
      %643 = vmatpush.bf16.xpose.msra.mxu0 0
      %644 = vmatpush.bf16.xpose.msra.mxu0 0
      %645 = vmatpush.bf16.xpose.msra.mxu0 %v636
      %646 = vmatmul.bf16.gmra.mxu0 %v633
      %v647 = vpop.f32.mrf.mxu0
      %v648 = vadd.f32 0.0, %v647
      %v649 = vpop.f32.mrf.mxu0
      %650 = vdwg.mxu0
      %v651 = vadd.f32 %v618, %v648
      %v652 = vld [vmem:[%s165 + $0x8] sm:$0xe]
      %s653 = scalar_lea.vmem %s1, 15
      %v654 = vld [vmem:[%s653] sm:$0x1]
      %v656 = vunpack.c.l.b16 %v652
      %v657 = vpack.c.b16 %v623, %v656
      %v658 = vrot.slane %v657, 1
      %v660 = vsel %vm188, %v654, 0
      %v663 = vsel %vm188, %v658, 0
      %665 = vmatpush.bf16.xpose.msra.mxu0 0
      %666 = vmatpush.bf16.xpose.msra.mxu0 0
      %667 = vmatpush.bf16.xpose.msra.mxu0 0
      %668 = vmatpush.bf16.xpose.msra.mxu0 0
      %669 = vmatpush.bf16.xpose.msra.mxu0 0
      %670 = vmatpush.bf16.xpose.msra.mxu0 0
      %671 = vmatpush.bf16.xpose.msra.mxu0 0
      %672 = vmatpush.bf16.xpose.msra.mxu0 %v663
      %673 = vmatmul.bf16.gmra.mxu0 %v660
      %v674 = vpop.f32.mrf.mxu0
      %v675 = vadd.f32 0.0, %v674
      %v676 = vpop.f32.mrf.mxu0
      %677 = vdwg.mxu0
      %v678 = vadd.f32 %v651, %v675
      %v679 = vld [vmem:[#allocation2] sm:$0x1]
      %681 = vset.pattern.permute.xlu0 0
      %682 = vperm.xlu0 %681, %v679
      %v683 = vpop.permute.xlu0 %682
      %v685 = vperm.slane %v683, 0
      %v686 = vadd.f32 %v678, %v685
      %v687 = vsub.f32 0.0, %v686
      %v688 = vmul.f32 %v687, 1.442695
      %v689 = vpow.pop %v688
      %v690 = vadd.f32 %v689, 1.0
      %v691 = vrcp.pop %v690
      %v692 = vmul.f32 %v690, %v691
      %v693 = vsub.f32 1.0, %v692
      %v694 = vmul.f32 %v691, %v693
      %v695 = vadd.f32 %v691, %v694
      %vm696 = vweird.f32 %v690
      %vm697 = vweird.f32 %v691
      %vm698 = vmor %vm696, %vm697
      %v699 = vsel %vm698, %v691, %v695
      %v700 = vand.u32 2147483647, %v690
      %vm701 = vcmp.eq.f32.partialorder %v700, 8.507059e+37
      %v702 = vand.u32 %v690, 2147483648
      %v703 = vor.u32 1.1754944e-38, %v702
      %v704 = vsel %vm701, %v703, %v699
      %v705 = vmul.f32 1.0, %v704
      %vm706 = vcmask 73728
      %707 = vst.msk [vmem:[%s168] sm:$0x1] %vm706, %v705
      %p708 = scmp.lt.s32.totalorder %s16, 1
      %s709 = scalar_select %p708, %s16, 1
      %s710 = scalar_lea.vmem %s3, %s709
      // Predicated region
      $region33: #{_lambda_.9} parent=31 // pred_check
        %p711 = pneg %p102
      $region34: #{_lambda_.9} parent=31 // pred_check_branch
        %713 = sbr.rel (%p711) target = $region36
      $region35: #{_lambda_.9} parent=31 // pred_region
        _
      $region36: #{_lambda_.9} parent=31 // pred_fallthru
        _
    $region32: #{_lambda_.9} parent=5 // pred_fallthru
      _
    %p714 = scmp.le.s32.totalorder 2, %s11
    // Predicated region
    $region37: #{_lambda_.9} parent=5 // pred_check
      %p715 = pneg %p714
    $region38: #{_lambda_.9} parent=5 // pred_check_branch
      %717 = sbr.rel (%p715) target = $region40
    $region39: #{_lambda_.9} parent=5 // pred_region
      %s718 = ssub.s32 %s11, 2
      // Predicated region
      $region41: #{_lambda_.9} parent=39 // pred_check
        %p719 = pneg %p108
      $region42: #{_lambda_.9} parent=39 // pred_check_branch
        %721 = sbr.rel (%p719) target = $region44
      $region43: #{_lambda_.9} parent=39 // pred_region
        %p722 = scmp.lt.s32.totalorder %s17, 1
        %s723 = scalar_select %p722, %s17, 1
        %s724 = scalar_lea.vmem %s3, %s723
      $region44: #{_lambda_.9} parent=39 // pred_fallthru
        _
    $region40: #{_lambda_.9} parent=5 // pred_fallthru
      _
  $region6: #{_lambda_.9} parent=0 // loop_footer
    %s15 = sadd.s32 1, %s11
  $region7: #{_lambda_.9} parent=0 // loop_footer_branch
    %10 = sbr.rel target = $region3
  $region8: #{_lambda_.9} parent=0 // loop_exit
    _

// kernel: _lambda_.8
$region0: #{_lambda_.8}
  #allocation0 [shape = 'u32[]', space=smem, size = 0x4, offset = 0x4, fixed_abs, tag = 'smem constant byte address 0x4 - core index']
  #allocation1 [shape = 'u32[72,128]{1,0:T(1,128)}', space=vmem, size = 0x9000, scoped, tag = 'internal scratch']
  #allocation2 [shape = 'f32[18,64]{1,0:T(8,128)}', space=vmem, size = 0x3000, scoped, tag = 'scratch operand']
  %s0 = inlined_call_operand.vmem [shape: bf16[2,40,32], index: 0, kind: input, shape index: {}]
  %s1 = inlined_call_operand.vmem [shape: bf16[16,32,64], index: 1, kind: input, shape index: {}]
  %s2 = inlined_call_operand.vmem [shape: f32[18,1], index: 2, kind: input, shape index: {}]
  %s3 = inlined_call_operand.vmem [shape: bf16[2,18,64], index: 3, kind: output, shape index: {}]
  %s4 = sld [smem:[#allocation0]]
  $region45: #{_lambda_.8} parent=0
    _
  %s6 = ssub.s32 1, %s4
  %s7 = scalar_select 0, %s6, %s4
  loop: start=0, step=1, limit=4
  $region2: #{_lambda_.8} parent=0 // loop_pre_header
    _
  $region3: #{_lambda_.8} parent=0 // loop_header
    %s9 = sphi 0, %s13
    %p10 = scmp.ge.s32.totalorder %s9, 4
    %s19 = sphi 0, %s21
    %s22 = sphi 0, %s19
    %s23 = sphi 0, %s22
    %s39 = sphi 0, %s23
    %s43 = sphi 0, %s43
    %s45 = sphi 0, %s43
    %s46 = sphi 0, %s45
    %s60 = sphi 0, %s46
    %s64 = sphi 0, %s64
    %s66 = sphi 0, %s64
    %s67 = sphi 0, %s66
    %s81 = sphi 0, %s67
    %s87 = sphi 0, %s89
    %s90 = sphi 0, %s87
    %s91 = sphi 0, %s90
    %s107 = sphi 0, %s91
  $region4: #{_lambda_.8} parent=0 // loop_header_branch
    %12 = sbr.rel (%p10) target = $region8
  $region5: #{_lambda_.8} parent=0 // loop_body
    %s14 = ssub.s32 %s9, 1
    %s15 = ssub.s32 %s9, 2
    %s16 = sadd.s32 %s9, 1
    %s17 = ssub.s32 %s9, %s16
    %p18 = scmp.eq.s32.totalorder %s17, 0
    %s20 = sadd.s32 %s19, 1
    %s21 = scalar_select %p18, %s19, %s20
    %p24 = pneg %p18
    %p25 = scmp.eq.s32.totalorder %s9, 1
    %p26 = por %p24, %p25
    %p27 = scmp.ne.s32.totalorder %s19, %s22
    %p28 = scmp.eq.s32.totalorder %s9, 0
    %p29 = por %p27, %p28
    %p30 = scmp.ne.s32.totalorder %s19, %s22
    %p31 = scmp.eq.s32.totalorder %s14, 1
    %p32 = por %p30, %p31
    %p33 = scmp.ne.s32.totalorder %s22, %s23
    %p34 = scmp.eq.s32.totalorder %s14, 0
    %p35 = por %p33, %p34
    %p36 = scmp.ne.s32.totalorder %s22, %s23
    %p37 = scmp.eq.s32.totalorder %s15, 1
    %p38 = por %p36, %p37
    %p40 = scmp.ne.s32.totalorder %s23, %s39
    %p41 = scmp.eq.s32.totalorder %s15, 0
    %p42 = por %p40, %p41
    %s44 = sadd.s32 %s43, 1
    %p47 = scmp.eq.s32.totalorder %s9, 1
    %p48 = scmp.ne.s32.totalorder %s43, %s45
    %p49 = scmp.eq.s32.totalorder %s9, 0
    %p50 = por %p48, %p49
    %p51 = scmp.ne.s32.totalorder %s43, %s45
    %p52 = scmp.eq.s32.totalorder %s14, 1
    %p53 = por %p51, %p52
    %p54 = scmp.ne.s32.totalorder %s45, %s46
    %p55 = scmp.eq.s32.totalorder %s14, 0
    %p56 = por %p54, %p55
    %p57 = scmp.ne.s32.totalorder %s45, %s46
    %p58 = scmp.eq.s32.totalorder %s15, 1
    %p59 = por %p57, %p58
    %p61 = scmp.ne.s32.totalorder %s46, %s60
    %p62 = scmp.eq.s32.totalorder %s15, 0
    %p63 = por %p61, %p62
    %s65 = sadd.s32 %s64, 1
    %p68 = scmp.eq.s32.totalorder %s9, 1
    %p69 = scmp.ne.s32.totalorder %s64, %s66
    %p70 = scmp.eq.s32.totalorder %s9, 0
    %p71 = por %p69, %p70
    %p72 = scmp.ne.s32.totalorder %s64, %s66
    %p73 = scmp.eq.s32.totalorder %s14, 1
    %p74 = por %p72, %p73
    %p75 = scmp.ne.s32.totalorder %s66, %s67
    %p76 = scmp.eq.s32.totalorder %s14, 0
    %p77 = por %p75, %p76
    %p78 = scmp.ne.s32.totalorder %s66, %s67
    %p79 = scmp.eq.s32.totalorder %s15, 1
    %p80 = por %p78, %p79
    %p82 = scmp.ne.s32.totalorder %s67, %s81
    %p83 = scmp.eq.s32.totalorder %s15, 0
    %p84 = por %p82, %p83
    %s85 = ssub.s32 %s9, %s16
    %p86 = scmp.eq.s32.totalorder %s85, 0
    %s88 = sadd.s32 %s87, 1
    %s89 = scalar_select %p86, %s87, %s88
    %p92 = pneg %p86
    %p93 = scmp.eq.s32.totalorder %s9, 1
    %p94 = por %p92, %p93
    %p95 = scmp.ne.s32.totalorder %s87, %s90
    %p96 = scmp.eq.s32.totalorder %s9, 0
    %p97 = por %p95, %p96
    %p98 = scmp.ne.s32.totalorder %s87, %s90
    %p99 = scmp.eq.s32.totalorder %s14, 1
    %p100 = por %p98, %p99
    %p101 = scmp.ne.s32.totalorder %s90, %s91
    %p102 = scmp.eq.s32.totalorder %s14, 0
    %p103 = por %p101, %p102
    %p104 = scmp.ne.s32.totalorder %s90, %s91
    %p105 = scmp.eq.s32.totalorder %s15, 1
    %p106 = por %p104, %p105
    %p108 = scmp.ne.s32.totalorder %s91, %s107
    %p109 = scmp.eq.s32.totalorder %s15, 0
    %p110 = por %p108, %p109
    %p111 = scmp.le.s32.totalorder 1, %s9
    %p112 = scmp.lt.s32.totalorder %s9, 3
    %p113 = pnand %p111, %p112
    %p114 = pneg %p113
    // Predicated region
    $region9: #{_lambda_.8} parent=5 // pred_check
      _
    $region10: #{_lambda_.8} parent=5 // pred_check_branch
      %116 = sbr.rel (%p113) target = $region12
    $region11: #{_lambda_.8} parent=5 // pred_region
      %s117 = ssub.s32 %s9, 1
      // Predicated region
      $region13: #{_lambda_.8} parent=11 // pred_check
        %p118 = pneg %p56
      $region14: #{_lambda_.8} parent=11 // pred_check_branch
        %120 = sbr.rel (%p118) target = $region16
      $region15: #{_lambda_.8} parent=11 // pred_region
        _
      $region16: #{_lambda_.8} parent=11 // pred_fallthru
        _
      // Predicated region
      $region17: #{_lambda_.8} parent=11 // pred_check
        %p121 = pneg %p77
      $region18: #{_lambda_.8} parent=11 // pred_check_branch
        %123 = sbr.rel (%p121) target = $region20
      $region19: #{_lambda_.8} parent=11 // pred_region
        _
      $region20: #{_lambda_.8} parent=11 // pred_fallthru
        _
    $region12: #{_lambda_.8} parent=5 // pred_fallthru
      _
    %p124 = scmp.lt.s32.totalorder %s9, 2
    // Predicated region
    $region21: #{_lambda_.8} parent=5 // pred_check
      %p125 = pneg %p124
    $region22: #{_lambda_.8} parent=5 // pred_check_branch
      %127 = sbr.rel (%p125) target = $region24
    $region23: #{_lambda_.8} parent=5 // pred_region
      // Predicated region
      $region25: #{_lambda_.8} parent=23 // pred_check
        %p128 = pneg %p29
      $region26: #{_lambda_.8} parent=23 // pred_check_branch
        %130 = sbr.rel (%p128) target = $region28
      $region27: #{_lambda_.8} parent=23 // pred_region
        %p131 = scmp.lt.s32.totalorder %s9, 1
        %s132 = scalar_select %p131, %s9, 1
        %s133 = smul.addr %s132, 5
        %s134 = smul.addr %s133, 4
        %s135 = scalar_lea.vmem %s0, %s134
      $region28: #{_lambda_.8} parent=23 // pred_fallthru
        _
    $region24: #{_lambda_.8} parent=5 // pred_fallthru
      _
    %p136 = scmp.le.s32.totalorder 1, %s9
    %p137 = scmp.lt.s32.totalorder %s9, 3
    %p138 = pnand %p136, %p137
    %p139 = pneg %p138
    // Predicated region
    $region29: #{_lambda_.8} parent=5 // pred_check
      _
    $region30: #{_lambda_.8} parent=5 // pred_check_branch
      %141 = sbr.rel (%p138) target = $region32
    $region31: #{_lambda_.8} parent=5 // pred_region
      %s142 = ssub.s32 %s9, 1
      %p143 = scmp.lt.s32.totalorder %s14, 1
      %s144 = scalar_select %p143, %s14, 1
      %s145 = smul.addr %s144, 5
      %s146 = smul.addr %s145, 4
      %s147 = scalar_lea.vmem %s0, %s146
      %p148 = pneg %p35
      %p149 = pneg %p32
      %p150 = pneg %p56
      %p151 = pneg %p53
      %p152 = pneg %p77
      %p153 = pneg %p74
      %p154 = pneg %p103
      %p155 = pneg %p100
      %p156 = scmp.lt.s32.totalorder %s14, 1
      %s157 = scalar_select %p156, %s14, 1
      %s158 = smul.addr %s157, 3
      %s159 = smul.addr %s158, 4
      %s160 = scalar_lea.vmem %s3, %s159
      %p161 = scmp.lt.s32.totalorder %s14, 1
      %s162 = scalar_select %p161, %s14, 1
      %s163 = smul.addr %s162, 5
      %s164 = smul.addr %s163, 4
      %s165 = scalar_lea.vmem %s0, %s164
      %p166 = scmp.lt.s32.totalorder %s14, 1
      %s167 = scalar_select %p166, %s14, 1
      %s168 = smul.addr %s167, 3
      %s169 = smul.addr %s168, 4
      %s170 = scalar_lea.vmem %s3, %s169
      %v172 = vld [vmem:[%s165] sm:$0xf]
      %v173 = vld [vmem:[%s165 + $0x4] sm:$0xf]
      %v174 = vld [vmem:[%s165 + $0x8] sm:$0x1]
      %v175 = vld [vmem:[%s1] sm:$0xf]
      %v176 = vld [vmem:[%s1 + $0x4] sm:$0xf]
      %v177 = vld [vmem:[%s1 + $0x8] sm:$0xf]
      %v178 = vld [vmem:[%s1 + $0xc] sm:$0xf]
      %v182 = vunpack.c.l.b16 %v172
      %v183 = vunpack.c.l.b16 %v173
      %v184 = vunpack.c.l.b16 %v174
      %v185 = vpack.c.b16 %v183, %v182
      %v186 = vpack.c.b16 %v184, %v184
      %v191 = vunpack.c.l.b16 %v175
      %v192 = vunpack.c.l.b16 %v176
      %v193 = vunpack.c.l.b16 %v177
      %v194 = vunpack.c.l.b16 %v178
      %v195 = vpack.c.b16 %v192, %v191
      %v196 = vpack.c.b16 %v194, %v193
      %vm199 = vcmask 261120
      %v201 = vsel %vm199, %v185, 0
      %v204 = vsel %vm199, %v186, 0
      %206 = vmatpush.bf16.msra.mxu0 0
      %207 = vmatpush.bf16.msra.mxu0 0
      %208 = vmatpush.bf16.msra.mxu0 0
      %209 = vmatpush.bf16.msra.mxu0 0
      %210 = vmatpush.bf16.msra.mxu0 0
      %211 = vmatpush.bf16.msra.mxu0 0
      %212 = vmatpush.bf16.msra.mxu0 %v196
      %213 = vmatpush.bf16.msra.mxu0 %v195
      %214 = vmatmul.bf16.gmra.mxu0 %v201
      %v215 = vpop.f32.mrf.mxu0
      %v216 = vadd.f32 0.0, %v215
      %v217 = vpop.f32.mrf.mxu0
      %v218 = vadd.f32 0.0, %v217
      %219 = vmatmul.bf16.gmra.mxu0 %v204
      %v220 = vpop.f32.mrf.mxu0
      %v221 = vadd.f32 0.0, %v220
      %v222 = vpop.f32.mrf.mxu0
      %223 = vdwg.mxu0
      %vm224 = vcmask 523264
      %225 = vst.msk [vmem:[#allocation2] sm:$0xff] %vm224, %v216
      %226 = vst.msk [vmem:[#allocation2 + $0x8] sm:$0xff] %vm224, %v218
      %vm227 = vcmask 517120
      %228 = vst.msk [vmem:[#allocation2 + $0x10] sm:$0x3] %vm227, %v221
      %v229 = vld [vmem:[%s165] sm:$0xf]
      %v230 = vld [vmem:[%s165 + $0x4] sm:$0xf]
      %v231 = vld [vmem:[%s165 + $0x8] sm:$0x3]
      %s232 = scalar_lea.vmem %s1, 16
      %v233 = vld [vmem:[%s232] sm:$0xf]
      %v234 = vld [vmem:[%s232 + $0x4] sm:$0xf]
      %v235 = vld [vmem:[%s232 + $0x8] sm:$0xf]
      %v236 = vld [vmem:[%s232 + $0xc] sm:$0xf]
      %v240 = vunpack.c.l.b16 %v229
      %v241 = vunpack.c.l.b16 %v230
      %v242 = vunpack.c.l.b16 %v231
      %v243 = vpack.c.b16 %v241, %v240
      %v244 = vpack.c.b16 %v242, %v242
      %vm245 = vsmask.f32 7424
      %v247 = vshrl.u32 %v243, 16
      %v249 = vshll.u32 %v243, 16
      %v251 = vrot.slane %v249, 1
      %v252 = vor.u32 %v247, %v251
      %v254 = vshll.u32 %v244, 16
      %v256 = vrot.slane %v254, 1
      %v257 = vsel %vm245, %v252, %v256
      %v258 = vshrl.u32 %v244, 16
      %v260 = vor.u32 %v258, %v256
      %v265 = vunpack.c.l.b16 %v233
      %v266 = vunpack.c.l.b16 %v234
      %v267 = vunpack.c.l.b16 %v235
      %v268 = vunpack.c.l.b16 %v236
      %v269 = vpack.c.b16 %v266, %v265
      %v270 = vpack.c.b16 %v268, %v267
      %v274 = vsel %vm199, %v257, 0
      %v277 = vsel %vm199, %v260, 0
      %279 = vmatpush.bf16.msra.mxu0 0
      %280 = vmatpush.bf16.msra.mxu0 0
      %281 = vmatpush.bf16.msra.mxu0 0
      %282 = vmatpush.bf16.msra.mxu0 0
      %283 = vmatpush.bf16.msra.mxu0 0
      %284 = vmatpush.bf16.msra.mxu0 0
      %285 = vmatpush.bf16.msra.mxu0 %v270
      %286 = vmatpush.bf16.msra.mxu0 %v269
      %287 = vmatmul.bf16.gmra.mxu0 %v274
      %v288 = vpop.f32.mrf.mxu0
      %v289 = vadd.f32 0.0, %v288
      %v290 = vpop.f32.mrf.mxu0
      %v291 = vadd.f32 0.0, %v290
      %292 = vmatmul.bf16.gmra.mxu0 %v277
      %v293 = vpop.f32.mrf.mxu0
      %v294 = vadd.f32 0.0, %v293
      %v295 = vpop.f32.mrf.mxu0
      %296 = vdwg.mxu0
      %v297 = vld [vmem:[#allocation2] sm:$0xff]
      %v298 = vld [vmem:[#allocation2 + $0x8] sm:$0xff]
      %v299 = vld [vmem:[#allocation2 + $0x10] sm:$0x3]
      %v300 = vadd.f32 %v297, %v289
      %v301 = vadd.f32 %v298, %v291
      %v302 = vadd.f32 %v299, %v294
      %303 = vst.msk [vmem:[#allocation2] sm:$0xff] %vm224, %v300
      %304 = vst.msk [vmem:[#allocation2 + $0x8] sm:$0xff] %vm224, %v301
      %305 = vst.msk [vmem:[#allocation2 + $0x10] sm:$0x3] %vm227, %v302
      %v306 = vld [vmem:[%s165] sm:$0xe]
      %v307 = vld [vmem:[%s165 + $0x4] sm:$0xf]
      %v308 = vld [vmem:[%s165 + $0x8] sm:$0x3]
      %s309 = scalar_lea.vmem %s1, 32
      %v310 = vld [vmem:[%s309] sm:$0xf]
      %v311 = vld [vmem:[%s309 + $0x4] sm:$0xf]
      %v312 = vld [vmem:[%s309 + $0x8] sm:$0xf]
      %v313 = vld [vmem:[%s309 + $0xc] sm:$0xf]
      %v317 = vunpack.c.l.b16 %v306
      %v318 = vunpack.c.l.b16 %v307
      %v319 = vunpack.c.l.b16 %v308
      %v320 = vpack.c.b16 %v318, %v317
      %v321 = vpack.c.b16 %v319, %v319
      %vm322 = vcmask 1046528
      %v323 = vrot.slane %v320, 1
      %v324 = vrot.slane %v321, 1
      %v325 = vsel %vm322, %v323, %v324
      %v330 = vunpack.c.l.b16 %v310
      %v331 = vunpack.c.l.b16 %v311
      %v332 = vunpack.c.l.b16 %v312
      %v333 = vunpack.c.l.b16 %v313
      %v334 = vpack.c.b16 %v331, %v330
      %v335 = vpack.c.b16 %v333, %v332
      %v339 = vsel %vm199, %v325, 0
      %v342 = vsel %vm199, %v324, 0
      %344 = vmatpush.bf16.msra.mxu0 0
      %345 = vmatpush.bf16.msra.mxu0 0
      %346 = vmatpush.bf16.msra.mxu0 0
      %347 = vmatpush.bf16.msra.mxu0 0
      %348 = vmatpush.bf16.msra.mxu0 0
      %349 = vmatpush.bf16.msra.mxu0 0
      %350 = vmatpush.bf16.msra.mxu0 %v335
      %351 = vmatpush.bf16.msra.mxu0 %v334
      %352 = vmatmul.bf16.gmra.mxu0 %v339
      %v353 = vpop.f32.mrf.mxu0
      %v354 = vadd.f32 0.0, %v353
      %v355 = vpop.f32.mrf.mxu0
      %v356 = vadd.f32 0.0, %v355
      %357 = vmatmul.bf16.gmra.mxu0 %v342
      %v358 = vpop.f32.mrf.mxu0
      %v359 = vadd.f32 0.0, %v358
      %v360 = vpop.f32.mrf.mxu0
      %361 = vdwg.mxu0
      %v362 = vld [vmem:[#allocation2] sm:$0xff]
      %v363 = vld [vmem:[#allocation2 + $0x8] sm:$0xff]
      %v364 = vld [vmem:[#allocation2 + $0x10] sm:$0x3]
      %v365 = vadd.f32 %v362, %v354
      %v366 = vadd.f32 %v363, %v356
      %v367 = vadd.f32 %v364, %v359
      %368 = vst.msk [vmem:[#allocation2] sm:$0xff] %vm224, %v365
      %369 = vst.msk [vmem:[#allocation2 + $0x8] sm:$0xff] %vm224, %v366
      %370 = vst.msk [vmem:[#allocation2 + $0x10] sm:$0x3] %vm227, %v367
      %v371 = vld [vmem:[%s165] sm:$0xe]
      %v372 = vld [vmem:[%s165 + $0x4] sm:$0xf]
      %v373 = vld [vmem:[%s165 + $0x8] sm:$0x7]
      %s374 = scalar_lea.vmem %s1, 48
      %v375 = vld [vmem:[%s374] sm:$0xf]
      %v376 = vld [vmem:[%s374 + $0x4] sm:$0xf]
      %v377 = vld [vmem:[%s374 + $0x8] sm:$0xf]
      %v378 = vld [vmem:[%s374 + $0xc] sm:$0xf]
      %v382 = vunpack.c.l.b16 %v371
      %v383 = vunpack.c.l.b16 %v372
      %v384 = vunpack.c.l.b16 %v373
      %v385 = vpack.c.b16 %v383, %v382
      %v386 = vpack.c.b16 %v384, %v384
      %vm387 = vsmask.f32 6400
      %v389 = vshrl.u32 %v385, 16
      %v391 = vrot.slane %v389, 1
      %v392 = vshll.u32 %v385, 16
      %v394 = vrot.slane %v392, 2
      %v395 = vor.u32 %v391, %v394
      %v397 = vshrl.u32 %v386, 16
      %v399 = vrot.slane %v397, 1
      %v400 = vshll.u32 %v386, 16
      %v402 = vrot.slane %v400, 2
      %v403 = vor.u32 %v399, %v402
      %v404 = vsel %vm387, %v395, %v403
      %v409 = vunpack.c.l.b16 %v375
      %v410 = vunpack.c.l.b16 %v376
      %v411 = vunpack.c.l.b16 %v377
      %v412 = vunpack.c.l.b16 %v378
      %v413 = vpack.c.b16 %v410, %v409
      %v414 = vpack.c.b16 %v412, %v411
      %v418 = vsel %vm199, %v404, 0
      %v421 = vsel %vm199, %v403, 0
      %423 = vmatpush.bf16.msra.mxu0 0
      %424 = vmatpush.bf16.msra.mxu0 0
      %425 = vmatpush.bf16.msra.mxu0 0
      %426 = vmatpush.bf16.msra.mxu0 0
      %427 = vmatpush.bf16.msra.mxu0 0
      %428 = vmatpush.bf16.msra.mxu0 0
      %429 = vmatpush.bf16.msra.mxu0 %v414
      %430 = vmatpush.bf16.msra.mxu0 %v413
      %431 = vmatmul.bf16.gmra.mxu0 %v418
      %v432 = vpop.f32.mrf.mxu0
      %v433 = vadd.f32 0.0, %v432
      %v434 = vpop.f32.mrf.mxu0
      %v435 = vadd.f32 0.0, %v434
      %436 = vmatmul.bf16.gmra.mxu0 %v421
      %v437 = vpop.f32.mrf.mxu0
      %v438 = vadd.f32 0.0, %v437
      %v439 = vpop.f32.mrf.mxu0
      %440 = vdwg.mxu0
      %v441 = vld [vmem:[#allocation2] sm:$0xff]
      %v442 = vld [vmem:[#allocation2 + $0x8] sm:$0xff]
      %v443 = vld [vmem:[#allocation2 + $0x10] sm:$0x3]
      %v444 = vadd.f32 %v441, %v433
      %v445 = vadd.f32 %v442, %v435
      %v446 = vadd.f32 %v443, %v438
      %447 = vst.msk [vmem:[#allocation2] sm:$0xff] %vm224, %v444
      %448 = vst.msk [vmem:[#allocation2 + $0x8] sm:$0xff] %vm224, %v445
      %449 = vst.msk [vmem:[#allocation2 + $0x10] sm:$0x3] %vm227, %v446
      %v450 = vld [vmem:[%s165] sm:$0x8]
      %v451 = vld [vmem:[%s165 + $0x4] sm:$0xf]
      %v452 = vld [vmem:[%s165 + $0x8] sm:$0xf]
      %s453 = scalar_lea.vmem %s1, 64
      %v454 = vld [vmem:[%s453] sm:$0xf]
      %v455 = vld [vmem:[%s453 + $0x4] sm:$0xf]
      %v456 = vld [vmem:[%s453 + $0x8] sm:$0xf]
      %v457 = vld [vmem:[%s453 + $0xc] sm:$0xf]
      %v461 = vunpack.c.l.b16 %v450
      %v462 = vunpack.c.l.b16 %v451
      %v463 = vunpack.c.l.b16 %v452
      %v464 = vpack.c.b16 %v462, %v461
      %v465 = vpack.c.b16 %v463, %v463
      %vm466 = vcmask 1044480
      %v467 = vrot.slane %v464, 3
      %v468 = vrot.slane %v465, 3
      %v469 = vsel %vm466, %v467, %v468
      %v474 = vunpack.c.l.b16 %v454
      %v475 = vunpack.c.l.b16 %v455
      %v476 = vunpack.c.l.b16 %v456
      %v477 = vunpack.c.l.b16 %v457
      %v478 = vpack.c.b16 %v475, %v474
      %v479 = vpack.c.b16 %v477, %v476
      %v483 = vsel %vm199, %v469, 0
      %v486 = vsel %vm199, %v468, 0
      %488 = vmatpush.bf16.msra.mxu0 0
      %489 = vmatpush.bf16.msra.mxu0 0
      %490 = vmatpush.bf16.msra.mxu0 0
      %491 = vmatpush.bf16.msra.mxu0 0
      %492 = vmatpush.bf16.msra.mxu0 0
      %493 = vmatpush.bf16.msra.mxu0 0
      %494 = vmatpush.bf16.msra.mxu0 %v479
      %495 = vmatpush.bf16.msra.mxu0 %v478
      %496 = vmatmul.bf16.gmra.mxu0 %v483
      %v497 = vpop.f32.mrf.mxu0
      %v498 = vadd.f32 0.0, %v497
      %v499 = vpop.f32.mrf.mxu0
      %v500 = vadd.f32 0.0, %v499
      %501 = vmatmul.bf16.gmra.mxu0 %v486
      %v502 = vpop.f32.mrf.mxu0
      %v503 = vadd.f32 0.0, %v502
      %v504 = vpop.f32.mrf.mxu0
      %505 = vdwg.mxu0
      %v506 = vld [vmem:[#allocation2] sm:$0xff]
      %v507 = vld [vmem:[#allocation2 + $0x8] sm:$0xff]
      %v508 = vld [vmem:[#allocation2 + $0x10] sm:$0x3]
      %v509 = vadd.f32 %v506, %v498
      %v510 = vadd.f32 %v507, %v500
      %v511 = vadd.f32 %v508, %v503
      %512 = vst.msk [vmem:[#allocation2] sm:$0xff] %vm224, %v509
      %513 = vst.msk [vmem:[#allocation2 + $0x8] sm:$0xff] %vm224, %v510
      %514 = vst.msk [vmem:[#allocation2 + $0x10] sm:$0x3] %vm227, %v511
      %v515 = vld [vmem:[%s165] sm:$0x8]
      %v516 = vld [vmem:[%s165 + $0x4] sm:$0xf]
      %v517 = vld [vmem:[%s165 + $0x8] sm:$0xf]
      %v518 = vld [vmem:[%s165 + $0xc] sm:$0x1]
      %s519 = scalar_lea.vmem %s1, 80
      %v520 = vld [vmem:[%s519] sm:$0xf]
      %v521 = vld [vmem:[%s519 + $0x4] sm:$0xf]
      %v522 = vld [vmem:[%s519 + $0x8] sm:$0xf]
      %v523 = vld [vmem:[%s519 + $0xc] sm:$0xf]
      %v528 = vunpack.c.l.b16 %v515
      %v529 = vunpack.c.l.b16 %v516
      %v530 = vunpack.c.l.b16 %v517
      %v531 = vunpack.c.l.b16 %v518
      %v532 = vpack.c.b16 %v529, %v528
      %v533 = vpack.c.b16 %v531, %v530
      %vm534 = vsmask.f32 4352
      %v536 = vshrl.u32 %v532, 16
      %v538 = vrot.slane %v536, 3
      %v539 = vshll.u32 %v532, 16
      %v541 = vrot.slane %v539, 4
      %v542 = vor.u32 %v538, %v541
      %v544 = vshrl.u32 %v533, 16
      %v546 = vrot.slane %v544, 3
      %v547 = vshll.u32 %v533, 16
      %v549 = vrot.slane %v547, 4
      %v550 = vor.u32 %v546, %v549
      %v551 = vsel %vm534, %v542, %v550
      %v556 = vunpack.c.l.b16 %v520
      %v557 = vunpack.c.l.b16 %v521
      %v558 = vunpack.c.l.b16 %v522
      %v559 = vunpack.c.l.b16 %v523
      %v560 = vpack.c.b16 %v557, %v556
      %v561 = vpack.c.b16 %v559, %v558
      %v565 = vsel %vm199, %v551, 0
      %v568 = vsel %vm199, %v550, 0
      %570 = vmatpush.bf16.msra.mxu0 0
      %571 = vmatpush.bf16.msra.mxu0 0
      %572 = vmatpush.bf16.msra.mxu0 0
      %573 = vmatpush.bf16.msra.mxu0 0
      %574 = vmatpush.bf16.msra.mxu0 0
      %575 = vmatpush.bf16.msra.mxu0 0
      %576 = vmatpush.bf16.msra.mxu0 %v561
      %577 = vmatpush.bf16.msra.mxu0 %v560
      %578 = vmatmul.bf16.gmra.mxu0 %v565
      %v579 = vpop.f32.mrf.mxu0
      %v580 = vadd.f32 0.0, %v579
      %v581 = vpop.f32.mrf.mxu0
      %v582 = vadd.f32 0.0, %v581
      %583 = vmatmul.bf16.gmra.mxu0 %v568
      %v584 = vpop.f32.mrf.mxu0
      %v585 = vadd.f32 0.0, %v584
      %v586 = vpop.f32.mrf.mxu0
      %587 = vdwg.mxu0
      %v588 = vld [vmem:[#allocation2] sm:$0xff]
      %v589 = vld [vmem:[#allocation2 + $0x8] sm:$0xff]
      %v590 = vld [vmem:[#allocation2 + $0x10] sm:$0x3]
      %v591 = vadd.f32 %v588, %v580
      %v592 = vadd.f32 %v589, %v582
      %v593 = vadd.f32 %v590, %v585
      %594 = vst.msk [vmem:[#allocation2] sm:$0xff] %vm224, %v591
      %595 = vst.msk [vmem:[#allocation2 + $0x8] sm:$0xff] %vm224, %v592
      %596 = vst.msk [vmem:[#allocation2 + $0x10] sm:$0x3] %vm227, %v593
      %v597 = vld [vmem:[%s165 + $0x4] sm:$0xf]
      %v598 = vld [vmem:[%s165 + $0x8] sm:$0xf]
      %v599 = vld [vmem:[%s165 + $0xc] sm:$0x1]
      %s600 = scalar_lea.vmem %s1, 96
      %v601 = vld [vmem:[%s600] sm:$0xf]
      %v602 = vld [vmem:[%s600 + $0x4] sm:$0xf]
      %v603 = vld [vmem:[%s600 + $0x8] sm:$0xf]
      %v604 = vld [vmem:[%s600 + $0xc] sm:$0xf]
      %v608 = vunpack.c.l.b16 %v597
      %v609 = vunpack.c.l.b16 %v598
      %v610 = vunpack.c.l.b16 %v599
      %v611 = vpack.c.b16 %v609, %v608
      %v612 = vpack.c.b16 %v610, %v610
      %v617 = vunpack.c.l.b16 %v601
      %v618 = vunpack.c.l.b16 %v602
      %v619 = vunpack.c.l.b16 %v603
      %v620 = vunpack.c.l.b16 %v604
      %v621 = vpack.c.b16 %v618, %v617
      %v622 = vpack.c.b16 %v620, %v619
      %v626 = vsel %vm199, %v611, 0
      %v629 = vsel %vm199, %v612, 0
      %631 = vmatpush.bf16.msra.mxu0 0
      %632 = vmatpush.bf16.msra.mxu0 0
      %633 = vmatpush.bf16.msra.mxu0 0
      %634 = vmatpush.bf16.msra.mxu0 0
      %635 = vmatpush.bf16.msra.mxu0 0
      %636 = vmatpush.bf16.msra.mxu0 0
      %637 = vmatpush.bf16.msra.mxu0 %v622
      %638 = vmatpush.bf16.msra.mxu0 %v621
      %639 = vmatmul.bf16.gmra.mxu0 %v626
      %v640 = vpop.f32.mrf.mxu0
      %v641 = vadd.f32 0.0, %v640
      %v642 = vpop.f32.mrf.mxu0
      %v643 = vadd.f32 0.0, %v642
      %644 = vmatmul.bf16.gmra.mxu0 %v629
      %v645 = vpop.f32.mrf.mxu0
      %v646 = vadd.f32 0.0, %v645
      %v647 = vpop.f32.mrf.mxu0
      %648 = vdwg.mxu0
      %v649 = vld [vmem:[#allocation2] sm:$0xff]
      %v650 = vld [vmem:[#allocation2 + $0x8] sm:$0xff]
      %v651 = vld [vmem:[#allocation2 + $0x10] sm:$0x3]
      %v652 = vadd.f32 %v649, %v641
      %v653 = vadd.f32 %v650, %v643
      %v654 = vadd.f32 %v651, %v646
      %655 = vst.msk [vmem:[#allocation2] sm:$0xff] %vm224, %v652
      %656 = vst.msk [vmem:[#allocation2 + $0x8] sm:$0xff] %vm224, %v653
      %657 = vst.msk [vmem:[#allocation2 + $0x10] sm:$0x3] %vm227, %v654
      %v658 = vld [vmem:[%s165 + $0x4] sm:$0xf]
      %v659 = vld [vmem:[%s165 + $0x8] sm:$0xf]
      %v660 = vld [vmem:[%s165 + $0xc] sm:$0x3]
      %s661 = scalar_lea.vmem %s1, 112
      %v662 = vld [vmem:[%s661] sm:$0xf]
      %v663 = vld [vmem:[%s661 + $0x4] sm:$0xf]
      %v664 = vld [vmem:[%s661 + $0x8] sm:$0xf]
      %v665 = vld [vmem:[%s661 + $0xc] sm:$0xf]
      %v669 = vunpack.c.l.b16 %v658
      %v670 = vunpack.c.l.b16 %v659
      %v671 = vunpack.c.l.b16 %v660
      %v672 = vpack.c.b16 %v670, %v669
      %v673 = vpack.c.b16 %v671, %v671
      %v675 = vshrl.u32 %v672, 16
      %v677 = vshll.u32 %v672, 16
      %v679 = vrot.slane %v677, 1
      %v680 = vor.u32 %v675, %v679
      %v682 = vshll.u32 %v673, 16
      %v684 = vrot.slane %v682, 1
      %v685 = vsel %vm245, %v680, %v684
      %v686 = vshrl.u32 %v673, 16
      %v688 = vor.u32 %v686, %v684
      %v693 = vunpack.c.l.b16 %v662
      %v694 = vunpack.c.l.b16 %v663
      %v695 = vunpack.c.l.b16 %v664
      %v696 = vunpack.c.l.b16 %v665
      %v697 = vpack.c.b16 %v694, %v693
      %v698 = vpack.c.b16 %v696, %v695
      %v702 = vsel %vm199, %v685, 0
      %v705 = vsel %vm199, %v688, 0
      %707 = vmatpush.bf16.msra.mxu0 0
      %708 = vmatpush.bf16.msra.mxu0 0
      %709 = vmatpush.bf16.msra.mxu0 0
      %710 = vmatpush.bf16.msra.mxu0 0
      %711 = vmatpush.bf16.msra.mxu0 0
      %712 = vmatpush.bf16.msra.mxu0 0
      %713 = vmatpush.bf16.msra.mxu0 %v698
      %714 = vmatpush.bf16.msra.mxu0 %v697
      %715 = vmatmul.bf16.gmra.mxu0 %v702
      %v716 = vpop.f32.mrf.mxu0
      %v717 = vadd.f32 0.0, %v716
      %v718 = vpop.f32.mrf.mxu0
      %v719 = vadd.f32 0.0, %v718
      %720 = vmatmul.bf16.gmra.mxu0 %v705
      %v721 = vpop.f32.mrf.mxu0
      %v722 = vadd.f32 0.0, %v721
      %v723 = vpop.f32.mrf.mxu0
      %724 = vdwg.mxu0
      %v725 = vld [vmem:[#allocation2] sm:$0xff]
      %v726 = vld [vmem:[#allocation2 + $0x8] sm:$0xff]
      %v727 = vld [vmem:[#allocation2 + $0x10] sm:$0x3]
      %v728 = vadd.f32 %v725, %v717
      %v729 = vadd.f32 %v726, %v719
      %v730 = vadd.f32 %v727, %v722
      %731 = vst.msk [vmem:[#allocation2] sm:$0xff] %vm224, %v728
      %732 = vst.msk [vmem:[#allocation2 + $0x8] sm:$0xff] %vm224, %v729
      %733 = vst.msk [vmem:[#allocation2 + $0x10] sm:$0x3] %vm227, %v730
      %v734 = vld [vmem:[%s165 + $0x4] sm:$0xc]
      %v735 = vld [vmem:[%s165 + $0x8] sm:$0xf]
      %v736 = vld [vmem:[%s165 + $0xc] sm:$0x7]
      %s737 = scalar_lea.vmem %s1, 128
      %v738 = vld [vmem:[%s737] sm:$0xf]
      %v739 = vld [vmem:[%s737 + $0x4] sm:$0xf]
      %v740 = vld [vmem:[%s737 + $0x8] sm:$0xf]
      %v741 = vld [vmem:[%s737 + $0xc] sm:$0xf]
      %v745 = vunpack.c.l.b16 %v734
      %v746 = vunpack.c.l.b16 %v735
      %v747 = vunpack.c.l.b16 %v736
      %v748 = vpack.c.b16 %v746, %v745
      %v749 = vpack.c.b16 %v747, %v747
      %vm750 = vcmask 1045504
      %v751 = vrot.slane %v748, 2
      %v752 = vrot.slane %v749, 2
      %v753 = vsel %vm750, %v751, %v752
      %v758 = vunpack.c.l.b16 %v738
      %v759 = vunpack.c.l.b16 %v739
      %v760 = vunpack.c.l.b16 %v740
      %v761 = vunpack.c.l.b16 %v741
      %v762 = vpack.c.b16 %v759, %v758
      %v763 = vpack.c.b16 %v761, %v760
      %v767 = vsel %vm199, %v753, 0
      %v770 = vsel %vm199, %v752, 0
      %772 = vmatpush.bf16.msra.mxu0 0
      %773 = vmatpush.bf16.msra.mxu0 0
      %774 = vmatpush.bf16.msra.mxu0 0
      %775 = vmatpush.bf16.msra.mxu0 0
      %776 = vmatpush.bf16.msra.mxu0 0
      %777 = vmatpush.bf16.msra.mxu0 0
      %778 = vmatpush.bf16.msra.mxu0 %v763
      %779 = vmatpush.bf16.msra.mxu0 %v762
      %780 = vmatmul.bf16.gmra.mxu0 %v767
      %v781 = vpop.f32.mrf.mxu0
      %v782 = vadd.f32 0.0, %v781
      %v783 = vpop.f32.mrf.mxu0
      %v784 = vadd.f32 0.0, %v783
      %785 = vmatmul.bf16.gmra.mxu0 %v770
      %v786 = vpop.f32.mrf.mxu0
      %v787 = vadd.f32 0.0, %v786
      %v788 = vpop.f32.mrf.mxu0
      %789 = vdwg.mxu0
      %v790 = vld [vmem:[#allocation2] sm:$0xff]
      %v791 = vld [vmem:[#allocation2 + $0x8] sm:$0xff]
      %v792 = vld [vmem:[#allocation2 + $0x10] sm:$0x3]
      %v793 = vadd.f32 %v790, %v782
      %v794 = vadd.f32 %v791, %v784
      %v795 = vadd.f32 %v792, %v787
      %796 = vst.msk [vmem:[#allocation2] sm:$0xff] %vm224, %v793
      %797 = vst.msk [vmem:[#allocation2 + $0x8] sm:$0xff] %vm224, %v794
      %798 = vst.msk [vmem:[#allocation2 + $0x10] sm:$0x3] %vm227, %v795
      %v799 = vld [vmem:[%s165 + $0x4] sm:$0xc]
      %v800 = vld [vmem:[%s165 + $0x8] sm:$0xf]
      %v801 = vld [vmem:[%s165 + $0xc] sm:$0xf]
      %s802 = scalar_lea.vmem %s1, 144
      %v803 = vld [vmem:[%s802] sm:$0xf]
      %v804 = vld [vmem:[%s802 + $0x4] sm:$0xf]
      %v805 = vld [vmem:[%s802 + $0x8] sm:$0xf]
      %v806 = vld [vmem:[%s802 + $0xc] sm:$0xf]
      %v810 = vunpack.c.l.b16 %v799
      %v811 = vunpack.c.l.b16 %v800
      %v812 = vunpack.c.l.b16 %v801
      %v813 = vpack.c.b16 %v811, %v810
      %v814 = vpack.c.b16 %v812, %v812
      %vm815 = vsmask.f32 5376
      %v817 = vshrl.u32 %v813, 16
      %v819 = vrot.slane %v817, 2
      %v820 = vshll.u32 %v813, 16
      %v822 = vrot.slane %v820, 3
      %v823 = vor.u32 %v819, %v822
      %v825 = vshrl.u32 %v814, 16
      %v827 = vrot.slane %v825, 2
      %v828 = vshll.u32 %v814, 16
      %v830 = vrot.slane %v828, 3
      %v831 = vor.u32 %v827, %v830
      %v832 = vsel %vm815, %v823, %v831
      %v837 = vunpack.c.l.b16 %v803
      %v838 = vunpack.c.l.b16 %v804
      %v839 = vunpack.c.l.b16 %v805
      %v840 = vunpack.c.l.b16 %v806
      %v841 = vpack.c.b16 %v838, %v837
      %v842 = vpack.c.b16 %v840, %v839
      %v846 = vsel %vm199, %v832, 0
      %v849 = vsel %vm199, %v831, 0
      %851 = vmatpush.bf16.msra.mxu0 0
      %852 = vmatpush.bf16.msra.mxu0 0
      %853 = vmatpush.bf16.msra.mxu0 0
      %854 = vmatpush.bf16.msra.mxu0 0
      %855 = vmatpush.bf16.msra.mxu0 0
      %856 = vmatpush.bf16.msra.mxu0 0
      %857 = vmatpush.bf16.msra.mxu0 %v842
      %858 = vmatpush.bf16.msra.mxu0 %v841
      %859 = vmatmul.bf16.gmra.mxu0 %v846
      %v860 = vpop.f32.mrf.mxu0
      %v861 = vadd.f32 0.0, %v860
      %v862 = vpop.f32.mrf.mxu0
      %v863 = vadd.f32 0.0, %v862
      %864 = vmatmul.bf16.gmra.mxu0 %v849
      %v865 = vpop.f32.mrf.mxu0
      %v866 = vadd.f32 0.0, %v865
      %v867 = vpop.f32.mrf.mxu0
      %868 = vdwg.mxu0
      %v869 = vld [vmem:[#allocation2] sm:$0xff]
      %v870 = vld [vmem:[#allocation2 + $0x8] sm:$0xff]
      %v871 = vld [vmem:[#allocation2 + $0x10] sm:$0x3]
      %v872 = vadd.f32 %v869, %v861
      %v873 = vadd.f32 %v870, %v863
      %v874 = vadd.f32 %v871, %v866
      %875 = vst.msk [vmem:[#allocation2] sm:$0xff] %vm224, %v872
      %876 = vst.msk [vmem:[#allocation2 + $0x8] sm:$0xff] %vm224, %v873
      %877 = vst.msk [vmem:[#allocation2 + $0x10] sm:$0x3] %vm227, %v874
      %v878 = vld [vmem:[%s165 + $0x4] sm:$0x8]
      %v879 = vld [vmem:[%s165 + $0x8] sm:$0xf]
      %v880 = vld [vmem:[%s165 + $0xc] sm:$0xf]
      %s881 = scalar_lea.vmem %s1, 160
      %v882 = vld [vmem:[%s881] sm:$0xf]
      %v883 = vld [vmem:[%s881 + $0x4] sm:$0xf]
      %v884 = vld [vmem:[%s881 + $0x8] sm:$0xf]
      %v885 = vld [vmem:[%s881 + $0xc] sm:$0xf]
      %v889 = vunpack.c.l.b16 %v878
      %v890 = vunpack.c.l.b16 %v879
      %v891 = vunpack.c.l.b16 %v880
      %v892 = vpack.c.b16 %v890, %v889
      %v893 = vpack.c.b16 %v891, %v891
      %v894 = vrot.slane %v892, 3
      %v895 = vrot.slane %v893, 3
      %v896 = vsel %vm466, %v894, %v895
      %v901 = vunpack.c.l.b16 %v882
      %v902 = vunpack.c.l.b16 %v883
      %v903 = vunpack.c.l.b16 %v884
      %v904 = vunpack.c.l.b16 %v885
      %v905 = vpack.c.b16 %v902, %v901
      %v906 = vpack.c.b16 %v904, %v903
      %v910 = vsel %vm199, %v896, 0
      %v913 = vsel %vm199, %v895, 0
      %915 = vmatpush.bf16.msra.mxu0 0
      %916 = vmatpush.bf16.msra.mxu0 0
      %917 = vmatpush.bf16.msra.mxu0 0
      %918 = vmatpush.bf16.msra.mxu0 0
      %919 = vmatpush.bf16.msra.mxu0 0
      %920 = vmatpush.bf16.msra.mxu0 0
      %921 = vmatpush.bf16.msra.mxu0 %v906
      %922 = vmatpush.bf16.msra.mxu0 %v905
      %923 = vmatmul.bf16.gmra.mxu0 %v910
      %v924 = vpop.f32.mrf.mxu0
      %v925 = vadd.f32 0.0, %v924
      %v926 = vpop.f32.mrf.mxu0
      %v927 = vadd.f32 0.0, %v926
      %928 = vmatmul.bf16.gmra.mxu0 %v913
      %v929 = vpop.f32.mrf.mxu0
      %v930 = vadd.f32 0.0, %v929
      %v931 = vpop.f32.mrf.mxu0
      %932 = vdwg.mxu0
      %v933 = vld [vmem:[#allocation2] sm:$0xff]
      %v934 = vld [vmem:[#allocation2 + $0x8] sm:$0xff]
      %v935 = vld [vmem:[#allocation2 + $0x10] sm:$0x3]
      %v936 = vadd.f32 %v933, %v925
      %v937 = vadd.f32 %v934, %v927
      %v938 = vadd.f32 %v935, %v930
      %939 = vst.msk [vmem:[#allocation2] sm:$0xff] %vm224, %v936
      %940 = vst.msk [vmem:[#allocation2 + $0x8] sm:$0xff] %vm224, %v937
      %941 = vst.msk [vmem:[#allocation2 + $0x10] sm:$0x3] %vm227, %v938
      %v942 = vld [vmem:[%s165 + $0x4] sm:$0x8]
      %v943 = vld [vmem:[%s165 + $0x8] sm:$0xf]
      %v944 = vld [vmem:[%s165 + $0xc] sm:$0xf]
      %v945 = vld [vmem:[%s165 + $0x10] sm:$0x1]
      %s946 = scalar_lea.vmem %s1, 176
      %v947 = vld [vmem:[%s946] sm:$0xf]
      %v948 = vld [vmem:[%s946 + $0x4] sm:$0xf]
      %v949 = vld [vmem:[%s946 + $0x8] sm:$0xf]
      %v950 = vld [vmem:[%s946 + $0xc] sm:$0xf]
      %v955 = vunpack.c.l.b16 %v942
      %v956 = vunpack.c.l.b16 %v943
      %v957 = vunpack.c.l.b16 %v944
      %v958 = vunpack.c.l.b16 %v945
      %v959 = vpack.c.b16 %v956, %v955
      %v960 = vpack.c.b16 %v958, %v957
      %v962 = vshrl.u32 %v959, 16
      %v964 = vrot.slane %v962, 3
      %v965 = vshll.u32 %v959, 16
      %v967 = vrot.slane %v965, 4
      %v968 = vor.u32 %v964, %v967
      %v970 = vshrl.u32 %v960, 16
      %v972 = vrot.slane %v970, 3
      %v973 = vshll.u32 %v960, 16
      %v975 = vrot.slane %v973, 4
      %v976 = vor.u32 %v972, %v975
      %v977 = vsel %vm534, %v968, %v976
      %v982 = vunpack.c.l.b16 %v947
      %v983 = vunpack.c.l.b16 %v948
      %v984 = vunpack.c.l.b16 %v949
      %v985 = vunpack.c.l.b16 %v950
      %v986 = vpack.c.b16 %v983, %v982
      %v987 = vpack.c.b16 %v985, %v984
      %v991 = vsel %vm199, %v977, 0
      %v994 = vsel %vm199, %v976, 0
      %996 = vmatpush.bf16.msra.mxu0 0
      %997 = vmatpush.bf16.msra.mxu0 0
      %998 = vmatpush.bf16.msra.mxu0 0
      %999 = vmatpush.bf16.msra.mxu0 0
      %1000 = vmatpush.bf16.msra.mxu0 0
      %1001 = vmatpush.bf16.msra.mxu0 0
      %1002 = vmatpush.bf16.msra.mxu0 %v987
      %1003 = vmatpush.bf16.msra.mxu0 %v986
      %1004 = vmatmul.bf16.gmra.mxu0 %v991
      %v1005 = vpop.f32.mrf.mxu0
      %v1006 = vadd.f32 0.0, %v1005
      %v1007 = vpop.f32.mrf.mxu0
      %v1008 = vadd.f32 0.0, %v1007
      %1009 = vmatmul.bf16.gmra.mxu0 %v994
      %v1010 = vpop.f32.mrf.mxu0
      %v1011 = vadd.f32 0.0, %v1010
      %v1012 = vpop.f32.mrf.mxu0
      %1013 = vdwg.mxu0
      %v1014 = vld [vmem:[#allocation2] sm:$0xff]
      %v1015 = vld [vmem:[#allocation2 + $0x8] sm:$0xff]
      %v1016 = vld [vmem:[#allocation2 + $0x10] sm:$0x3]
      %v1017 = vadd.f32 %v1014, %v1006
      %v1018 = vadd.f32 %v1015, %v1008
      %v1019 = vadd.f32 %v1016, %v1011
      %1020 = vst.msk [vmem:[#allocation2] sm:$0xff] %vm224, %v1017
      %1021 = vst.msk [vmem:[#allocation2 + $0x8] sm:$0xff] %vm224, %v1018
      %1022 = vst.msk [vmem:[#allocation2 + $0x10] sm:$0x3] %vm227, %v1019
      %v1023 = vld [vmem:[%s165 + $0x8] sm:$0xe]
      %v1024 = vld [vmem:[%s165 + $0xc] sm:$0xf]
      %v1025 = vld [vmem:[%s165 + $0x10] sm:$0x3]
      %s1026 = scalar_lea.vmem %s1, 192
      %v1027 = vld [vmem:[%s1026] sm:$0xf]
      %v1028 = vld [vmem:[%s1026 + $0x4] sm:$0xf]
      %v1029 = vld [vmem:[%s1026 + $0x8] sm:$0xf]
      %v1030 = vld [vmem:[%s1026 + $0xc] sm:$0xf]
      %v1034 = vunpack.c.l.b16 %v1023
      %v1035 = vunpack.c.l.b16 %v1024
      %v1036 = vunpack.c.l.b16 %v1025
      %v1037 = vpack.c.b16 %v1035, %v1034
      %v1038 = vpack.c.b16 %v1036, %v1036
      %v1039 = vrot.slane %v1037, 1
      %v1040 = vrot.slane %v1038, 1
      %v1041 = vsel %vm322, %v1039, %v1040
      %v1046 = vunpack.c.l.b16 %v1027
      %v1047 = vunpack.c.l.b16 %v1028
      %v1048 = vunpack.c.l.b16 %v1029
      %v1049 = vunpack.c.l.b16 %v1030
      %v1050 = vpack.c.b16 %v1047, %v1046
      %v1051 = vpack.c.b16 %v1049, %v1048
      %v1055 = vsel %vm199, %v1041, 0
      %v1058 = vsel %vm199, %v1040, 0
      %1060 = vmatpush.bf16.msra.mxu0 0
      %1061 = vmatpush.bf16.msra.mxu0 0
      %1062 = vmatpush.bf16.msra.mxu0 0
      %1063 = vmatpush.bf16.msra.mxu0 0
      %1064 = vmatpush.bf16.msra.mxu0 0
      %1065 = vmatpush.bf16.msra.mxu0 0
      %1066 = vmatpush.bf16.msra.mxu0 %v1051
      %1067 = vmatpush.bf16.msra.mxu0 %v1050
      %1068 = vmatmul.bf16.gmra.mxu0 %v1055
      %v1069 = vpop.f32.mrf.mxu0
      %v1070 = vadd.f32 0.0, %v1069
      %v1071 = vpop.f32.mrf.mxu0
      %v1072 = vadd.f32 0.0, %v1071
      %1073 = vmatmul.bf16.gmra.mxu0 %v1058
      %v1074 = vpop.f32.mrf.mxu0
      %v1075 = vadd.f32 0.0, %v1074
      %v1076 = vpop.f32.mrf.mxu0
      %1077 = vdwg.mxu0
      %v1078 = vld [vmem:[#allocation2] sm:$0xff]
      %v1079 = vld [vmem:[#allocation2 + $0x8] sm:$0xff]
      %v1080 = vld [vmem:[#allocation2 + $0x10] sm:$0x3]
      %v1081 = vadd.f32 %v1078, %v1070
      %v1082 = vadd.f32 %v1079, %v1072
      %v1083 = vadd.f32 %v1080, %v1075
      %1084 = vst.msk [vmem:[#allocation2] sm:$0xff] %vm224, %v1081
      %1085 = vst.msk [vmem:[#allocation2 + $0x8] sm:$0xff] %vm224, %v1082
      %1086 = vst.msk [vmem:[#allocation2 + $0x10] sm:$0x3] %vm227, %v1083
      %v1087 = vld [vmem:[%s165 + $0x8] sm:$0xe]
      %v1088 = vld [vmem:[%s165 + $0xc] sm:$0xf]
      %v1089 = vld [vmem:[%s165 + $0x10] sm:$0x7]
      %s1090 = scalar_lea.vmem %s1, 208
      %v1091 = vld [vmem:[%s1090] sm:$0xf]
      %v1092 = vld [vmem:[%s1090 + $0x4] sm:$0xf]
      %v1093 = vld [vmem:[%s1090 + $0x8] sm:$0xf]
      %v1094 = vld [vmem:[%s1090 + $0xc] sm:$0xf]
      %v1098 = vunpack.c.l.b16 %v1087
      %v1099 = vunpack.c.l.b16 %v1088
      %v1100 = vunpack.c.l.b16 %v1089
      %v1101 = vpack.c.b16 %v1099, %v1098
      %v1102 = vpack.c.b16 %v1100, %v1100
      %v1104 = vshrl.u32 %v1101, 16
      %v1106 = vrot.slane %v1104, 1
      %v1107 = vshll.u32 %v1101, 16
      %v1109 = vrot.slane %v1107, 2
      %v1110 = vor.u32 %v1106, %v1109
      %v1112 = vshrl.u32 %v1102, 16
      %v1114 = vrot.slane %v1112, 1
      %v1115 = vshll.u32 %v1102, 16
      %v1117 = vrot.slane %v1115, 2
      %v1118 = vor.u32 %v1114, %v1117
      %v1119 = vsel %vm387, %v1110, %v1118
      %v1124 = vunpack.c.l.b16 %v1091
      %v1125 = vunpack.c.l.b16 %v1092
      %v1126 = vunpack.c.l.b16 %v1093
      %v1127 = vunpack.c.l.b16 %v1094
      %v1128 = vpack.c.b16 %v1125, %v1124
      %v1129 = vpack.c.b16 %v1127, %v1126
      %v1133 = vsel %vm199, %v1119, 0
      %v1136 = vsel %vm199, %v1118, 0
      %1138 = vmatpush.bf16.msra.mxu0 0
      %1139 = vmatpush.bf16.msra.mxu0 0
      %1140 = vmatpush.bf16.msra.mxu0 0
      %1141 = vmatpush.bf16.msra.mxu0 0
      %1142 = vmatpush.bf16.msra.mxu0 0
      %1143 = vmatpush.bf16.msra.mxu0 0
      %1144 = vmatpush.bf16.msra.mxu0 %v1129
      %1145 = vmatpush.bf16.msra.mxu0 %v1128
      %1146 = vmatmul.bf16.gmra.mxu0 %v1133
      %v1147 = vpop.f32.mrf.mxu0
      %v1148 = vadd.f32 0.0, %v1147
      %v1149 = vpop.f32.mrf.mxu0
      %v1150 = vadd.f32 0.0, %v1149
      %1151 = vmatmul.bf16.gmra.mxu0 %v1136
      %v1152 = vpop.f32.mrf.mxu0
      %v1153 = vadd.f32 0.0, %v1152
      %v1154 = vpop.f32.mrf.mxu0
      %1155 = vdwg.mxu0
      %v1156 = vld [vmem:[#allocation2] sm:$0xff]
      %v1157 = vld [vmem:[#allocation2 + $0x8] sm:$0xff]
      %v1158 = vld [vmem:[#allocation2 + $0x10] sm:$0x3]
      %v1159 = vadd.f32 %v1156, %v1148
      %v1160 = vadd.f32 %v1157, %v1150
      %v1161 = vadd.f32 %v1158, %v1153
      %1162 = vst.msk [vmem:[#allocation2] sm:$0xff] %vm224, %v1159
      %1163 = vst.msk [vmem:[#allocation2 + $0x8] sm:$0xff] %vm224, %v1160
      %1164 = vst.msk [vmem:[#allocation2 + $0x10] sm:$0x3] %vm227, %v1161
      %v1165 = vld [vmem:[%s165 + $0x8] sm:$0xc]
      %v1166 = vld [vmem:[%s165 + $0xc] sm:$0xf]
      %v1167 = vld [vmem:[%s165 + $0x10] sm:$0x7]
      %s1168 = scalar_lea.vmem %s1, 224
      %v1169 = vld [vmem:[%s1168] sm:$0xf]
      %v1170 = vld [vmem:[%s1168 + $0x4] sm:$0xf]
      %v1171 = vld [vmem:[%s1168 + $0x8] sm:$0xf]
      %v1172 = vld [vmem:[%s1168 + $0xc] sm:$0xf]
      %v1176 = vunpack.c.l.b16 %v1165
      %v1177 = vunpack.c.l.b16 %v1166
      %v1178 = vunpack.c.l.b16 %v1167
      %v1179 = vpack.c.b16 %v1177, %v1176
      %v1180 = vpack.c.b16 %v1178, %v1178
      %v1181 = vrot.slane %v1179, 2
      %v1182 = vrot.slane %v1180, 2
      %v1183 = vsel %vm750, %v1181, %v1182
      %v1188 = vunpack.c.l.b16 %v1169
      %v1189 = vunpack.c.l.b16 %v1170
      %v1190 = vunpack.c.l.b16 %v1171
      %v1191 = vunpack.c.l.b16 %v1172
      %v1192 = vpack.c.b16 %v1189, %v1188
      %v1193 = vpack.c.b16 %v1191, %v1190
      %v1197 = vsel %vm199, %v1183, 0
      %v1200 = vsel %vm199, %v1182, 0
      %1202 = vmatpush.bf16.msra.mxu0 0
      %1203 = vmatpush.bf16.msra.mxu0 0
      %1204 = vmatpush.bf16.msra.mxu0 0
      %1205 = vmatpush.bf16.msra.mxu0 0
      %1206 = vmatpush.bf16.msra.mxu0 0
      %1207 = vmatpush.bf16.msra.mxu0 0
      %1208 = vmatpush.bf16.msra.mxu0 %v1193
      %1209 = vmatpush.bf16.msra.mxu0 %v1192
      %1210 = vmatmul.bf16.gmra.mxu0 %v1197
      %v1211 = vpop.f32.mrf.mxu0
      %v1212 = vadd.f32 0.0, %v1211
      %v1213 = vpop.f32.mrf.mxu0
      %v1214 = vadd.f32 0.0, %v1213
      %1215 = vmatmul.bf16.gmra.mxu0 %v1200
      %v1216 = vpop.f32.mrf.mxu0
      %v1217 = vadd.f32 0.0, %v1216
      %v1218 = vpop.f32.mrf.mxu0
      %1219 = vdwg.mxu0
      %v1220 = vld [vmem:[#allocation2] sm:$0xff]
      %v1221 = vld [vmem:[#allocation2 + $0x8] sm:$0xff]
      %v1222 = vld [vmem:[#allocation2 + $0x10] sm:$0x3]
      %v1223 = vadd.f32 %v1220, %v1212
      %v1224 = vadd.f32 %v1221, %v1214
      %v1225 = vadd.f32 %v1222, %v1217
      %1226 = vst.msk [vmem:[#allocation2] sm:$0xff] %vm224, %v1223
      %1227 = vst.msk [vmem:[#allocation2 + $0x8] sm:$0xff] %vm224, %v1224
      %1228 = vst.msk [vmem:[#allocation2 + $0x10] sm:$0x3] %vm227, %v1225
      %v1229 = vld [vmem:[%s165 + $0x8] sm:$0xc]
      %v1230 = vld [vmem:[%s165 + $0xc] sm:$0xf]
      %v1231 = vld [vmem:[%s165 + $0x10] sm:$0xf]
      %s1232 = scalar_lea.vmem %s1, 240
      %v1233 = vld [vmem:[%s1232] sm:$0xf]
      %v1234 = vld [vmem:[%s1232 + $0x4] sm:$0xf]
      %v1235 = vld [vmem:[%s1232 + $0x8] sm:$0xf]
      %v1236 = vld [vmem:[%s1232 + $0xc] sm:$0xf]
      %v1240 = vunpack.c.l.b16 %v1229
      %v1241 = vunpack.c.l.b16 %v1230
      %v1242 = vunpack.c.l.b16 %v1231
      %v1243 = vpack.c.b16 %v1241, %v1240
      %v1244 = vpack.c.b16 %v1242, %v1242
      %v1246 = vshrl.u32 %v1243, 16
      %v1248 = vrot.slane %v1246, 2
      %v1249 = vshll.u32 %v1243, 16
      %v1251 = vrot.slane %v1249, 3
      %v1252 = vor.u32 %v1248, %v1251
      %v1254 = vshrl.u32 %v1244, 16
      %v1256 = vrot.slane %v1254, 2
      %v1257 = vshll.u32 %v1244, 16
      %v1259 = vrot.slane %v1257, 3
      %v1260 = vor.u32 %v1256, %v1259
      %v1261 = vsel %vm815, %v1252, %v1260
      %v1266 = vunpack.c.l.b16 %v1233
      %v1267 = vunpack.c.l.b16 %v1234
      %v1268 = vunpack.c.l.b16 %v1235
      %v1269 = vunpack.c.l.b16 %v1236
      %v1270 = vpack.c.b16 %v1267, %v1266
      %v1271 = vpack.c.b16 %v1269, %v1268
      %v1275 = vsel %vm199, %v1261, 0
      %v1278 = vsel %vm199, %v1260, 0
      %1280 = vmatpush.bf16.msra.mxu0 0
      %1281 = vmatpush.bf16.msra.mxu0 0
      %1282 = vmatpush.bf16.msra.mxu0 0
      %1283 = vmatpush.bf16.msra.mxu0 0
      %1284 = vmatpush.bf16.msra.mxu0 0
      %1285 = vmatpush.bf16.msra.mxu0 0
      %1286 = vmatpush.bf16.msra.mxu0 %v1271
      %1287 = vmatpush.bf16.msra.mxu0 %v1270
      %1288 = vmatmul.bf16.gmra.mxu0 %v1275
      %v1289 = vpop.f32.mrf.mxu0
      %v1290 = vadd.f32 0.0, %v1289
      %v1291 = vpop.f32.mrf.mxu0
      %v1292 = vadd.f32 0.0, %v1291
      %1293 = vmatmul.bf16.gmra.mxu0 %v1278
      %v1294 = vpop.f32.mrf.mxu0
      %v1295 = vadd.f32 0.0, %v1294
      %v1296 = vpop.f32.mrf.mxu0
      %1297 = vdwg.mxu0
      %v1298 = vld [vmem:[#allocation2] sm:$0xff]
      %v1299 = vld [vmem:[#allocation2 + $0x8] sm:$0xff]
      %v1300 = vld [vmem:[#allocation2 + $0x10] sm:$0x3]
      %v1301 = vadd.f32 %v1298, %v1290
      %v1302 = vadd.f32 %v1299, %v1292
      %v1303 = vadd.f32 %v1300, %v1295
      %1304 = vst.msk [vmem:[#allocation2] sm:$0xff] %vm224, %v1301
      %1305 = vst.msk [vmem:[#allocation2 + $0x8] sm:$0xff] %vm224, %v1302
      %1306 = vst.msk [vmem:[#allocation2 + $0x10] sm:$0x3] %vm227, %v1303
      %v1307 = vld [vmem:[#allocation2] sm:$0xff]
      %v1308 = vld [vmem:[#allocation2 + $0x8] sm:$0xff]
      %v1309 = vld [vmem:[#allocation2 + $0x10] sm:$0x3]
      %v1310 = vld [vmem:[%s2] sm:$0xff]
      %v1311 = vld [vmem:[%s2 + $0x8] sm:$0xff]
      %v1312 = vld [vmem:[%s2 + $0x10] sm:$0x3]
      %1314 = vset.pattern.permute.xlu0 0
      %1315 = vperm.xlu0 %1314, %v1310
      %v1316 = vpop.permute.xlu0 %1315
      %1319 = vset.pattern.permute.xlu0 0
      %1320 = vperm.xlu0 %1319, %v1311
      %v1321 = vpop.permute.xlu0 %1320
      %1324 = vset.pattern.permute.xlu0 0
      %1325 = vperm.xlu0 %1324, %v1312
      %v1326 = vpop.permute.xlu0 %1325
      %v1328 = vmul.f32 %v1307, %v1316
      %v1329 = vmul.f32 %v1308, %v1321
      %v1330 = vmul.f32 %v1309, %v1326
      %v1331 = vsel %vm224, %v1328, 0.0
      %v1332 = vsel %vm224, %v1329, 0.0
      %v1333 = vadd.f32 %v1331, %v1332
      %v1334 = vsel %vm227, %v1330, 0.0
      %v1335 = vadd.f32 %v1333, %v1334
      %v1336 = vrot.slane %v1335, 4
      %v1337 = vadd.f32 %v1335, %v1336
      %v1338 = vrot.slane %v1337, 2
      %v1339 = vadd.f32 %v1337, %v1338
      %v1340 = vrot.slane %v1339, 1
      %v1341 = vadd.f32 %v1339, %v1340
      %v1342 = vmul.f32 %v1328, %v1328
      %v1343 = vmul.f32 %v1329, %v1329
      %v1344 = vmul.f32 %v1330, %v1330
      %v1345 = vsel %vm224, %v1342, 0.0
      %v1346 = vsel %vm224, %v1343, 0.0
      %v1347 = vadd.f32 %v1345, %v1346
      %v1348 = vsel %vm227, %v1344, 0.0
      %v1349 = vadd.f32 %v1347, %v1348
      %v1350 = vrot.slane %v1349, 4
      %v1351 = vadd.f32 %v1349, %v1350
      %v1352 = vrot.slane %v1351, 2
      %v1353 = vadd.f32 %v1351, %v1352
      %v1354 = vrot.slane %v1353, 1
      %v1355 = vadd.f32 %v1353, %v1354
      %v1356 = vmul.f32 %v1341, 0.11111111
      %v1357 = vmul.f32 %v1355, 0.11111111
      %v1358 = vmul.f32 %v1356, %v1356
      %v1359 = vsub.f32 %v1357, %v1358
      %v1360 = vmax.f32 %v1359, 0.0
      %v1361 = vsub.f32 %v1328, %v1356
      %v1362 = vsub.f32 %v1329, %v1356
      %v1363 = vsub.f32 %v1330, %v1356
      %v1364 = vadd.f32 %v1360, 1e-05
      %v1365 = vrsqrt.pop %v1364
      %v1366 = vmul.f32 %v1365, %v1364
      %v1367 = vmul.f32 %v1366, %v1365
      %v1368 = vmul.f32 0.5, %v1367
      %v1369 = vsub.f32 1.5, %v1368
      %v1370 = vmul.f32 %v1365, %v1369
      %vm1371 = vweird.f32 %v1364
      %vm1372 = vweird.f32 %v1365
      %vm1373 = vmor %vm1371, %vm1372
      %v1374 = vsel %vm1373, %v1365, %v1370
      %v1375 = vmul.f32 %v1361, %v1374
      %v1376 = vmul.f32 %v1362, %v1374
      %v1377 = vmul.f32 %v1363, %v1374
      %vm1378 = vcmp.ge.f32.partialorder %v1375, 0.0
      %vm1379 = vcmp.ge.f32.partialorder %v1376, 0.0
      %vm1380 = vcmp.ge.f32.partialorder %v1377, 0.0
      %v1381 = vmul.f32 %v1375, 0.2
      %v1382 = vmul.f32 %v1376, 0.2
      %v1383 = vmul.f32 %v1377, 0.2
      %v1384 = vsel %vm1378, %v1375, %v1381
      %v1385 = vsel %vm1379, %v1376, %v1382
      %v1386 = vsel %vm1380, %v1377, %v1383
      %v1387 = vpack.c.bf16 %v1384, %v1384
      %v1388 = vpack.c.bf16 %v1385, %v1385
      %v1389 = vpack.c.bf16 %v1386, %v1386
      %vm1390 = vcmask 519168
      %1391 = vst.msk [vmem:[%s170] sm:$0xf] %vm1390, %v1387
      %1392 = vst.msk [vmem:[%s170 + $0x4] sm:$0xf] %vm1390, %v1388
      %vm1393 = vcmask 516096
      %1394 = vst.msk [vmem:[%s170 + $0x8] sm:$0x1] %vm1393, %v1389
      %p1395 = scmp.lt.s32.totalorder %s14, 1
      %s1396 = scalar_select %p1395, %s14, 1
      %s1397 = smul.addr %s1396, 3
      %s1398 = smul.addr %s1397, 4
      %s1399 = scalar_lea.vmem %s3, %s1398
      // Predicated region
      $region33: #{_lambda_.8} parent=31 // pred_check
        %p1400 = pneg %p100
      $region34: #{_lambda_.8} parent=31 // pred_check_branch
        %1402 = sbr.rel (%p1400) target = $region36
      $region35: #{_lambda_.8} parent=31 // pred_region
        _
      $region36: #{_lambda_.8} parent=31 // pred_fallthru
        _
    $region32: #{_lambda_.8} parent=5 // pred_fallthru
      _
    %p1403 = scmp.le.s32.totalorder 2, %s9
    // Predicated region
    $region37: #{_lambda_.8} parent=5 // pred_check
      %p1404 = pneg %p1403
    $region38: #{_lambda_.8} parent=5 // pred_check_branch
      %1406 = sbr.rel (%p1404) target = $region40
    $region39: #{_lambda_.8} parent=5 // pred_region
      %s1407 = ssub.s32 %s9, 2
      // Predicated region
      $region41: #{_lambda_.8} parent=39 // pred_check
        %p1408 = pneg %p106
      $region42: #{_lambda_.8} parent=39 // pred_check_branch
        %1410 = sbr.rel (%p1408) target = $region44
      $region43: #{_lambda_.8} parent=39 // pred_region
        %p1411 = scmp.lt.s32.totalorder %s15, 1
        %s1412 = scalar_select %p1411, %s15, 1
        %s1413 = smul.addr %s1412, 3
        %s1414 = smul.addr %s1413, 4
        %s1415 = scalar_lea.vmem %s3, %s1414
      $region44: #{_lambda_.8} parent=39 // pred_fallthru
        _
    $region40: #{_lambda_.8} parent=5 // pred_fallthru
      _
  $region6: #{_lambda_.8} parent=0 // loop_footer
    %s13 = sadd.s32 1, %s9
  $region7: #{_lambda_.8} parent=0 // loop_footer_branch
    %8 = sbr.rel target = $region3
  $region8: #{_lambda_.8} parent=0 // loop_exit
    _

</llo_original>
